<compile_context>
chip_gen: v5e
topology: v5e:2x2
jax: 0.10.0
libtpu: 0.0.40
codegen_flags: <defaults>
</compile_context>

<pallas_src>
import math
import re

import jax
import jax.numpy as jnp
from jax.experimental import pallas as pl
from jax.experimental.pallas import tpu as pltpu

# ----------------------------- model config --------------------------------
VOCAB_SIZE = 30        # [PAD],[UNK],[CLS],[SEP] + amino-acid letters
MAX_POS = 64
TYPE_VOCAB = 2
HIDDEN = 32
NUM_HEADS = 4
HEAD_DIM = HIDDEN // NUM_HEADS
INTERMEDIATE = 64
NUM_LAYERS = 2
LN_EPS = 1e-12
SEQ_LEN = 16           # fixed (padded) sequence length
BATCH = 2


class Config:
    cuda = False


# ----------------------------- fused kernel --------------------------------
def _layernorm(x, g, b):
    mu = jnp.mean(x, axis=-1, keepdims=True)
    xc = x - mu
    var = jnp.mean(xc * xc, axis=-1, keepdims=True)
    return xc * jax.lax.rsqrt(var + LN_EPS) * g + b


def _gelu(x):
    # TODO(synk): HF "gelu" is erf-based; tanh approximation used here.
    return 0.5 * x * (1.0 + jnp.tanh(
        0.7978845608028654 * (x + 0.044715 * x * x * x)))


def _encoder_kernel(emb_ref, mask_ref, eg_ref, eb_ref,
                    wqkv_ref, bqkv_ref, wo_ref, bo_ref,
                    ln1g_ref, ln1b_ref, w1_ref, b1_ref,
                    w2_ref, b2_ref, ln2g_ref, ln2b_ref,
                    poolw_ref, poolb_ref,
                    hid_ref, pool_ref, probs_ref):
    """One grid step == one batch element; all layers unrolled inside."""
    S, D = hid_ref.shape                       # (16, 32)
    H, Dh = NUM_HEADS, HEAD_DIM
    scale = 1.0 / math.sqrt(Dh)

    # Embedding LayerNorm (embedding gather is done outside as glue).
    h = _layernorm(emb_ref[...].astype(jnp.float32), eg_ref[...], eb_ref[...])
    mbias = mask_ref[...]                      # (1, S) additive key mask

    for l in range(NUM_LAYERS):
        # Fused QKV projection: one (S, D) @ (D, 3D) matmul.
        qkv = (jnp.dot(h, wqkv_ref[l], preferred_element_type=jnp.float32)
               + bqkv_ref[l])

        # Per-head attention by lane-slicing the 3D-wide QKV value.
        ctx_parts = []
        for head in range(H):
            lo = head * Dh
            qh = qkv[:, lo:lo + Dh]
            kh = qkv[:, D + lo:D + lo + Dh]
            vh = qkv[:, 2 * D + lo:2 * D + lo + Dh]
            s = jnp.dot(qh, kh.T, preferred_element_type=jnp.float32) * scale
            s = s + mbias
            s = s - jnp.max(s, axis=-1, keepdims=True)
            e = jnp.exp(s)
            p = e * pl.reciprocal(jnp.sum(e, axis=-1, keepdims=True),
                                  approx=True)
            probs_ref[l * H + head] = p
            ctx_parts.append(jnp.dot(p, vh, preferred_element_type=jnp.float32))
        ctx = jnp.concatenate(ctx_parts, axis=-1)          # (S, D)

        # Attention output projection + residual LayerNorm.
        attn_out = (jnp.dot(ctx, wo_ref[l], preferred_element_type=jnp.float32)
                    + bo_ref[l])
        h = _layernorm(attn_out + h, ln1g_ref[l], ln1b_ref[l])

        # Feed-forward + residual LayerNorm.
        inter = _gelu(jnp.dot(h, w1_ref[l],
                              preferred_element_type=jnp.float32) + b1_ref[l])
        ffn = (jnp.dot(inter, w2_ref[l], preferred_element_type=jnp.float32)
               + b2_ref[l])
        h = _layernorm(ffn + h, ln2g_ref[l], ln2b_ref[l])

    hid_ref[...] = h.astype(hid_ref.dtype)

    # Pooler: tanh(dense([CLS])) for this batch element.
    cls = h[0:1, :]                                        # (1, D)
    pooled = jnp.tanh(
        jnp.dot(cls, poolw_ref[...], preferred_element_type=jnp.float32)
        + poolb_ref[...])
    pool_ref[...] = pooled.astype(pool_ref.dtype)


# ----------------------------- parameter init ------------------------------
def init_params(key):
    def nrm(k, shape):
        return 0.02 * jax.random.normal(k, shape, jnp.float32)

    keys = iter(jax.random.split(key, 16 + NUM_LAYERS * 32))
    params = {
        "word_emb": nrm(next(keys), (VOCAB_SIZE, HIDDEN)),
        "pos_emb": nrm(next(keys), (MAX_POS, HIDDEN)),
        "type_emb": nrm(next(keys), (TYPE_VOCAB, HIDDEN)),
        "emb_ln_g": jnp.ones((HIDDEN,), jnp.float32),
        "emb_ln_b": jnp.zeros((HIDDEN,), jnp.float32),
        "pool_w": nrm(next(keys), (HIDDEN, HIDDEN)),
        "pool_b": jnp.zeros((HIDDEN,), jnp.float32),
        "layers": [],
    }
    for _ in range(NUM_LAYERS):
        layer = {
            "wq": nrm(next(keys), (HIDDEN, HIDDEN)),
            "bq": jnp.zeros((HIDDEN,), jnp.float32),
            "wk": nrm(next(keys), (HIDDEN, HIDDEN)),
            "bk": jnp.zeros((HIDDEN,), jnp.float32),
            "wv": nrm(next(keys), (HIDDEN, HIDDEN)),
            "bv": jnp.zeros((HIDDEN,), jnp.float32),
            "wo": nrm(next(keys), (HIDDEN, HIDDEN)),
            "bo": jnp.zeros((HIDDEN,), jnp.float32),
            "ln1_g": jnp.ones((HIDDEN,), jnp.float32),
            "ln1_b": jnp.zeros((HIDDEN,), jnp.float32),
            "w1": nrm(next(keys), (HIDDEN, INTERMEDIATE)),
            "b1": jnp.zeros((INTERMEDIATE,), jnp.float32),
            "w2": nrm(next(keys), (INTERMEDIATE, HIDDEN)),
            "b2": jnp.zeros((HIDDEN,), jnp.float32),
            "ln2_g": jnp.ones((HIDDEN,), jnp.float32),
            "ln2_b": jnp.zeros((HIDDEN,), jnp.float32),
        }
        params["layers"].append(layer)
    return params


# ----------------------------- tokenizer glue ------------------------------
def tokenize(prot_seqs, pep_seqs, max_len=SEQ_LEN):
    """Deterministic in-script stand-in for the ProtBert tokenizer."""
    vocab = {"[PAD]": 0, "[UNK]": 1, "[CLS]": 2, "[SEP]": 3}
    for i, c in enumerate("ACDEFGHIKLMNPQRSTVWXY"):
        vocab[c] = 4 + i
    prot = [re.sub("[UZOB]", "X", " ".join(s)) + " [SEP] " for s in prot_seqs]
    pep = [re.sub("[UZOB]", "X", " ".join(s)) for s in pep_seqs]
    seqs = [prot[i] + pep[i] for i in range(len(prot))]
    ids, types, masks = [], [], []
    for s in seqs:
        toks = ["[CLS]"] + s.split() + ["[SEP]"]
        tid = [vocab.get(t, vocab["[UNK]"]) for t in toks][:max_len]
        pad = max_len - len(tid)
        ids.append(tid + [0] * pad)
        types.append([0] * max_len)
        masks.append([1] * len(tid) + [0] * pad)
    return (jnp.asarray(ids, jnp.int32),
            jnp.asarray(types, jnp.int32),
            jnp.asarray(masks, jnp.int32))


# ----------------------------- BERT forward --------------------------------
def bert_forward(params, input_ids, token_type_ids, attention_mask):
    B, S = input_ids.shape
    D, H, L = HIDDEN, NUM_HEADS, NUM_LAYERS

    # Embedding gathers (glue, outside the kernel) — summed word+pos+type.
    emb = (params["word_emb"][input_ids]
           + params["pos_emb"][jnp.arange(S)][None, :, :]
           + params["type_emb"][token_type_ids]).astype(jnp.float32)   # (B,S,D)
    mask_bias = ((1.0 - attention_mask.astype(jnp.float32)) * -1e9
                 ).reshape(B, 1, S)

    # Stack per-layer weights with a leading layer dim; fuse Wq/Wk/Wv.
    lys = params["layers"]
    wqkv = jnp.stack([jnp.concatenate([l["wq"], l["wk"], l["wv"]], axis=1)
                      for l in lys])                                   # (L,D,3D)
    bqkv = jnp.stack([jnp.concatenate([l["bq"], l["bk"], l["bv"]])[None, :]
                      for l in lys])                                   # (L,1,3D)
    wo = jnp.stack([l["wo"] for l in lys])
    bo = jnp.stack([l["bo"][None, :] for l in lys])
    ln1g = jnp.stack([l["ln1_g"][None, :] for l in lys])
    ln1b = jnp.stack([l["ln1_b"][None, :] for l in lys])
    w1 = jnp.stack([l["w1"] for l in lys])
    b1 = jnp.stack([l["b1"][None, :] for l in lys])
    w2 = jnp.stack([l["w2"] for l in lys])
    b2 = jnp.stack([l["b2"][None, :] for l in lys])
    ln2g = jnp.stack([l["ln2_g"][None, :] for l in lys])
    ln2b = jnp.stack([l["ln2_b"][None, :] for l in lys])

    eg = params["emb_ln_g"].reshape(1, D)
    eb = params["emb_ln_b"].reshape(1, D)
    poolw = params["pool_w"]
    poolb = params["pool_b"].reshape(1, D)

    def bcast_spec(arr):
        nd = arr.ndim
        return pl.BlockSpec(arr.shape, lambda b, _nd=nd: (0,) * _nd)

    in_specs = [
        pl.BlockSpec((None, S, D), lambda b: (b, 0, 0)),     # emb (per batch)
        pl.BlockSpec((None, 1, S), lambda b: (b, 0, 0)),     # mask_bias
        bcast_spec(eg), bcast_spec(eb),
        bcast_spec(wqkv), bcast_spec(bqkv), bcast_spec(wo), bcast_spec(bo),
        bcast_spec(ln1g), bcast_spec(ln1b), bcast_spec(w1), bcast_spec(b1),
        bcast_spec(w2), bcast_spec(b2), bcast_spec(ln2g), bcast_spec(ln2b),
        bcast_spec(poolw), bcast_spec(poolb),
    ]
    out_specs = (
        pl.BlockSpec((None, S, D), lambda b: (b, 0, 0)),             # hidden
        pl.BlockSpec((None, 1, D), lambda b: (b, 0, 0)),             # pooled
        pl.BlockSpec((None, L * H, S, S), lambda b: (b, 0, 0, 0)),   # attn probs
    )
    out_shape = (
        jax.ShapeDtypeStruct((B, S, D), jnp.float32),
        jax.ShapeDtypeStruct((B, 1, D), jnp.float32),
        jax.ShapeDtypeStruct((B, L * H, S, S), jnp.float32),
    )

    hidden, pooled, probs = pl.pallas_call(
        _encoder_kernel,
        out_shape=out_shape,
        grid=(B,),
        in_specs=in_specs,
        out_specs=out_specs,
        compiler_params=pltpu.CompilerParams(
            dimension_semantics=("parallel",)),   # lets v7x split batch on 2 TCs
    )(emb, mask_bias, eg, eb, wqkv, bqkv, wo, bo,
      ln1g, ln1b, w1, b1, w2, b2, ln2g, ln2b, poolw, poolb)

    probs = probs.reshape(B, L, H, S, S)
    attentions = tuple(probs[:, l] for l in range(L))
    # Mirrors BertModel(..., output_attentions=True) output structure.
    return {
        "last_hidden_state": hidden,
        "pooler_output": pooled.reshape(B, D),
        "attentions": attentions,
    }


# ----------------------------- driver ---------------------------------------
if __name__ == "__main__":
    config = Config()
    key = jax.random.PRNGKey(0)
    params = init_params(key)

    prot_seqs = ["MKVLAB", "ACDEUZ"]   # includes U/Z/B -> mapped to X
    pep_seqs = ["GGH", "KLM"]
    input_ids, token_type_ids, attention_mask = tokenize(prot_seqs, pep_seqs)

    forward = jax.jit(bert_forward)
    representation = forward(params, input_ids, token_type_ids, attention_mask)
    jax.block_until_ready(representation)

    lhs = representation["last_hidden_state"]
    pooled = representation["pooler_output"]
    assert lhs.shape == (BATCH, SEQ_LEN, HIDDEN)
    assert pooled.shape == (BATCH, HIDDEN)
    assert len(representation["attentions"]) == NUM_LAYERS
    assert representation["attentions"][0].shape == (BATCH, NUM_HEADS, SEQ_LEN, SEQ_LEN)
    assert bool(jnp.all(jnp.isfinite(lhs))) and bool(jnp.all(jnp.isfinite(pooled)))
    print("KERNEL_OK")
</pallas_src>

<mosaic_0001>
module attributes {stable_mosaic.version = 11 : i64} {
  func.func @_encoder_kernel(%arg0: i32, %arg1: memref<1x16x32xf32, #tpu.memory_space<vmem>>, %arg2: memref<1x1x16xf32, #tpu.memory_space<vmem>>, %arg3: memref<1x32xf32, #tpu.memory_space<vmem>>, %arg4: memref<1x32xf32, #tpu.memory_space<vmem>>, %arg5: memref<2x32x96xf32, #tpu.memory_space<vmem>>, %arg6: memref<2x1x96xf32, #tpu.memory_space<vmem>>, %arg7: memref<2x32x32xf32, #tpu.memory_space<vmem>>, %arg8: memref<2x1x32xf32, #tpu.memory_space<vmem>>, %arg9: memref<2x1x32xf32, #tpu.memory_space<vmem>>, %arg10: memref<2x1x32xf32, #tpu.memory_space<vmem>>, %arg11: memref<2x32x64xf32, #tpu.memory_space<vmem>>, %arg12: memref<2x1x64xf32, #tpu.memory_space<vmem>>, %arg13: memref<2x64x32xf32, #tpu.memory_space<vmem>>, %arg14: memref<2x1x32xf32, #tpu.memory_space<vmem>>, %arg15: memref<2x1x32xf32, #tpu.memory_space<vmem>>, %arg16: memref<2x1x32xf32, #tpu.memory_space<vmem>>, %arg17: memref<32x32xf32, #tpu.memory_space<vmem>>, %arg18: memref<1x32xf32, #tpu.memory_space<vmem>>, %arg19: memref<1x16x32xf32, #tpu.memory_space<vmem>>, %arg20: memref<1x1x32xf32, #tpu.memory_space<vmem>>, %arg21: memref<1x8x16x16xf32, #tpu.memory_space<vmem>>) attributes {dimension_semantics = [#tpu.dimension_semantics<parallel>], iteration_bounds = array<i64: 2>, scalar_prefetch = 0 : i64, scratch_operands = 0 : i64, tpu.core_type = #tpu.core_type<tc>, window_params = [{transform_indices = @transform_0, window_bounds = array<i64: 1, 16, 32>}, {transform_indices = @transform_1, window_bounds = array<i64: 1, 1, 16>}, {pipeline_mode = #tpu.pipeline_mode<synchronous>, transform_indices = @transform_2, window_bounds = array<i64: 1, 32>}, {pipeline_mode = #tpu.pipeline_mode<synchronous>, transform_indices = @transform_3, window_bounds = array<i64: 1, 32>}, {pipeline_mode = #tpu.pipeline_mode<synchronous>, transform_indices = @transform_4, window_bounds = array<i64: 2, 32, 96>}, {pipeline_mode = #tpu.pipeline_mode<synchronous>, transform_indices = @transform_5, window_bounds = array<i64: 2, 1, 96>}, {pipeline_mode = #tpu.pipeline_mode<synchronous>, transform_indices = @transform_6, window_bounds = array<i64: 2, 32, 32>}, {pipeline_mode = #tpu.pipeline_mode<synchronous>, transform_indices = @transform_7, window_bounds = array<i64: 2, 1, 32>}, {pipeline_mode = #tpu.pipeline_mode<synchronous>, transform_indices = @transform_8, window_bounds = array<i64: 2, 1, 32>}, {pipeline_mode = #tpu.pipeline_mode<synchronous>, transform_indices = @transform_9, window_bounds = array<i64: 2, 1, 32>}, {pipeline_mode = #tpu.pipeline_mode<synchronous>, transform_indices = @transform_10, window_bounds = array<i64: 2, 32, 64>}, {pipeline_mode = #tpu.pipeline_mode<synchronous>, transform_indices = @transform_11, window_bounds = array<i64: 2, 1, 64>}, {pipeline_mode = #tpu.pipeline_mode<synchronous>, transform_indices = @transform_12, window_bounds = array<i64: 2, 64, 32>}, {pipeline_mode = #tpu.pipeline_mode<synchronous>, transform_indices = @transform_13, window_bounds = array<i64: 2, 1, 32>}, {pipeline_mode = #tpu.pipeline_mode<synchronous>, transform_indices = @transform_14, window_bounds = array<i64: 2, 1, 32>}, {pipeline_mode = #tpu.pipeline_mode<synchronous>, transform_indices = @transform_15, window_bounds = array<i64: 2, 1, 32>}, {pipeline_mode = #tpu.pipeline_mode<synchronous>, transform_indices = @transform_16, window_bounds = array<i64: 32, 32>}, {pipeline_mode = #tpu.pipeline_mode<synchronous>, transform_indices = @transform_17, window_bounds = array<i64: 1, 32>}, {transform_indices = @transform_18, window_bounds = array<i64: 1, 16, 32>}, {transform_indices = @transform_19, window_bounds = array<i64: 1, 1, 32>}, {transform_indices = @transform_20, window_bounds = array<i64: 1, 8, 16, 16>}]} {
    %c0 = arith.constant 0 : index
    %c0_0 = arith.constant 0 : index
    %c0_1 = arith.constant 0 : index
    %0 = vector.load %arg1[%c0, %c0_0, %c0_1] : memref<1x16x32xf32, #tpu.memory_space<vmem>>, vector<1x16x32xf32>
    %1 = vector.shape_cast %0 : vector<1x16x32xf32> to vector<16x32xf32>
    %c0_2 = arith.constant 0 : index
    %c0_3 = arith.constant 0 : index
    %2 = vector.load %arg3[%c0_2, %c0_3] : memref<1x32xf32, #tpu.memory_space<vmem>>, vector<1x32xf32>
    %c0_4 = arith.constant 0 : index
    %c0_5 = arith.constant 0 : index
    %3 = vector.load %arg4[%c0_4, %c0_5] : memref<1x32xf32, #tpu.memory_space<vmem>>, vector<1x32xf32>
    %cst = arith.constant dense<0.000000e+00> : vector<16xf32>
    %4 = vector.multi_reduction <add>, %1, %cst [1] : vector<16x32xf32> to vector<16xf32>
    %5 = vector.shape_cast %4 : vector<16xf32> to vector<16x1xf32>
    %cst_6 = arith.constant 3.200000e+01 : f32
    %6 = vector.broadcast %cst_6 : f32 to vector<16x1xf32>
    %7 = arith.divf %5, %6 : vector<16x1xf32>
    %8 = vector.broadcast %7 : vector<16x1xf32> to vector<16x32xf32>
    %9 = arith.subf %1, %8 : vector<16x32xf32>
    %10 = arith.mulf %9, %9 : vector<16x32xf32>
    %cst_7 = arith.constant dense<0.000000e+00> : vector<16xf32>
    %11 = vector.multi_reduction <add>, %10, %cst_7 [1] : vector<16x32xf32> to vector<16xf32>
    %12 = vector.shape_cast %11 : vector<16xf32> to vector<16x1xf32>
    %cst_8 = arith.constant 3.200000e+01 : f32
    %13 = vector.broadcast %cst_8 : f32 to vector<16x1xf32>
    %14 = arith.divf %12, %13 : vector<16x1xf32>
    %cst_9 = arith.constant 9.99999996E-13 : f32
    %15 = vector.broadcast %cst_9 : f32 to vector<16x1xf32>
    %16 = arith.addf %14, %15 : vector<16x1xf32>
    %17 = math.rsqrt %16 : vector<16x1xf32>
    %18 = vector.broadcast %17 : vector<16x1xf32> to vector<16x32xf32>
    %19 = arith.mulf %9, %18 : vector<16x32xf32>
    %20 = vector.broadcast %2 : vector<1x32xf32> to vector<16x32xf32>
    %21 = arith.mulf %19, %20 : vector<16x32xf32>
    %22 = vector.broadcast %3 : vector<1x32xf32> to vector<16x32xf32>
    %23 = arith.addf %21, %22 : vector<16x32xf32>
    %c0_10 = arith.constant 0 : index
    %c0_11 = arith.constant 0 : index
    %c0_12 = arith.constant 0 : index
    %24 = vector.load %arg2[%c0_10, %c0_11, %c0_12] : memref<1x1x16xf32, #tpu.memory_space<vmem>>, vector<1x1x16xf32>
    %25 = vector.shape_cast %24 : vector<1x1x16xf32> to vector<1x16xf32>
    %c0_13 = arith.constant 0 : index
    %c0_14 = arith.constant 0 : index
    %c0_15 = arith.constant 0 : index
    %26 = vector.load %arg5[%c0_13, %c0_14, %c0_15] : memref<2x32x96xf32, #tpu.memory_space<vmem>>, vector<1x32x96xf32>
    %27 = vector.shape_cast %26 : vector<1x32x96xf32> to vector<32x96xf32>
    %cst_16 = arith.constant dense<0.000000e+00> : vector<16x96xf32>
    %28 = tpu.matmul %23, %27, %cst_16 {dimension_numbers = #tpu.dot_dimension_numbers<[1], [0], [0], [1], [0, 0, 1, 1], [], []>} : vector<16x32xf32>, vector<32x96xf32>, vector<16x96xf32> -> vector<16x96xf32>
    %c0_17 = arith.constant 0 : index
    %c0_18 = arith.constant 0 : index
    %c0_19 = arith.constant 0 : index
    %29 = vector.load %arg6[%c0_17, %c0_18, %c0_19] : memref<2x1x96xf32, #tpu.memory_space<vmem>>, vector<1x1x96xf32>
    %30 = vector.shape_cast %29 : vector<1x1x96xf32> to vector<1x96xf32>
    %31 = vector.broadcast %30 : vector<1x96xf32> to vector<16x96xf32>
    %32 = arith.addf %28, %31 : vector<16x96xf32>
    %33 = vector.extract_strided_slice %32 {offsets = [0, 0], sizes = [16, 8], strides = [1, 1]} : vector<16x96xf32> to vector<16x8xf32>
    %34 = vector.extract_strided_slice %32 {offsets = [0, 32], sizes = [16, 8], strides = [1, 1]} : vector<16x96xf32> to vector<16x8xf32>
    %35 = vector.extract_strided_slice %32 {offsets = [0, 64], sizes = [16, 8], strides = [1, 1]} : vector<16x96xf32> to vector<16x8xf32>
    %36 = tpu.transpose %34, [1, 0] : vector<16x8xf32> -> vector<8x16xf32>
    %cst_20 = arith.constant dense<0.000000e+00> : vector<16x16xf32>
    %37 = tpu.matmul %33, %36, %cst_20 {dimension_numbers = #tpu.dot_dimension_numbers<[1], [0], [0], [1], [0, 0, 1, 1], [], []>} : vector<16x8xf32>, vector<8x16xf32>, vector<16x16xf32> -> vector<16x16xf32>
    %cst_21 = arith.constant 0.353553385 : f32
    %38 = vector.broadcast %cst_21 : f32 to vector<16x16xf32>
    %39 = arith.mulf %37, %38 : vector<16x16xf32>
    %40 = vector.broadcast %25 : vector<1x16xf32> to vector<16x16xf32>
    %41 = arith.addf %39, %40 : vector<16x16xf32>
    %cst_22 = arith.constant dense<0xFF800000> : vector<16xf32>
    %42 = vector.multi_reduction <maximumf>, %41, %cst_22 [1] : vector<16x16xf32> to vector<16xf32>
    %43 = vector.shape_cast %42 : vector<16xf32> to vector<16x1xf32>
    %44 = vector.broadcast %43 : vector<16x1xf32> to vector<16x16xf32>
    %45 = arith.subf %41, %44 : vector<16x16xf32>
    %46 = math.exp %45 : vector<16x16xf32>
    %cst_23 = arith.constant dense<0.000000e+00> : vector<16xf32>
    %47 = vector.multi_reduction <add>, %46, %cst_23 [1] : vector<16x16xf32> to vector<16xf32>
    %48 = vector.shape_cast %47 : vector<16xf32> to vector<16x1xf32>
    %49 = tpu.reciprocal %48 {approx = true} : vector<16x1xf32> -> vector<16x1xf32>
    %50 = vector.broadcast %49 : vector<16x1xf32> to vector<16x16xf32>
    %51 = arith.mulf %46, %50 : vector<16x16xf32>
    %c0_24 = arith.constant 0 : index
    %c0_25 = arith.constant 0 : index
    %c0_26 = arith.constant 0 : index
    %c0_27 = arith.constant 0 : index
    %52 = vector.load %arg21[%c0_24, %c0_25, %c0_26, %c0_27] : memref<1x8x16x16xf32, #tpu.memory_space<vmem>>, vector<1x1x16x16xf32>
    %53 = vector.shape_cast %52 : vector<1x1x16x16xf32> to vector<16x16xf32>
    %54 = vector.shape_cast %51 : vector<16x16xf32> to vector<1x1x16x16xf32>
    tpu.vector_store %arg21[%c0_24, %c0_25, %c0_26, %c0_27], %54 {strides = array<i32>} : memref<1x8x16x16xf32, #tpu.memory_space<vmem>>, vector<1x1x16x16xf32>,
    %cst_28 = arith.constant dense<0.000000e+00> : vector<16x8xf32>
    %55 = tpu.matmul %51, %35, %cst_28 {dimension_numbers = #tpu.dot_dimension_numbers<[1], [0], [0], [1], [0, 0, 1, 1], [], []>} : vector<16x16xf32>, vector<16x8xf32>, vector<16x8xf32> -> vector<16x8xf32>
    %56 = vector.extract_strided_slice %32 {offsets = [0, 8], sizes = [16, 8], strides = [1, 1]} : vector<16x96xf32> to vector<16x8xf32>
    %57 = vector.extract_strided_slice %32 {offsets = [0, 40], sizes = [16, 8], strides = [1, 1]} : vector<16x96xf32> to vector<16x8xf32>
    %58 = vector.extract_strided_slice %32 {offsets = [0, 72], sizes = [16, 8], strides = [1, 1]} : vector<16x96xf32> to vector<16x8xf32>
    %59 = tpu.transpose %57, [1, 0] : vector<16x8xf32> -> vector<8x16xf32>
    %cst_29 = arith.constant dense<0.000000e+00> : vector<16x16xf32>
    %60 = tpu.matmul %56, %59, %cst_29 {dimension_numbers = #tpu.dot_dimension_numbers<[1], [0], [0], [1], [0, 0, 1, 1], [], []>} : vector<16x8xf32>, vector<8x16xf32>, vector<16x16xf32> -> vector<16x16xf32>
    %cst_30 = arith.constant 0.353553385 : f32
    %61 = vector.broadcast %cst_30 : f32 to vector<16x16xf32>
    %62 = arith.mulf %60, %61 : vector<16x16xf32>
    %63 = vector.broadcast %25 : vector<1x16xf32> to vector<16x16xf32>
    %64 = arith.addf %62, %63 : vector<16x16xf32>
    %cst_31 = arith.constant dense<0xFF800000> : vector<16xf32>
    %65 = vector.multi_reduction <maximumf>, %64, %cst_31 [1] : vector<16x16xf32> to vector<16xf32>
    %66 = vector.shape_cast %65 : vector<16xf32> to vector<16x1xf32>
    %67 = vector.broadcast %66 : vector<16x1xf32> to vector<16x16xf32>
    %68 = arith.subf %64, %67 : vector<16x16xf32>
    %69 = math.exp %68 : vector<16x16xf32>
    %cst_32 = arith.constant dense<0.000000e+00> : vector<16xf32>
    %70 = vector.multi_reduction <add>, %69, %cst_32 [1] : vector<16x16xf32> to vector<16xf32>
    %71 = vector.shape_cast %70 : vector<16xf32> to vector<16x1xf32>
    %72 = tpu.reciprocal %71 {approx = true} : vector<16x1xf32> -> vector<16x1xf32>
    %73 = vector.broadcast %72 : vector<16x1xf32> to vector<16x16xf32>
    %74 = arith.mulf %69, %73 : vector<16x16xf32>
    %c0_33 = arith.constant 0 : index
    %c1 = arith.constant 1 : index
    %c0_34 = arith.constant 0 : index
    %c0_35 = arith.constant 0 : index
    %75 = vector.load %arg21[%c0_33, %c1, %c0_34, %c0_35] : memref<1x8x16x16xf32, #tpu.memory_space<vmem>>, vector<1x1x16x16xf32>
    %76 = vector.shape_cast %75 : vector<1x1x16x16xf32> to vector<16x16xf32>
    %77 = vector.shape_cast %74 : vector<16x16xf32> to vector<1x1x16x16xf32>
    tpu.vector_store %arg21[%c0_33, %c1, %c0_34, %c0_35], %77 {strides = array<i32>} : memref<1x8x16x16xf32, #tpu.memory_space<vmem>>, vector<1x1x16x16xf32>,
    %cst_36 = arith.constant dense<0.000000e+00> : vector<16x8xf32>
    %78 = tpu.matmul %74, %58, %cst_36 {dimension_numbers = #tpu.dot_dimension_numbers<[1], [0], [0], [1], [0, 0, 1, 1], [], []>} : vector<16x16xf32>, vector<16x8xf32>, vector<16x8xf32> -> vector<16x8xf32>
    %79 = vector.extract_strided_slice %32 {offsets = [0, 16], sizes = [16, 8], strides = [1, 1]} : vector<16x96xf32> to vector<16x8xf32>
    %80 = vector.extract_strided_slice %32 {offsets = [0, 48], sizes = [16, 8], strides = [1, 1]} : vector<16x96xf32> to vector<16x8xf32>
    %81 = vector.extract_strided_slice %32 {offsets = [0, 80], sizes = [16, 8], strides = [1, 1]} : vector<16x96xf32> to vector<16x8xf32>
    %82 = tpu.transpose %80, [1, 0] : vector<16x8xf32> -> vector<8x16xf32>
    %cst_37 = arith.constant dense<0.000000e+00> : vector<16x16xf32>
    %83 = tpu.matmul %79, %82, %cst_37 {dimension_numbers = #tpu.dot_dimension_numbers<[1], [0], [0], [1], [0, 0, 1, 1], [], []>} : vector<16x8xf32>, vector<8x16xf32>, vector<16x16xf32> -> vector<16x16xf32>
    %cst_38 = arith.constant 0.353553385 : f32
    %84 = vector.broadcast %cst_38 : f32 to vector<16x16xf32>
    %85 = arith.mulf %83, %84 : vector<16x16xf32>
    %86 = vector.broadcast %25 : vector<1x16xf32> to vector<16x16xf32>
    %87 = arith.addf %85, %86 : vector<16x16xf32>
    %cst_39 = arith.constant dense<0xFF800000> : vector<16xf32>
    %88 = vector.multi_reduction <maximumf>, %87, %cst_39 [1] : vector<16x16xf32> to vector<16xf32>
    %89 = vector.shape_cast %88 : vector<16xf32> to vector<16x1xf32>
    %90 = vector.broadcast %89 : vector<16x1xf32> to vector<16x16xf32>
    %91 = arith.subf %87, %90 : vector<16x16xf32>
    %92 = math.exp %91 : vector<16x16xf32>
    %cst_40 = arith.constant dense<0.000000e+00> : vector<16xf32>
    %93 = vector.multi_reduction <add>, %92, %cst_40 [1] : vector<16x16xf32> to vector<16xf32>
    %94 = vector.shape_cast %93 : vector<16xf32> to vector<16x1xf32>
    %95 = tpu.reciprocal %94 {approx = true} : vector<16x1xf32> -> vector<16x1xf32>
    %96 = vector.broadcast %95 : vector<16x1xf32> to vector<16x16xf32>
    %97 = arith.mulf %92, %96 : vector<16x16xf32>
    %c0_41 = arith.constant 0 : index
    %c2 = arith.constant 2 : index
    %c0_42 = arith.constant 0 : index
    %c0_43 = arith.constant 0 : index
    %98 = vector.load %arg21[%c0_41, %c2, %c0_42, %c0_43] : memref<1x8x16x16xf32, #tpu.memory_space<vmem>>, vector<1x1x16x16xf32>
    %99 = vector.shape_cast %98 : vector<1x1x16x16xf32> to vector<16x16xf32>
    %100 = vector.shape_cast %97 : vector<16x16xf32> to vector<1x1x16x16xf32>
    tpu.vector_store %arg21[%c0_41, %c2, %c0_42, %c0_43], %100 {strides = array<i32>} : memref<1x8x16x16xf32, #tpu.memory_space<vmem>>, vector<1x1x16x16xf32>,
    %cst_44 = arith.constant dense<0.000000e+00> : vector<16x8xf32>
    %101 = tpu.matmul %97, %81, %cst_44 {dimension_numbers = #tpu.dot_dimension_numbers<[1], [0], [0], [1], [0, 0, 1, 1], [], []>} : vector<16x16xf32>, vector<16x8xf32>, vector<16x8xf32> -> vector<16x8xf32>
    %102 = vector.extract_strided_slice %32 {offsets = [0, 24], sizes = [16, 8], strides = [1, 1]} : vector<16x96xf32> to vector<16x8xf32>
    %103 = vector.extract_strided_slice %32 {offsets = [0, 56], sizes = [16, 8], strides = [1, 1]} : vector<16x96xf32> to vector<16x8xf32>
    %104 = vector.extract_strided_slice %32 {offsets = [0, 88], sizes = [16, 8], strides = [1, 1]} : vector<16x96xf32> to vector<16x8xf32>
    %105 = tpu.transpose %103, [1, 0] : vector<16x8xf32> -> vector<8x16xf32>
    %cst_45 = arith.constant dense<0.000000e+00> : vector<16x16xf32>
    %106 = tpu.matmul %102, %105, %cst_45 {dimension_numbers = #tpu.dot_dimension_numbers<[1], [0], [0], [1], [0, 0, 1, 1], [], []>} : vector<16x8xf32>, vector<8x16xf32>, vector<16x16xf32> -> vector<16x16xf32>
    %cst_46 = arith.constant 0.353553385 : f32
    %107 = vector.broadcast %cst_46 : f32 to vector<16x16xf32>
    %108 = arith.mulf %106, %107 : vector<16x16xf32>
    %109 = vector.broadcast %25 : vector<1x16xf32> to vector<16x16xf32>
    %110 = arith.addf %108, %109 : vector<16x16xf32>
    %cst_47 = arith.constant dense<0xFF800000> : vector<16xf32>
    %111 = vector.multi_reduction <maximumf>, %110, %cst_47 [1] : vector<16x16xf32> to vector<16xf32>
    %112 = vector.shape_cast %111 : vector<16xf32> to vector<16x1xf32>
    %113 = vector.broadcast %112 : vector<16x1xf32> to vector<16x16xf32>
    %114 = arith.subf %110, %113 : vector<16x16xf32>
    %115 = math.exp %114 : vector<16x16xf32>
    %cst_48 = arith.constant dense<0.000000e+00> : vector<16xf32>
    %116 = vector.multi_reduction <add>, %115, %cst_48 [1] : vector<16x16xf32> to vector<16xf32>
    %117 = vector.shape_cast %116 : vector<16xf32> to vector<16x1xf32>
    %118 = tpu.reciprocal %117 {approx = true} : vector<16x1xf32> -> vector<16x1xf32>
    %119 = vector.broadcast %118 : vector<16x1xf32> to vector<16x16xf32>
    %120 = arith.mulf %115, %119 : vector<16x16xf32>
    %c0_49 = arith.constant 0 : index
    %c3 = arith.constant 3 : index
    %c0_50 = arith.constant 0 : index
    %c0_51 = arith.constant 0 : index
    %121 = vector.load %arg21[%c0_49, %c3, %c0_50, %c0_51] : memref<1x8x16x16xf32, #tpu.memory_space<vmem>>, vector<1x1x16x16xf32>
    %122 = vector.shape_cast %121 : vector<1x1x16x16xf32> to vector<16x16xf32>
    %123 = vector.shape_cast %120 : vector<16x16xf32> to vector<1x1x16x16xf32>
    tpu.vector_store %arg21[%c0_49, %c3, %c0_50, %c0_51], %123 {strides = array<i32>} : memref<1x8x16x16xf32, #tpu.memory_space<vmem>>, vector<1x1x16x16xf32>,
    %cst_52 = arith.constant dense<0.000000e+00> : vector<16x8xf32>
    %124 = tpu.matmul %120, %104, %cst_52 {dimension_numbers = #tpu.dot_dimension_numbers<[1], [0], [0], [1], [0, 0, 1, 1], [], []>} : vector<16x16xf32>, vector<16x8xf32>, vector<16x8xf32> -> vector<16x8xf32>
    %125 = tpu.concatenate %55, %78, %101, %124 in 1 : vector<16x8xf32>, vector<16x8xf32>, vector<16x8xf32>, vector<16x8xf32> -> vector<16x32xf32>
    %c0_53 = arith.constant 0 : index
    %c0_54 = arith.constant 0 : index
    %c0_55 = arith.constant 0 : index
    %126 = vector.load %arg7[%c0_53, %c0_54, %c0_55] : memref<2x32x32xf32, #tpu.memory_space<vmem>>, vector<1x32x32xf32>
    %127 = vector.shape_cast %126 : vector<1x32x32xf32> to vector<32x32xf32>
    %cst_56 = arith.constant dense<0.000000e+00> : vector<16x32xf32>
    %128 = tpu.matmul %125, %127, %cst_56 {dimension_numbers = #tpu.dot_dimension_numbers<[1], [0], [0], [1], [0, 0, 1, 1], [], []>} : vector<16x32xf32>, vector<32x32xf32>, vector<16x32xf32> -> vector<16x32xf32>
    %c0_57 = arith.constant 0 : index
    %c0_58 = arith.constant 0 : index
    %c0_59 = arith.constant 0 : index
    %129 = vector.load %arg8[%c0_57, %c0_58, %c0_59] : memref<2x1x32xf32, #tpu.memory_space<vmem>>, vector<1x1x32xf32>
    %130 = vector.shape_cast %129 : vector<1x1x32xf32> to vector<1x32xf32>
    %131 = vector.broadcast %130 : vector<1x32xf32> to vector<16x32xf32>
    %132 = arith.addf %128, %131 : vector<16x32xf32>
    %133 = arith.addf %132, %23 : vector<16x32xf32>
    %c0_60 = arith.constant 0 : index
    %c0_61 = arith.constant 0 : index
    %c0_62 = arith.constant 0 : index
    %134 = vector.load %arg9[%c0_60, %c0_61, %c0_62] : memref<2x1x32xf32, #tpu.memory_space<vmem>>, vector<1x1x32xf32>
    %135 = vector.shape_cast %134 : vector<1x1x32xf32> to vector<1x32xf32>
    %c0_63 = arith.constant 0 : index
    %c0_64 = arith.constant 0 : index
    %c0_65 = arith.constant 0 : index
    %136 = vector.load %arg10[%c0_63, %c0_64, %c0_65] : memref<2x1x32xf32, #tpu.memory_space<vmem>>, vector<1x1x32xf32>
    %137 = vector.shape_cast %136 : vector<1x1x32xf32> to vector<1x32xf32>
    %cst_66 = arith.constant dense<0.000000e+00> : vector<16xf32>
    %138 = vector.multi_reduction <add>, %133, %cst_66 [1] : vector<16x32xf32> to vector<16xf32>
    %139 = vector.shape_cast %138 : vector<16xf32> to vector<16x1xf32>
    %cst_67 = arith.constant 3.200000e+01 : f32
    %140 = vector.broadcast %cst_67 : f32 to vector<16x1xf32>
    %141 = arith.divf %139, %140 : vector<16x1xf32>
    %142 = vector.broadcast %141 : vector<16x1xf32> to vector<16x32xf32>
    %143 = arith.subf %133, %142 : vector<16x32xf32>
    %144 = arith.mulf %143, %143 : vector<16x32xf32>
    %cst_68 = arith.constant dense<0.000000e+00> : vector<16xf32>
    %145 = vector.multi_reduction <add>, %144, %cst_68 [1] : vector<16x32xf32> to vector<16xf32>
    %146 = vector.shape_cast %145 : vector<16xf32> to vector<16x1xf32>
    %cst_69 = arith.constant 3.200000e+01 : f32
    %147 = vector.broadcast %cst_69 : f32 to vector<16x1xf32>
    %148 = arith.divf %146, %147 : vector<16x1xf32>
    %cst_70 = arith.constant 9.99999996E-13 : f32
    %149 = vector.broadcast %cst_70 : f32 to vector<16x1xf32>
    %150 = arith.addf %148, %149 : vector<16x1xf32>
    %151 = math.rsqrt %150 : vector<16x1xf32>
    %152 = vector.broadcast %151 : vector<16x1xf32> to vector<16x32xf32>
    %153 = arith.mulf %143, %152 : vector<16x32xf32>
    %154 = vector.broadcast %135 : vector<1x32xf32> to vector<16x32xf32>
    %155 = arith.mulf %153, %154 : vector<16x32xf32>
    %156 = vector.broadcast %137 : vector<1x32xf32> to vector<16x32xf32>
    %157 = arith.addf %155, %156 : vector<16x32xf32>
    %c0_71 = arith.constant 0 : index
    %c0_72 = arith.constant 0 : index
    %c0_73 = arith.constant 0 : index
    %158 = vector.load %arg11[%c0_71, %c0_72, %c0_73] : memref<2x32x64xf32, #tpu.memory_space<vmem>>, vector<1x32x64xf32>
    %159 = vector.shape_cast %158 : vector<1x32x64xf32> to vector<32x64xf32>
    %cst_74 = arith.constant dense<0.000000e+00> : vector<16x64xf32>
    %160 = tpu.matmul %157, %159, %cst_74 {dimension_numbers = #tpu.dot_dimension_numbers<[1], [0], [0], [1], [0, 0, 1, 1], [], []>} : vector<16x32xf32>, vector<32x64xf32>, vector<16x64xf32> -> vector<16x64xf32>
    %c0_75 = arith.constant 0 : index
    %c0_76 = arith.constant 0 : index
    %c0_77 = arith.constant 0 : index
    %161 = vector.load %arg12[%c0_75, %c0_76, %c0_77] : memref<2x1x64xf32, #tpu.memory_space<vmem>>, vector<1x1x64xf32>
    %162 = vector.shape_cast %161 : vector<1x1x64xf32> to vector<1x64xf32>
    %163 = vector.broadcast %162 : vector<1x64xf32> to vector<16x64xf32>
    %164 = arith.addf %160, %163 : vector<16x64xf32>
    %cst_78 = arith.constant 5.000000e-01 : f32
    %165 = vector.broadcast %cst_78 : f32 to vector<16x64xf32>
    %166 = arith.mulf %165, %164 : vector<16x64xf32>
    %cst_79 = arith.constant 4.471500e-02 : f32
    %167 = vector.broadcast %cst_79 : f32 to vector<16x64xf32>
    %168 = arith.mulf %167, %164 : vector<16x64xf32>
    %169 = arith.mulf %168, %164 : vector<16x64xf32>
    %170 = arith.mulf %169, %164 : vector<16x64xf32>
    %171 = arith.addf %164, %170 : vector<16x64xf32>
    %cst_80 = arith.constant 0.797884583 : f32
    %172 = vector.broadcast %cst_80 : f32 to vector<16x64xf32>
    %173 = arith.mulf %172, %171 : vector<16x64xf32>
    %174 = math.tanh %173 : vector<16x64xf32>
    %cst_81 = arith.constant 1.000000e+00 : f32
    %175 = vector.broadcast %cst_81 : f32 to vector<16x64xf32>
    %176 = arith.addf %175, %174 : vector<16x64xf32>
    %177 = arith.mulf %166, %176 : vector<16x64xf32>
    %c0_82 = arith.constant 0 : index
    %c0_83 = arith.constant 0 : index
    %c0_84 = arith.constant 0 : index
    %178 = vector.load %arg13[%c0_82, %c0_83, %c0_84] : memref<2x64x32xf32, #tpu.memory_space<vmem>>, vector<1x64x32xf32>
    %179 = vector.shape_cast %178 : vector<1x64x32xf32> to vector<64x32xf32>
    %cst_85 = arith.constant dense<0.000000e+00> : vector<16x32xf32>
    %180 = tpu.matmul %177, %179, %cst_85 {dimension_numbers = #tpu.dot_dimension_numbers<[1], [0], [0], [1], [0, 0, 1, 1], [], []>} : vector<16x64xf32>, vector<64x32xf32>, vector<16x32xf32> -> vector<16x32xf32>
    %c0_86 = arith.constant 0 : index
    %c0_87 = arith.constant 0 : index
    %c0_88 = arith.constant 0 : index
    %181 = vector.load %arg14[%c0_86, %c0_87, %c0_88] : memref<2x1x32xf32, #tpu.memory_space<vmem>>, vector<1x1x32xf32>
    %182 = vector.shape_cast %181 : vector<1x1x32xf32> to vector<1x32xf32>
    %183 = vector.broadcast %182 : vector<1x32xf32> to vector<16x32xf32>
    %184 = arith.addf %180, %183 : vector<16x32xf32>
    %185 = arith.addf %184, %157 : vector<16x32xf32>
    %c0_89 = arith.constant 0 : index
    %c0_90 = arith.constant 0 : index
    %c0_91 = arith.constant 0 : index
    %186 = vector.load %arg15[%c0_89, %c0_90, %c0_91] : memref<2x1x32xf32, #tpu.memory_space<vmem>>, vector<1x1x32xf32>
    %187 = vector.shape_cast %186 : vector<1x1x32xf32> to vector<1x32xf32>
    %c0_92 = arith.constant 0 : index
    %c0_93 = arith.constant 0 : index
    %c0_94 = arith.constant 0 : index
    %188 = vector.load %arg16[%c0_92, %c0_93, %c0_94] : memref<2x1x32xf32, #tpu.memory_space<vmem>>, vector<1x1x32xf32>
    %189 = vector.shape_cast %188 : vector<1x1x32xf32> to vector<1x32xf32>
    %cst_95 = arith.constant dense<0.000000e+00> : vector<16xf32>
    %190 = vector.multi_reduction <add>, %185, %cst_95 [1] : vector<16x32xf32> to vector<16xf32>
    %191 = vector.shape_cast %190 : vector<16xf32> to vector<16x1xf32>
    %cst_96 = arith.constant 3.200000e+01 : f32
    %192 = vector.broadcast %cst_96 : f32 to vector<16x1xf32>
    %193 = arith.divf %191, %192 : vector<16x1xf32>
    %194 = vector.broadcast %193 : vector<16x1xf32> to vector<16x32xf32>
    %195 = arith.subf %185, %194 : vector<16x32xf32>
    %196 = arith.mulf %195, %195 : vector<16x32xf32>
    %cst_97 = arith.constant dense<0.000000e+00> : vector<16xf32>
    %197 = vector.multi_reduction <add>, %196, %cst_97 [1] : vector<16x32xf32> to vector<16xf32>
    %198 = vector.shape_cast %197 : vector<16xf32> to vector<16x1xf32>
    %cst_98 = arith.constant 3.200000e+01 : f32
    %199 = vector.broadcast %cst_98 : f32 to vector<16x1xf32>
    %200 = arith.divf %198, %199 : vector<16x1xf32>
    %cst_99 = arith.constant 9.99999996E-13 : f32
    %201 = vector.broadcast %cst_99 : f32 to vector<16x1xf32>
    %202 = arith.addf %200, %201 : vector<16x1xf32>
    %203 = math.rsqrt %202 : vector<16x1xf32>
    %204 = vector.broadcast %203 : vector<16x1xf32> to vector<16x32xf32>
    %205 = arith.mulf %195, %204 : vector<16x32xf32>
    %206 = vector.broadcast %187 : vector<1x32xf32> to vector<16x32xf32>
    %207 = arith.mulf %205, %206 : vector<16x32xf32>
    %208 = vector.broadcast %189 : vector<1x32xf32> to vector<16x32xf32>
    %209 = arith.addf %207, %208 : vector<16x32xf32>
    %c1_100 = arith.constant 1 : index
    %c0_101 = arith.constant 0 : index
    %c0_102 = arith.constant 0 : index
    %210 = vector.load %arg5[%c1_100, %c0_101, %c0_102] : memref<2x32x96xf32, #tpu.memory_space<vmem>>, vector<1x32x96xf32>
    %211 = vector.shape_cast %210 : vector<1x32x96xf32> to vector<32x96xf32>
    %cst_103 = arith.constant dense<0.000000e+00> : vector<16x96xf32>
    %212 = tpu.matmul %209, %211, %cst_103 {dimension_numbers = #tpu.dot_dimension_numbers<[1], [0], [0], [1], [0, 0, 1, 1], [], []>} : vector<16x32xf32>, vector<32x96xf32>, vector<16x96xf32> -> vector<16x96xf32>
    %c1_104 = arith.constant 1 : index
    %c0_105 = arith.constant 0 : index
    %c0_106 = arith.constant 0 : index
    %213 = vector.load %arg6[%c1_104, %c0_105, %c0_106] : memref<2x1x96xf32, #tpu.memory_space<vmem>>, vector<1x1x96xf32>
    %214 = vector.shape_cast %213 : vector<1x1x96xf32> to vector<1x96xf32>
    %215 = vector.broadcast %214 : vector<1x96xf32> to vector<16x96xf32>
    %216 = arith.addf %212, %215 : vector<16x96xf32>
    %217 = vector.extract_strided_slice %216 {offsets = [0, 0], sizes = [16, 8], strides = [1, 1]} : vector<16x96xf32> to vector<16x8xf32>
    %218 = vector.extract_strided_slice %216 {offsets = [0, 32], sizes = [16, 8], strides = [1, 1]} : vector<16x96xf32> to vector<16x8xf32>
    %219 = vector.extract_strided_slice %216 {offsets = [0, 64], sizes = [16, 8], strides = [1, 1]} : vector<16x96xf32> to vector<16x8xf32>
    %220 = tpu.transpose %218, [1, 0] : vector<16x8xf32> -> vector<8x16xf32>
    %cst_107 = arith.constant dense<0.000000e+00> : vector<16x16xf32>
    %221 = tpu.matmul %217, %220, %cst_107 {dimension_numbers = #tpu.dot_dimension_numbers<[1], [0], [0], [1], [0, 0, 1, 1], [], []>} : vector<16x8xf32>, vector<8x16xf32>, vector<16x16xf32> -> vector<16x16xf32>
    %cst_108 = arith.constant 0.353553385 : f32
    %222 = vector.broadcast %cst_108 : f32 to vector<16x16xf32>
    %223 = arith.mulf %221, %222 : vector<16x16xf32>
    %224 = vector.broadcast %25 : vector<1x16xf32> to vector<16x16xf32>
    %225 = arith.addf %223, %224 : vector<16x16xf32>
    %cst_109 = arith.constant dense<0xFF800000> : vector<16xf32>
    %226 = vector.multi_reduction <maximumf>, %225, %cst_109 [1] : vector<16x16xf32> to vector<16xf32>
    %227 = vector.shape_cast %226 : vector<16xf32> to vector<16x1xf32>
    %228 = vector.broadcast %227 : vector<16x1xf32> to vector<16x16xf32>
    %229 = arith.subf %225, %228 : vector<16x16xf32>
    %230 = math.exp %229 : vector<16x16xf32>
    %cst_110 = arith.constant dense<0.000000e+00> : vector<16xf32>
    %231 = vector.multi_reduction <add>, %230, %cst_110 [1] : vector<16x16xf32> to vector<16xf32>
    %232 = vector.shape_cast %231 : vector<16xf32> to vector<16x1xf32>
    %233 = tpu.reciprocal %232 {approx = true} : vector<16x1xf32> -> vector<16x1xf32>
    %234 = vector.broadcast %233 : vector<16x1xf32> to vector<16x16xf32>
    %235 = arith.mulf %230, %234 : vector<16x16xf32>
    %c0_111 = arith.constant 0 : index
    %c4 = arith.constant 4 : index
    %c0_112 = arith.constant 0 : index
    %c0_113 = arith.constant 0 : index
    %236 = vector.load %arg21[%c0_111, %c4, %c0_112, %c0_113] : memref<1x8x16x16xf32, #tpu.memory_space<vmem>>, vector<1x1x16x16xf32>
    %237 = vector.shape_cast %236 : vector<1x1x16x16xf32> to vector<16x16xf32>
    %238 = vector.shape_cast %235 : vector<16x16xf32> to vector<1x1x16x16xf32>
    tpu.vector_store %arg21[%c0_111, %c4, %c0_112, %c0_113], %238 {strides = array<i32>} : memref<1x8x16x16xf32, #tpu.memory_space<vmem>>, vector<1x1x16x16xf32>,
    %cst_114 = arith.constant dense<0.000000e+00> : vector<16x8xf32>
    %239 = tpu.matmul %235, %219, %cst_114 {dimension_numbers = #tpu.dot_dimension_numbers<[1], [0], [0], [1], [0, 0, 1, 1], [], []>} : vector<16x16xf32>, vector<16x8xf32>, vector<16x8xf32> -> vector<16x8xf32>
    %240 = vector.extract_strided_slice %216 {offsets = [0, 8], sizes = [16, 8], strides = [1, 1]} : vector<16x96xf32> to vector<16x8xf32>
    %241 = vector.extract_strided_slice %216 {offsets = [0, 40], sizes = [16, 8], strides = [1, 1]} : vector<16x96xf32> to vector<16x8xf32>
    %242 = vector.extract_strided_slice %216 {offsets = [0, 72], sizes = [16, 8], strides = [1, 1]} : vector<16x96xf32> to vector<16x8xf32>
    %243 = tpu.transpose %241, [1, 0] : vector<16x8xf32> -> vector<8x16xf32>
    %cst_115 = arith.constant dense<0.000000e+00> : vector<16x16xf32>
    %244 = tpu.matmul %240, %243, %cst_115 {dimension_numbers = #tpu.dot_dimension_numbers<[1], [0], [0], [1], [0, 0, 1, 1], [], []>} : vector<16x8xf32>, vector<8x16xf32>, vector<16x16xf32> -> vector<16x16xf32>
    %cst_116 = arith.constant 0.353553385 : f32
    %245 = vector.broadcast %cst_116 : f32 to vector<16x16xf32>
    %246 = arith.mulf %244, %245 : vector<16x16xf32>
    %247 = vector.broadcast %25 : vector<1x16xf32> to vector<16x16xf32>
    %248 = arith.addf %246, %247 : vector<16x16xf32>
    %cst_117 = arith.constant dense<0xFF800000> : vector<16xf32>
    %249 = vector.multi_reduction <maximumf>, %248, %cst_117 [1] : vector<16x16xf32> to vector<16xf32>
    %250 = vector.shape_cast %249 : vector<16xf32> to vector<16x1xf32>
    %251 = vector.broadcast %250 : vector<16x1xf32> to vector<16x16xf32>
    %252 = arith.subf %248, %251 : vector<16x16xf32>
    %253 = math.exp %252 : vector<16x16xf32>
    %cst_118 = arith.constant dense<0.000000e+00> : vector<16xf32>
    %254 = vector.multi_reduction <add>, %253, %cst_118 [1] : vector<16x16xf32> to vector<16xf32>
    %255 = vector.shape_cast %254 : vector<16xf32> to vector<16x1xf32>
    %256 = tpu.reciprocal %255 {approx = true} : vector<16x1xf32> -> vector<16x1xf32>
    %257 = vector.broadcast %256 : vector<16x1xf32> to vector<16x16xf32>
    %258 = arith.mulf %253, %257 : vector<16x16xf32>
    %c0_119 = arith.constant 0 : index
    %c5 = arith.constant 5 : index
    %c0_120 = arith.constant 0 : index
    %c0_121 = arith.constant 0 : index
    %259 = vector.load %arg21[%c0_119, %c5, %c0_120, %c0_121] : memref<1x8x16x16xf32, #tpu.memory_space<vmem>>, vector<1x1x16x16xf32>
    %260 = vector.shape_cast %259 : vector<1x1x16x16xf32> to vector<16x16xf32>
    %261 = vector.shape_cast %258 : vector<16x16xf32> to vector<1x1x16x16xf32>
    tpu.vector_store %arg21[%c0_119, %c5, %c0_120, %c0_121], %261 {strides = array<i32>} : memref<1x8x16x16xf32, #tpu.memory_space<vmem>>, vector<1x1x16x16xf32>,
    %cst_122 = arith.constant dense<0.000000e+00> : vector<16x8xf32>
    %262 = tpu.matmul %258, %242, %cst_122 {dimension_numbers = #tpu.dot_dimension_numbers<[1], [0], [0], [1], [0, 0, 1, 1], [], []>} : vector<16x16xf32>, vector<16x8xf32>, vector<16x8xf32> -> vector<16x8xf32>
    %263 = vector.extract_strided_slice %216 {offsets = [0, 16], sizes = [16, 8], strides = [1, 1]} : vector<16x96xf32> to vector<16x8xf32>
    %264 = vector.extract_strided_slice %216 {offsets = [0, 48], sizes = [16, 8], strides = [1, 1]} : vector<16x96xf32> to vector<16x8xf32>
    %265 = vector.extract_strided_slice %216 {offsets = [0, 80], sizes = [16, 8], strides = [1, 1]} : vector<16x96xf32> to vector<16x8xf32>
    %266 = tpu.transpose %264, [1, 0] : vector<16x8xf32> -> vector<8x16xf32>
    %cst_123 = arith.constant dense<0.000000e+00> : vector<16x16xf32>
    %267 = tpu.matmul %263, %266, %cst_123 {dimension_numbers = #tpu.dot_dimension_numbers<[1], [0], [0], [1], [0, 0, 1, 1], [], []>} : vector<16x8xf32>, vector<8x16xf32>, vector<16x16xf32> -> vector<16x16xf32>
    %cst_124 = arith.constant 0.353553385 : f32
    %268 = vector.broadcast %cst_124 : f32 to vector<16x16xf32>
    %269 = arith.mulf %267, %268 : vector<16x16xf32>
    %270 = vector.broadcast %25 : vector<1x16xf32> to vector<16x16xf32>
    %271 = arith.addf %269, %270 : vector<16x16xf32>
    %cst_125 = arith.constant dense<0xFF800000> : vector<16xf32>
    %272 = vector.multi_reduction <maximumf>, %271, %cst_125 [1] : vector<16x16xf32> to vector<16xf32>
    %273 = vector.shape_cast %272 : vector<16xf32> to vector<16x1xf32>
    %274 = vector.broadcast %273 : vector<16x1xf32> to vector<16x16xf32>
    %275 = arith.subf %271, %274 : vector<16x16xf32>
    %276 = math.exp %275 : vector<16x16xf32>
    %cst_126 = arith.constant dense<0.000000e+00> : vector<16xf32>
    %277 = vector.multi_reduction <add>, %276, %cst_126 [1] : vector<16x16xf32> to vector<16xf32>
    %278 = vector.shape_cast %277 : vector<16xf32> to vector<16x1xf32>
    %279 = tpu.reciprocal %278 {approx = true} : vector<16x1xf32> -> vector<16x1xf32>
    %280 = vector.broadcast %279 : vector<16x1xf32> to vector<16x16xf32>
    %281 = arith.mulf %276, %280 : vector<16x16xf32>
    %c0_127 = arith.constant 0 : index
    %c6 = arith.constant 6 : index
    %c0_128 = arith.constant 0 : index
    %c0_129 = arith.constant 0 : index
    %282 = vector.load %arg21[%c0_127, %c6, %c0_128, %c0_129] : memref<1x8x16x16xf32, #tpu.memory_space<vmem>>, vector<1x1x16x16xf32>
    %283 = vector.shape_cast %282 : vector<1x1x16x16xf32> to vector<16x16xf32>
    %284 = vector.shape_cast %281 : vector<16x16xf32> to vector<1x1x16x16xf32>
    tpu.vector_store %arg21[%c0_127, %c6, %c0_128, %c0_129], %284 {strides = array<i32>} : memref<1x8x16x16xf32, #tpu.memory_space<vmem>>, vector<1x1x16x16xf32>,
    %cst_130 = arith.constant dense<0.000000e+00> : vector<16x8xf32>
    %285 = tpu.matmul %281, %265, %cst_130 {dimension_numbers = #tpu.dot_dimension_numbers<[1], [0], [0], [1], [0, 0, 1, 1], [], []>} : vector<16x16xf32>, vector<16x8xf32>, vector<16x8xf32> -> vector<16x8xf32>
    %286 = vector.extract_strided_slice %216 {offsets = [0, 24], sizes = [16, 8], strides = [1, 1]} : vector<16x96xf32> to vector<16x8xf32>
    %287 = vector.extract_strided_slice %216 {offsets = [0, 56], sizes = [16, 8], strides = [1, 1]} : vector<16x96xf32> to vector<16x8xf32>
    %288 = vector.extract_strided_slice %216 {offsets = [0, 88], sizes = [16, 8], strides = [1, 1]} : vector<16x96xf32> to vector<16x8xf32>
    %289 = tpu.transpose %287, [1, 0] : vector<16x8xf32> -> vector<8x16xf32>
    %cst_131 = arith.constant dense<0.000000e+00> : vector<16x16xf32>
    %290 = tpu.matmul %286, %289, %cst_131 {dimension_numbers = #tpu.dot_dimension_numbers<[1], [0], [0], [1], [0, 0, 1, 1], [], []>} : vector<16x8xf32>, vector<8x16xf32>, vector<16x16xf32> -> vector<16x16xf32>
    %cst_132 = arith.constant 0.353553385 : f32
    %291 = vector.broadcast %cst_132 : f32 to vector<16x16xf32>
    %292 = arith.mulf %290, %291 : vector<16x16xf32>
    %293 = vector.broadcast %25 : vector<1x16xf32> to vector<16x16xf32>
    %294 = arith.addf %292, %293 : vector<16x16xf32>
    %cst_133 = arith.constant dense<0xFF800000> : vector<16xf32>
    %295 = vector.multi_reduction <maximumf>, %294, %cst_133 [1] : vector<16x16xf32> to vector<16xf32>
    %296 = vector.shape_cast %295 : vector<16xf32> to vector<16x1xf32>
    %297 = vector.broadcast %296 : vector<16x1xf32> to vector<16x16xf32>
    %298 = arith.subf %294, %297 : vector<16x16xf32>
    %299 = math.exp %298 : vector<16x16xf32>
    %cst_134 = arith.constant dense<0.000000e+00> : vector<16xf32>
    %300 = vector.multi_reduction <add>, %299, %cst_134 [1] : vector<16x16xf32> to vector<16xf32>
    %301 = vector.shape_cast %300 : vector<16xf32> to vector<16x1xf32>
    %302 = tpu.reciprocal %301 {approx = true} : vector<16x1xf32> -> vector<16x1xf32>
    %303 = vector.broadcast %302 : vector<16x1xf32> to vector<16x16xf32>
    %304 = arith.mulf %299, %303 : vector<16x16xf32>
    %c0_135 = arith.constant 0 : index
    %c7 = arith.constant 7 : index
    %c0_136 = arith.constant 0 : index
    %c0_137 = arith.constant 0 : index
    %305 = vector.load %arg21[%c0_135, %c7, %c0_136, %c0_137] : memref<1x8x16x16xf32, #tpu.memory_space<vmem>>, vector<1x1x16x16xf32>
    %306 = vector.shape_cast %305 : vector<1x1x16x16xf32> to vector<16x16xf32>
    %307 = vector.shape_cast %304 : vector<16x16xf32> to vector<1x1x16x16xf32>
    tpu.vector_store %arg21[%c0_135, %c7, %c0_136, %c0_137], %307 {strides = array<i32>} : memref<1x8x16x16xf32, #tpu.memory_space<vmem>>, vector<1x1x16x16xf32>,
    %cst_138 = arith.constant dense<0.000000e+00> : vector<16x8xf32>
    %308 = tpu.matmul %304, %288, %cst_138 {dimension_numbers = #tpu.dot_dimension_numbers<[1], [0], [0], [1], [0, 0, 1, 1], [], []>} : vector<16x16xf32>, vector<16x8xf32>, vector<16x8xf32> -> vector<16x8xf32>
    %309 = tpu.concatenate %239, %262, %285, %308 in 1 : vector<16x8xf32>, vector<16x8xf32>, vector<16x8xf32>, vector<16x8xf32> -> vector<16x32xf32>
    %c1_139 = arith.constant 1 : index
    %c0_140 = arith.constant 0 : index
    %c0_141 = arith.constant 0 : index
    %310 = vector.load %arg7[%c1_139, %c0_140, %c0_141] : memref<2x32x32xf32, #tpu.memory_space<vmem>>, vector<1x32x32xf32>
    %311 = vector.shape_cast %310 : vector<1x32x32xf32> to vector<32x32xf32>
    %cst_142 = arith.constant dense<0.000000e+00> : vector<16x32xf32>
    %312 = tpu.matmul %309, %311, %cst_142 {dimension_numbers = #tpu.dot_dimension_numbers<[1], [0], [0], [1], [0, 0, 1, 1], [], []>} : vector<16x32xf32>, vector<32x32xf32>, vector<16x32xf32> -> vector<16x32xf32>
    %c1_143 = arith.constant 1 : index
    %c0_144 = arith.constant 0 : index
    %c0_145 = arith.constant 0 : index
    %313 = vector.load %arg8[%c1_143, %c0_144, %c0_145] : memref<2x1x32xf32, #tpu.memory_space<vmem>>, vector<1x1x32xf32>
    %314 = vector.shape_cast %313 : vector<1x1x32xf32> to vector<1x32xf32>
    %315 = vector.broadcast %314 : vector<1x32xf32> to vector<16x32xf32>
    %316 = arith.addf %312, %315 : vector<16x32xf32>
    %317 = arith.addf %316, %209 : vector<16x32xf32>
    %c1_146 = arith.constant 1 : index
    %c0_147 = arith.constant 0 : index
    %c0_148 = arith.constant 0 : index
    %318 = vector.load %arg9[%c1_146, %c0_147, %c0_148] : memref<2x1x32xf32, #tpu.memory_space<vmem>>, vector<1x1x32xf32>
    %319 = vector.shape_cast %318 : vector<1x1x32xf32> to vector<1x32xf32>
    %c1_149 = arith.constant 1 : index
    %c0_150 = arith.constant 0 : index
    %c0_151 = arith.constant 0 : index
    %320 = vector.load %arg10[%c1_149, %c0_150, %c0_151] : memref<2x1x32xf32, #tpu.memory_space<vmem>>, vector<1x1x32xf32>
    %321 = vector.shape_cast %320 : vector<1x1x32xf32> to vector<1x32xf32>
    %cst_152 = arith.constant dense<0.000000e+00> : vector<16xf32>
    %322 = vector.multi_reduction <add>, %317, %cst_152 [1] : vector<16x32xf32> to vector<16xf32>
    %323 = vector.shape_cast %322 : vector<16xf32> to vector<16x1xf32>
    %cst_153 = arith.constant 3.200000e+01 : f32
    %324 = vector.broadcast %cst_153 : f32 to vector<16x1xf32>
    %325 = arith.divf %323, %324 : vector<16x1xf32>
    %326 = vector.broadcast %325 : vector<16x1xf32> to vector<16x32xf32>
    %327 = arith.subf %317, %326 : vector<16x32xf32>
    %328 = arith.mulf %327, %327 : vector<16x32xf32>
    %cst_154 = arith.constant dense<0.000000e+00> : vector<16xf32>
    %329 = vector.multi_reduction <add>, %328, %cst_154 [1] : vector<16x32xf32> to vector<16xf32>
    %330 = vector.shape_cast %329 : vector<16xf32> to vector<16x1xf32>
    %cst_155 = arith.constant 3.200000e+01 : f32
    %331 = vector.broadcast %cst_155 : f32 to vector<16x1xf32>
    %332 = arith.divf %330, %331 : vector<16x1xf32>
    %cst_156 = arith.constant 9.99999996E-13 : f32
    %333 = vector.broadcast %cst_156 : f32 to vector<16x1xf32>
    %334 = arith.addf %332, %333 : vector<16x1xf32>
    %335 = math.rsqrt %334 : vector<16x1xf32>
    %336 = vector.broadcast %335 : vector<16x1xf32> to vector<16x32xf32>
    %337 = arith.mulf %327, %336 : vector<16x32xf32>
    %338 = vector.broadcast %319 : vector<1x32xf32> to vector<16x32xf32>
    %339 = arith.mulf %337, %338 : vector<16x32xf32>
    %340 = vector.broadcast %321 : vector<1x32xf32> to vector<16x32xf32>
    %341 = arith.addf %339, %340 : vector<16x32xf32>
    %c1_157 = arith.constant 1 : index
    %c0_158 = arith.constant 0 : index
    %c0_159 = arith.constant 0 : index
    %342 = vector.load %arg11[%c1_157, %c0_158, %c0_159] : memref<2x32x64xf32, #tpu.memory_space<vmem>>, vector<1x32x64xf32>
    %343 = vector.shape_cast %342 : vector<1x32x64xf32> to vector<32x64xf32>
    %cst_160 = arith.constant dense<0.000000e+00> : vector<16x64xf32>
    %344 = tpu.matmul %341, %343, %cst_160 {dimension_numbers = #tpu.dot_dimension_numbers<[1], [0], [0], [1], [0, 0, 1, 1], [], []>} : vector<16x32xf32>, vector<32x64xf32>, vector<16x64xf32> -> vector<16x64xf32>
    %c1_161 = arith.constant 1 : index
    %c0_162 = arith.constant 0 : index
    %c0_163 = arith.constant 0 : index
    %345 = vector.load %arg12[%c1_161, %c0_162, %c0_163] : memref<2x1x64xf32, #tpu.memory_space<vmem>>, vector<1x1x64xf32>
    %346 = vector.shape_cast %345 : vector<1x1x64xf32> to vector<1x64xf32>
    %347 = vector.broadcast %346 : vector<1x64xf32> to vector<16x64xf32>
    %348 = arith.addf %344, %347 : vector<16x64xf32>
    %cst_164 = arith.constant 5.000000e-01 : f32
    %349 = vector.broadcast %cst_164 : f32 to vector<16x64xf32>
    %350 = arith.mulf %349, %348 : vector<16x64xf32>
    %cst_165 = arith.constant 4.471500e-02 : f32
    %351 = vector.broadcast %cst_165 : f32 to vector<16x64xf32>
    %352 = arith.mulf %351, %348 : vector<16x64xf32>
    %353 = arith.mulf %352, %348 : vector<16x64xf32>
    %354 = arith.mulf %353, %348 : vector<16x64xf32>
    %355 = arith.addf %348, %354 : vector<16x64xf32>
    %cst_166 = arith.constant 0.797884583 : f32
    %356 = vector.broadcast %cst_166 : f32 to vector<16x64xf32>
    %357 = arith.mulf %356, %355 : vector<16x64xf32>
    %358 = math.tanh %357 : vector<16x64xf32>
    %cst_167 = arith.constant 1.000000e+00 : f32
    %359 = vector.broadcast %cst_167 : f32 to vector<16x64xf32>
    %360 = arith.addf %359, %358 : vector<16x64xf32>
    %361 = arith.mulf %350, %360 : vector<16x64xf32>
    %c1_168 = arith.constant 1 : index
    %c0_169 = arith.constant 0 : index
    %c0_170 = arith.constant 0 : index
    %362 = vector.load %arg13[%c1_168, %c0_169, %c0_170] : memref<2x64x32xf32, #tpu.memory_space<vmem>>, vector<1x64x32xf32>
    %363 = vector.shape_cast %362 : vector<1x64x32xf32> to vector<64x32xf32>
    %cst_171 = arith.constant dense<0.000000e+00> : vector<16x32xf32>
    %364 = tpu.matmul %361, %363, %cst_171 {dimension_numbers = #tpu.dot_dimension_numbers<[1], [0], [0], [1], [0, 0, 1, 1], [], []>} : vector<16x64xf32>, vector<64x32xf32>, vector<16x32xf32> -> vector<16x32xf32>
    %c1_172 = arith.constant 1 : index
    %c0_173 = arith.constant 0 : index
    %c0_174 = arith.constant 0 : index
    %365 = vector.load %arg14[%c1_172, %c0_173, %c0_174] : memref<2x1x32xf32, #tpu.memory_space<vmem>>, vector<1x1x32xf32>
    %366 = vector.shape_cast %365 : vector<1x1x32xf32> to vector<1x32xf32>
    %367 = vector.broadcast %366 : vector<1x32xf32> to vector<16x32xf32>
    %368 = arith.addf %364, %367 : vector<16x32xf32>
    %369 = arith.addf %368, %341 : vector<16x32xf32>
    %c1_175 = arith.constant 1 : index
    %c0_176 = arith.constant 0 : index
    %c0_177 = arith.constant 0 : index
    %370 = vector.load %arg15[%c1_175, %c0_176, %c0_177] : memref<2x1x32xf32, #tpu.memory_space<vmem>>, vector<1x1x32xf32>
    %371 = vector.shape_cast %370 : vector<1x1x32xf32> to vector<1x32xf32>
    %c1_178 = arith.constant 1 : index
    %c0_179 = arith.constant 0 : index
    %c0_180 = arith.constant 0 : index
    %372 = vector.load %arg16[%c1_178, %c0_179, %c0_180] : memref<2x1x32xf32, #tpu.memory_space<vmem>>, vector<1x1x32xf32>
    %373 = vector.shape_cast %372 : vector<1x1x32xf32> to vector<1x32xf32>
    %cst_181 = arith.constant dense<0.000000e+00> : vector<16xf32>
    %374 = vector.multi_reduction <add>, %369, %cst_181 [1] : vector<16x32xf32> to vector<16xf32>
    %375 = vector.shape_cast %374 : vector<16xf32> to vector<16x1xf32>
    %cst_182 = arith.constant 3.200000e+01 : f32
    %376 = vector.broadcast %cst_182 : f32 to vector<16x1xf32>
    %377 = arith.divf %375, %376 : vector<16x1xf32>
    %378 = vector.broadcast %377 : vector<16x1xf32> to vector<16x32xf32>
    %379 = arith.subf %369, %378 : vector<16x32xf32>
    %380 = arith.mulf %379, %379 : vector<16x32xf32>
    %cst_183 = arith.constant dense<0.000000e+00> : vector<16xf32>
    %381 = vector.multi_reduction <add>, %380, %cst_183 [1] : vector<16x32xf32> to vector<16xf32>
    %382 = vector.shape_cast %381 : vector<16xf32> to vector<16x1xf32>
    %cst_184 = arith.constant 3.200000e+01 : f32
    %383 = vector.broadcast %cst_184 : f32 to vector<16x1xf32>
    %384 = arith.divf %382, %383 : vector<16x1xf32>
    %cst_185 = arith.constant 9.99999996E-13 : f32
    %385 = vector.broadcast %cst_185 : f32 to vector<16x1xf32>
    %386 = arith.addf %384, %385 : vector<16x1xf32>
    %387 = math.rsqrt %386 : vector<16x1xf32>
    %388 = vector.broadcast %387 : vector<16x1xf32> to vector<16x32xf32>
    %389 = arith.mulf %379, %388 : vector<16x32xf32>
    %390 = vector.broadcast %371 : vector<1x32xf32> to vector<16x32xf32>
    %391 = arith.mulf %389, %390 : vector<16x32xf32>
    %392 = vector.broadcast %373 : vector<1x32xf32> to vector<16x32xf32>
    %393 = arith.addf %391, %392 : vector<16x32xf32>
    %c0_186 = arith.constant 0 : index
    %c0_187 = arith.constant 0 : index
    %c0_188 = arith.constant 0 : index
    %394 = vector.load %arg19[%c0_186, %c0_187, %c0_188] : memref<1x16x32xf32, #tpu.memory_space<vmem>>, vector<1x16x32xf32>
    %395 = vector.shape_cast %394 : vector<1x16x32xf32> to vector<16x32xf32>
    %396 = vector.shape_cast %393 : vector<16x32xf32> to vector<1x16x32xf32>
    tpu.vector_store %arg19[%c0_186, %c0_187, %c0_188], %396 {strides = array<i32>} : memref<1x16x32xf32, #tpu.memory_space<vmem>>, vector<1x16x32xf32>,
    %397 = vector.extract_strided_slice %393 {offsets = [0, 0], sizes = [1, 32], strides = [1, 1]} : vector<16x32xf32> to vector<1x32xf32>
    %c0_189 = arith.constant 0 : index
    %c0_190 = arith.constant 0 : index
    %398 = vector.load %arg17[%c0_189, %c0_190] : memref<32x32xf32, #tpu.memory_space<vmem>>, vector<32x32xf32>
    %cst_191 = arith.constant dense<0.000000e+00> : vector<1x32xf32>
    %399 = tpu.matmul %397, %398, %cst_191 {dimension_numbers = #tpu.dot_dimension_numbers<[1], [0], [0], [1], [0, 0, 1, 1], [], []>} : vector<1x32xf32>, vector<32x32xf32>, vector<1x32xf32> -> vector<1x32xf32>
    %c0_192 = arith.constant 0 : index
    %c0_193 = arith.constant 0 : index
    %400 = vector.load %arg18[%c0_192, %c0_193] : memref<1x32xf32, #tpu.memory_space<vmem>>, vector<1x32xf32>
    %401 = arith.addf %399, %400 : vector<1x32xf32>
    %402 = math.tanh %401 : vector<1x32xf32>
    %c0_194 = arith.constant 0 : index
    %c0_195 = arith.constant 0 : index
    %c0_196 = arith.constant 0 : index
    %403 = vector.load %arg20[%c0_194, %c0_195, %c0_196] : memref<1x1x32xf32, #tpu.memory_space<vmem>>, vector<1x1x32xf32>
    %404 = vector.shape_cast %403 : vector<1x1x32xf32> to vector<1x32xf32>
    %405 = vector.shape_cast %402 : vector<1x32xf32> to vector<1x1x32xf32>
    tpu.vector_store %arg20[%c0_194, %c0_195, %c0_196], %405 {strides = array<i32>} : memref<1x1x32xf32, #tpu.memory_space<vmem>>, vector<1x1x32xf32>,
    return
  }
  func.func @transform_0(%arg0: i32) -> (i32, i32, i32) {
    %c0_i32 = arith.constant 0 : i32
    %c0_i32_0 = arith.constant 0 : i32
    %c0_i32_1 = arith.constant 0 : i32
    return %arg0, %c0_i32, %c0_i32_0 : i32, i32, i32
  }
  func.func @transform_1(%arg0: i32) -> (i32, i32, i32) {
    %c0_i32 = arith.constant 0 : i32
    %c0_i32_0 = arith.constant 0 : i32
    %c0_i32_1 = arith.constant 0 : i32
    return %arg0, %c0_i32, %c0_i32_0 : i32, i32, i32
  }
  func.func @transform_2(%arg0: i32) -> (i32, i32) {
    %c0_i32 = arith.constant 0 : i32
    %c0_i32_0 = arith.constant 0 : i32
    %c0_i32_1 = arith.constant 0 : i32
    return %c0_i32, %c0_i32_0 : i32, i32
  }
  func.func @transform_3(%arg0: i32) -> (i32, i32) {
    %c0_i32 = arith.constant 0 : i32
    %c0_i32_0 = arith.constant 0 : i32
    %c0_i32_1 = arith.constant 0 : i32
    return %c0_i32, %c0_i32_0 : i32, i32
  }
  func.func @transform_4(%arg0: i32) -> (i32, i32, i32) {
    %c0_i32 = arith.constant 0 : i32
    %c0_i32_0 = arith.constant 0 : i32
    %c0_i32_1 = arith.constant 0 : i32
    %c0_i32_2 = arith.constant 0 : i32
    return %c0_i32, %c0_i32_0, %c0_i32_1 : i32, i32, i32
  }
  func.func @transform_5(%arg0: i32) -> (i32, i32, i32) {
    %c0_i32 = arith.constant 0 : i32
    %c0_i32_0 = arith.constant 0 : i32
    %c0_i32_1 = arith.constant 0 : i32
    %c0_i32_2 = arith.constant 0 : i32
    return %c0_i32, %c0_i32_0, %c0_i32_1 : i32, i32, i32
  }
  func.func @transform_6(%arg0: i32) -> (i32, i32, i32) {
    %c0_i32 = arith.constant 0 : i32
    %c0_i32_0 = arith.constant 0 : i32
    %c0_i32_1 = arith.constant 0 : i32
    %c0_i32_2 = arith.constant 0 : i32
    return %c0_i32, %c0_i32_0, %c0_i32_1 : i32, i32, i32
  }
  func.func @transform_7(%arg0: i32) -> (i32, i32, i32) {
    %c0_i32 = arith.constant 0 : i32
    %c0_i32_0 = arith.constant 0 : i32
    %c0_i32_1 = arith.constant 0 : i32
    %c0_i32_2 = arith.constant 0 : i32
    return %c0_i32, %c0_i32_0, %c0_i32_1 : i32, i32, i32
  }
  func.func @transform_8(%arg0: i32) -> (i32, i32, i32) {
    %c0_i32 = arith.constant 0 : i32
    %c0_i32_0 = arith.constant 0 : i32
    %c0_i32_1 = arith.constant 0 : i32
    %c0_i32_2 = arith.constant 0 : i32
    return %c0_i32, %c0_i32_0, %c0_i32_1 : i32, i32, i32
  }
  func.func @transform_9(%arg0: i32) -> (i32, i32, i32) {
    %c0_i32 = arith.constant 0 : i32
    %c0_i32_0 = arith.constant 0 : i32
    %c0_i32_1 = arith.constant 0 : i32
    %c0_i32_2 = arith.constant 0 : i32
    return %c0_i32, %c0_i32_0, %c0_i32_1 : i32, i32, i32
  }
  func.func @transform_10(%arg0: i32) -> (i32, i32, i32) {
    %c0_i32 = arith.constant 0 : i32
    %c0_i32_0 = arith.constant 0 : i32
    %c0_i32_1 = arith.constant 0 : i32
    %c0_i32_2 = arith.constant 0 : i32
    return %c0_i32, %c0_i32_0, %c0_i32_1 : i32, i32, i32
  }
  func.func @transform_11(%arg0: i32) -> (i32, i32, i32) {
    %c0_i32 = arith.constant 0 : i32
    %c0_i32_0 = arith.constant 0 : i32
    %c0_i32_1 = arith.constant 0 : i32
    %c0_i32_2 = arith.constant 0 : i32
    return %c0_i32, %c0_i32_0, %c0_i32_1 : i32, i32, i32
  }
  func.func @transform_12(%arg0: i32) -> (i32, i32, i32) {
    %c0_i32 = arith.constant 0 : i32
    %c0_i32_0 = arith.constant 0 : i32
    %c0_i32_1 = arith.constant 0 : i32
    %c0_i32_2 = arith.constant 0 : i32
    return %c0_i32, %c0_i32_0, %c0_i32_1 : i32, i32, i32
  }
  func.func @transform_13(%arg0: i32) -> (i32, i32, i32) {
    %c0_i32 = arith.constant 0 : i32
    %c0_i32_0 = arith.constant 0 : i32
    %c0_i32_1 = arith.constant 0 : i32
    %c0_i32_2 = arith.constant 0 : i32
    return %c0_i32, %c0_i32_0, %c0_i32_1 : i32, i32, i32
  }
  func.func @transform_14(%arg0: i32) -> (i32, i32, i32) {
    %c0_i32 = arith.constant 0 : i32
    %c0_i32_0 = arith.constant 0 : i32
    %c0_i32_1 = arith.constant 0 : i32
    %c0_i32_2 = arith.constant 0 : i32
    return %c0_i32, %c0_i32_0, %c0_i32_1 : i32, i32, i32
  }
  func.func @transform_15(%arg0: i32) -> (i32, i32, i32) {
    %c0_i32 = arith.constant 0 : i32
    %c0_i32_0 = arith.constant 0 : i32
    %c0_i32_1 = arith.constant 0 : i32
    %c0_i32_2 = arith.constant 0 : i32
    return %c0_i32, %c0_i32_0, %c0_i32_1 : i32, i32, i32
  }
  func.func @transform_16(%arg0: i32) -> (i32, i32) {
    %c0_i32 = arith.constant 0 : i32
    %c0_i32_0 = arith.constant 0 : i32
    %c0_i32_1 = arith.constant 0 : i32
    return %c0_i32, %c0_i32_0 : i32, i32
  }
  func.func @transform_17(%arg0: i32) -> (i32, i32) {
    %c0_i32 = arith.constant 0 : i32
    %c0_i32_0 = arith.constant 0 : i32
    %c0_i32_1 = arith.constant 0 : i32
    return %c0_i32, %c0_i32_0 : i32, i32
  }
  func.func @transform_18(%arg0: i32) -> (i32, i32, i32) {
    %c0_i32 = arith.constant 0 : i32
    %c0_i32_0 = arith.constant 0 : i32
    %c0_i32_1 = arith.constant 0 : i32
    return %arg0, %c0_i32, %c0_i32_0 : i32, i32, i32
  }
  func.func @transform_19(%arg0: i32) -> (i32, i32, i32) {
    %c0_i32 = arith.constant 0 : i32
    %c0_i32_0 = arith.constant 0 : i32
    %c0_i32_1 = arith.constant 0 : i32
    return %arg0, %c0_i32, %c0_i32_0 : i32, i32, i32
  }
  func.func @transform_20(%arg0: i32) -> (i32, i32, i32, i32) {
    %c0_i32 = arith.constant 0 : i32
    %c0_i32_0 = arith.constant 0 : i32
    %c0_i32_1 = arith.constant 0 : i32
    %c0_i32_2 = arith.constant 0 : i32
    return %arg0, %c0_i32, %c0_i32_0, %c0_i32_1 : i32, i32, i32, i32
  }
}

</mosaic_0001>

<llo_original>
// kernel: bert_forward.1
$region0: #{bert_forward.1}
  #allocation0 [shape = 'u32[]', space=smem, size = 0x4, offset = 0x4, fixed_abs, tag = 'smem constant byte address 0x4 - core index']
  #allocation1 [shape = 'u32[72,128]{1,0:T(1,128)}', space=vmem, size = 0x9000, scoped, tag = 'internal scratch']
  %s0 = inlined_call_operand.vmem [shape: f32[2,16,32], index: 0, kind: input, shape index: {}]
  %s1 = inlined_call_operand.vmem [shape: f32[2,1,16], index: 1, kind: input, shape index: {}]
  %s2 = inlined_call_operand.vmem [shape: f32[1,32], index: 2, kind: input, shape index: {}]
  %s3 = inlined_call_operand.vmem [shape: f32[1,32], index: 3, kind: input, shape index: {}]
  %s4 = inlined_call_operand.vmem [shape: f32[2,32,96], index: 4, kind: input, shape index: {}]
  %s5 = inlined_call_operand.vmem [shape: f32[2,1,96], index: 5, kind: input, shape index: {}]
  %s6 = inlined_call_operand.vmem [shape: f32[2,32,32], index: 6, kind: input, shape index: {}]
  %s7 = inlined_call_operand.vmem [shape: f32[2,1,32], index: 7, kind: input, shape index: {}]
  %s8 = inlined_call_operand.vmem [shape: f32[2,1,32], index: 8, kind: input, shape index: {}]
  %s9 = inlined_call_operand.vmem [shape: f32[2,1,32], index: 9, kind: input, shape index: {}]
  %s10 = inlined_call_operand.vmem [shape: f32[2,32,64], index: 10, kind: input, shape index: {}]
  %s11 = inlined_call_operand.vmem [shape: f32[2,1,64], index: 11, kind: input, shape index: {}]
  %s12 = inlined_call_operand.vmem [shape: f32[2,64,32], index: 12, kind: input, shape index: {}]
  %s13 = inlined_call_operand.vmem [shape: f32[2,1,32], index: 13, kind: input, shape index: {}]
  %s14 = inlined_call_operand.vmem [shape: f32[2,1,32], index: 14, kind: input, shape index: {}]
  %s15 = inlined_call_operand.vmem [shape: f32[2,1,32], index: 15, kind: input, shape index: {}]
  %s16 = inlined_call_operand.vmem [shape: f32[32,32], index: 16, kind: input, shape index: {}]
  %s17 = inlined_call_operand.vmem [shape: f32[1,32], index: 17, kind: input, shape index: {}]
  %s18 = inlined_call_operand.hbm [shape: f32[2,16,32], index: 18, kind: output, shape index: {0}]
  %s19 = inlined_call_operand.hbm [shape: f32[2,1,32], index: 19, kind: output, shape index: {1}]
  %s20 = inlined_call_operand.vmem [shape: f32[2,8,16,16], index: 20, kind: output, shape index: {2}]
  %21 = xla_tuple %s18, %s19, %s20
  %s22 = sld [smem:[#allocation0]]
  $region121: #{bert_forward.1} parent=0
    _
  %s24 = ssub.s32 1, %s22
  %s25 = scalar_select 0, %s24, %s22
  $region1: #{bert_forward.1} parent=0
    #allocation2 [shape = 'u8[16384]{0}', space=vmem, size = 0x4000, scoped, tag = 'output window, operand 0']
    #allocation3 [shape = 's32[2]{0}', space=sflag, size = 0x8, scoped, tag = 'scoped memory for bert_forward.1']
    #allocation4 [shape = 'u8[1024]{0}', space=vmem, size = 0x400, scoped, tag = 'output window, operand 1']
    #allocation5 [shape = 's32[2]{0}', space=sflag, size = 0x8, scoped, tag = 'scoped memory for bert_forward.1']
    %26 = vsyncpa [#allocation3], 0
    %s27 = scalar_lea.sflag [#allocation3], 1
    %28 = vsyncpa %s27, 0
    %29 = vsyncpa [#allocation5], 0
    %s30 = scalar_lea.sflag [#allocation5], 1
    %31 = vsyncpa %s30, 0
    loop: start=0, step=1, limit=4
    $region2: #{bert_forward.1} parent=1 // loop_pre_header
      _
    $region3: #{bert_forward.1} parent=1 // loop_header
      %s33 = sphi 0, %s37
      %p34 = scmp.ge.s32.totalorder %s33, 4
      %s43 = sphi 0, %s45
      %s46 = sphi 0, %s43
      %s47 = sphi 0, %s46
      %s63 = sphi 0, %s47
      %s69 = sphi 0, %s71
      %s72 = sphi 0, %s69
      %s73 = sphi 0, %s72
      %s89 = sphi 0, %s73
      %s93 = sphi 0, %s93
      %s95 = sphi 0, %s93
      %s96 = sphi 0, %s95
      %s110 = sphi 0, %s96
      %s114 = sphi 0, %s114
      %s116 = sphi 0, %s114
      %s117 = sphi 0, %s116
      %s131 = sphi 0, %s117
      %s135 = sphi 0, %s135
      %s137 = sphi 0, %s135
      %s138 = sphi 0, %s137
      %s152 = sphi 0, %s138
      %s156 = sphi 0, %s156
      %s158 = sphi 0, %s156
      %s159 = sphi 0, %s158
      %s173 = sphi 0, %s159
      %s177 = sphi 0, %s177
      %s179 = sphi 0, %s177
      %s180 = sphi 0, %s179
      %s194 = sphi 0, %s180
      %s198 = sphi 0, %s198
      %s200 = sphi 0, %s198
      %s201 = sphi 0, %s200
      %s215 = sphi 0, %s201
      %s219 = sphi 0, %s219
      %s221 = sphi 0, %s219
      %s222 = sphi 0, %s221
      %s236 = sphi 0, %s222
      %s240 = sphi 0, %s240
      %s242 = sphi 0, %s240
      %s243 = sphi 0, %s242
      %s257 = sphi 0, %s243
      %s261 = sphi 0, %s261
      %s263 = sphi 0, %s261
      %s264 = sphi 0, %s263
      %s278 = sphi 0, %s264
      %s282 = sphi 0, %s282
      %s284 = sphi 0, %s282
      %s285 = sphi 0, %s284
      %s299 = sphi 0, %s285
      %s303 = sphi 0, %s303
      %s305 = sphi 0, %s303
      %s306 = sphi 0, %s305
      %s320 = sphi 0, %s306
      %s324 = sphi 0, %s324
      %s326 = sphi 0, %s324
      %s327 = sphi 0, %s326
      %s341 = sphi 0, %s327
      %s345 = sphi 0, %s345
      %s347 = sphi 0, %s345
      %s348 = sphi 0, %s347
      %s362 = sphi 0, %s348
      %s366 = sphi 0, %s366
      %s368 = sphi 0, %s366
      %s369 = sphi 0, %s368
      %s383 = sphi 0, %s369
      %s387 = sphi 0, %s387
      %s389 = sphi 0, %s387
      %s390 = sphi 0, %s389
      %s404 = sphi 0, %s390
      %s408 = sphi 0, %s408
      %s410 = sphi 0, %s408
      %s411 = sphi 0, %s410
      %s425 = sphi 0, %s411
      %s431 = sphi 0, %s433
      %s434 = sphi 0, %s431
      %s435 = sphi 0, %s434
      %s451 = sphi 0, %s435
      %s457 = sphi 0, %s459
      %s460 = sphi 0, %s457
      %s461 = sphi 0, %s460
      %s477 = sphi 0, %s461
      %s483 = sphi 0, %s485
      %s486 = sphi 0, %s483
      %s487 = sphi 0, %s486
      %s503 = sphi 0, %s487
    $region4: #{bert_forward.1} parent=1 // loop_header_branch
      %36 = sbr.rel (%p34) target = $region8
    $region5: #{bert_forward.1} parent=1 // loop_body
      %s38 = ssub.s32 %s33, 1
      %s39 = ssub.s32 %s33, 2
      %s40 = sadd.s32 %s33, 1
      %s41 = ssub.s32 %s33, %s40
      %p42 = scmp.eq.s32.totalorder %s41, 0
      %s44 = sadd.s32 %s43, 1
      %s45 = scalar_select %p42, %s43, %s44
      %p48 = pneg %p42
      %p49 = scmp.eq.s32.totalorder %s33, 1
      %p50 = por %p48, %p49
      %p51 = scmp.ne.s32.totalorder %s43, %s46
      %p52 = scmp.eq.s32.totalorder %s33, 0
      %p53 = por %p51, %p52
      %p54 = scmp.ne.s32.totalorder %s43, %s46
      %p55 = scmp.eq.s32.totalorder %s38, 1
      %p56 = por %p54, %p55
      %p57 = scmp.ne.s32.totalorder %s46, %s47
      %p58 = scmp.eq.s32.totalorder %s38, 0
      %p59 = por %p57, %p58
      %p60 = scmp.ne.s32.totalorder %s46, %s47
      %p61 = scmp.eq.s32.totalorder %s39, 1
      %p62 = por %p60, %p61
      %p64 = scmp.ne.s32.totalorder %s47, %s63
      %p65 = scmp.eq.s32.totalorder %s39, 0
      %p66 = por %p64, %p65
      %s67 = ssub.s32 %s33, %s40
      %p68 = scmp.eq.s32.totalorder %s67, 0
      %s70 = sadd.s32 %s69, 1
      %s71 = scalar_select %p68, %s69, %s70
      %p74 = pneg %p68
      %p75 = scmp.eq.s32.totalorder %s33, 1
      %p76 = por %p74, %p75
      %p77 = scmp.ne.s32.totalorder %s69, %s72
      %p78 = scmp.eq.s32.totalorder %s33, 0
      %p79 = por %p77, %p78
      %p80 = scmp.ne.s32.totalorder %s69, %s72
      %p81 = scmp.eq.s32.totalorder %s38, 1
      %p82 = por %p80, %p81
      %p83 = scmp.ne.s32.totalorder %s72, %s73
      %p84 = scmp.eq.s32.totalorder %s38, 0
      %p85 = por %p83, %p84
      %p86 = scmp.ne.s32.totalorder %s72, %s73
      %p87 = scmp.eq.s32.totalorder %s39, 1
      %p88 = por %p86, %p87
      %p90 = scmp.ne.s32.totalorder %s73, %s89
      %p91 = scmp.eq.s32.totalorder %s39, 0
      %p92 = por %p90, %p91
      %s94 = sadd.s32 %s93, 1
      %p97 = scmp.eq.s32.totalorder %s33, 1
      %p98 = scmp.ne.s32.totalorder %s93, %s95
      %p99 = scmp.eq.s32.totalorder %s33, 0
      %p100 = por %p98, %p99
      %p101 = scmp.ne.s32.totalorder %s93, %s95
      %p102 = scmp.eq.s32.totalorder %s38, 1
      %p103 = por %p101, %p102
      %p104 = scmp.ne.s32.totalorder %s95, %s96
      %p105 = scmp.eq.s32.totalorder %s38, 0
      %p106 = por %p104, %p105
      %p107 = scmp.ne.s32.totalorder %s95, %s96
      %p108 = scmp.eq.s32.totalorder %s39, 1
      %p109 = por %p107, %p108
      %p111 = scmp.ne.s32.totalorder %s96, %s110
      %p112 = scmp.eq.s32.totalorder %s39, 0
      %p113 = por %p111, %p112
      %s115 = sadd.s32 %s114, 1
      %p118 = scmp.eq.s32.totalorder %s33, 1
      %p119 = scmp.ne.s32.totalorder %s114, %s116
      %p120 = scmp.eq.s32.totalorder %s33, 0
      %p121 = por %p119, %p120
      %p122 = scmp.ne.s32.totalorder %s114, %s116
      %p123 = scmp.eq.s32.totalorder %s38, 1
      %p124 = por %p122, %p123
      %p125 = scmp.ne.s32.totalorder %s116, %s117
      %p126 = scmp.eq.s32.totalorder %s38, 0
      %p127 = por %p125, %p126
      %p128 = scmp.ne.s32.totalorder %s116, %s117
      %p129 = scmp.eq.s32.totalorder %s39, 1
      %p130 = por %p128, %p129
      %p132 = scmp.ne.s32.totalorder %s117, %s131
      %p133 = scmp.eq.s32.totalorder %s39, 0
      %p134 = por %p132, %p133
      %s136 = sadd.s32 %s135, 1
      %p139 = scmp.eq.s32.totalorder %s33, 1
      %p140 = scmp.ne.s32.totalorder %s135, %s137
      %p141 = scmp.eq.s32.totalorder %s33, 0
      %p142 = por %p140, %p141
      %p143 = scmp.ne.s32.totalorder %s135, %s137
      %p144 = scmp.eq.s32.totalorder %s38, 1
      %p145 = por %p143, %p144
      %p146 = scmp.ne.s32.totalorder %s137, %s138
      %p147 = scmp.eq.s32.totalorder %s38, 0
      %p148 = por %p146, %p147
      %p149 = scmp.ne.s32.totalorder %s137, %s138
      %p150 = scmp.eq.s32.totalorder %s39, 1
      %p151 = por %p149, %p150
      %p153 = scmp.ne.s32.totalorder %s138, %s152
      %p154 = scmp.eq.s32.totalorder %s39, 0
      %p155 = por %p153, %p154
      %s157 = sadd.s32 %s156, 1
      %p160 = scmp.eq.s32.totalorder %s33, 1
      %p161 = scmp.ne.s32.totalorder %s156, %s158
      %p162 = scmp.eq.s32.totalorder %s33, 0
      %p163 = por %p161, %p162
      %p164 = scmp.ne.s32.totalorder %s156, %s158
      %p165 = scmp.eq.s32.totalorder %s38, 1
      %p166 = por %p164, %p165
      %p167 = scmp.ne.s32.totalorder %s158, %s159
      %p168 = scmp.eq.s32.totalorder %s38, 0
      %p169 = por %p167, %p168
      %p170 = scmp.ne.s32.totalorder %s158, %s159
      %p171 = scmp.eq.s32.totalorder %s39, 1
      %p172 = por %p170, %p171
      %p174 = scmp.ne.s32.totalorder %s159, %s173
      %p175 = scmp.eq.s32.totalorder %s39, 0
      %p176 = por %p174, %p175
      %s178 = sadd.s32 %s177, 1
      %p181 = scmp.eq.s32.totalorder %s33, 1
      %p182 = scmp.ne.s32.totalorder %s177, %s179
      %p183 = scmp.eq.s32.totalorder %s33, 0
      %p184 = por %p182, %p183
      %p185 = scmp.ne.s32.totalorder %s177, %s179
      %p186 = scmp.eq.s32.totalorder %s38, 1
      %p187 = por %p185, %p186
      %p188 = scmp.ne.s32.totalorder %s179, %s180
      %p189 = scmp.eq.s32.totalorder %s38, 0
      %p190 = por %p188, %p189
      %p191 = scmp.ne.s32.totalorder %s179, %s180
      %p192 = scmp.eq.s32.totalorder %s39, 1
      %p193 = por %p191, %p192
      %p195 = scmp.ne.s32.totalorder %s180, %s194
      %p196 = scmp.eq.s32.totalorder %s39, 0
      %p197 = por %p195, %p196
      %s199 = sadd.s32 %s198, 1
      %p202 = scmp.eq.s32.totalorder %s33, 1
      %p203 = scmp.ne.s32.totalorder %s198, %s200
      %p204 = scmp.eq.s32.totalorder %s33, 0
      %p205 = por %p203, %p204
      %p206 = scmp.ne.s32.totalorder %s198, %s200
      %p207 = scmp.eq.s32.totalorder %s38, 1
      %p208 = por %p206, %p207
      %p209 = scmp.ne.s32.totalorder %s200, %s201
      %p210 = scmp.eq.s32.totalorder %s38, 0
      %p211 = por %p209, %p210
      %p212 = scmp.ne.s32.totalorder %s200, %s201
      %p213 = scmp.eq.s32.totalorder %s39, 1
      %p214 = por %p212, %p213
      %p216 = scmp.ne.s32.totalorder %s201, %s215
      %p217 = scmp.eq.s32.totalorder %s39, 0
      %p218 = por %p216, %p217
      %s220 = sadd.s32 %s219, 1
      %p223 = scmp.eq.s32.totalorder %s33, 1
      %p224 = scmp.ne.s32.totalorder %s219, %s221
      %p225 = scmp.eq.s32.totalorder %s33, 0
      %p226 = por %p224, %p225
      %p227 = scmp.ne.s32.totalorder %s219, %s221
      %p228 = scmp.eq.s32.totalorder %s38, 1
      %p229 = por %p227, %p228
      %p230 = scmp.ne.s32.totalorder %s221, %s222
      %p231 = scmp.eq.s32.totalorder %s38, 0
      %p232 = por %p230, %p231
      %p233 = scmp.ne.s32.totalorder %s221, %s222
      %p234 = scmp.eq.s32.totalorder %s39, 1
      %p235 = por %p233, %p234
      %p237 = scmp.ne.s32.totalorder %s222, %s236
      %p238 = scmp.eq.s32.totalorder %s39, 0
      %p239 = por %p237, %p238
      %s241 = sadd.s32 %s240, 1
      %p244 = scmp.eq.s32.totalorder %s33, 1
      %p245 = scmp.ne.s32.totalorder %s240, %s242
      %p246 = scmp.eq.s32.totalorder %s33, 0
      %p247 = por %p245, %p246
      %p248 = scmp.ne.s32.totalorder %s240, %s242
      %p249 = scmp.eq.s32.totalorder %s38, 1
      %p250 = por %p248, %p249
      %p251 = scmp.ne.s32.totalorder %s242, %s243
      %p252 = scmp.eq.s32.totalorder %s38, 0
      %p253 = por %p251, %p252
      %p254 = scmp.ne.s32.totalorder %s242, %s243
      %p255 = scmp.eq.s32.totalorder %s39, 1
      %p256 = por %p254, %p255
      %p258 = scmp.ne.s32.totalorder %s243, %s257
      %p259 = scmp.eq.s32.totalorder %s39, 0
      %p260 = por %p258, %p259
      %s262 = sadd.s32 %s261, 1
      %p265 = scmp.eq.s32.totalorder %s33, 1
      %p266 = scmp.ne.s32.totalorder %s261, %s263
      %p267 = scmp.eq.s32.totalorder %s33, 0
      %p268 = por %p266, %p267
      %p269 = scmp.ne.s32.totalorder %s261, %s263
      %p270 = scmp.eq.s32.totalorder %s38, 1
      %p271 = por %p269, %p270
      %p272 = scmp.ne.s32.totalorder %s263, %s264
      %p273 = scmp.eq.s32.totalorder %s38, 0
      %p274 = por %p272, %p273
      %p275 = scmp.ne.s32.totalorder %s263, %s264
      %p276 = scmp.eq.s32.totalorder %s39, 1
      %p277 = por %p275, %p276
      %p279 = scmp.ne.s32.totalorder %s264, %s278
      %p280 = scmp.eq.s32.totalorder %s39, 0
      %p281 = por %p279, %p280
      %s283 = sadd.s32 %s282, 1
      %p286 = scmp.eq.s32.totalorder %s33, 1
      %p287 = scmp.ne.s32.totalorder %s282, %s284
      %p288 = scmp.eq.s32.totalorder %s33, 0
      %p289 = por %p287, %p288
      %p290 = scmp.ne.s32.totalorder %s282, %s284
      %p291 = scmp.eq.s32.totalorder %s38, 1
      %p292 = por %p290, %p291
      %p293 = scmp.ne.s32.totalorder %s284, %s285
      %p294 = scmp.eq.s32.totalorder %s38, 0
      %p295 = por %p293, %p294
      %p296 = scmp.ne.s32.totalorder %s284, %s285
      %p297 = scmp.eq.s32.totalorder %s39, 1
      %p298 = por %p296, %p297
      %p300 = scmp.ne.s32.totalorder %s285, %s299
      %p301 = scmp.eq.s32.totalorder %s39, 0
      %p302 = por %p300, %p301
      %s304 = sadd.s32 %s303, 1
      %p307 = scmp.eq.s32.totalorder %s33, 1
      %p308 = scmp.ne.s32.totalorder %s303, %s305
      %p309 = scmp.eq.s32.totalorder %s33, 0
      %p310 = por %p308, %p309
      %p311 = scmp.ne.s32.totalorder %s303, %s305
      %p312 = scmp.eq.s32.totalorder %s38, 1
      %p313 = por %p311, %p312
      %p314 = scmp.ne.s32.totalorder %s305, %s306
      %p315 = scmp.eq.s32.totalorder %s38, 0
      %p316 = por %p314, %p315
      %p317 = scmp.ne.s32.totalorder %s305, %s306
      %p318 = scmp.eq.s32.totalorder %s39, 1
      %p319 = por %p317, %p318
      %p321 = scmp.ne.s32.totalorder %s306, %s320
      %p322 = scmp.eq.s32.totalorder %s39, 0
      %p323 = por %p321, %p322
      %s325 = sadd.s32 %s324, 1
      %p328 = scmp.eq.s32.totalorder %s33, 1
      %p329 = scmp.ne.s32.totalorder %s324, %s326
      %p330 = scmp.eq.s32.totalorder %s33, 0
      %p331 = por %p329, %p330
      %p332 = scmp.ne.s32.totalorder %s324, %s326
      %p333 = scmp.eq.s32.totalorder %s38, 1
      %p334 = por %p332, %p333
      %p335 = scmp.ne.s32.totalorder %s326, %s327
      %p336 = scmp.eq.s32.totalorder %s38, 0
      %p337 = por %p335, %p336
      %p338 = scmp.ne.s32.totalorder %s326, %s327
      %p339 = scmp.eq.s32.totalorder %s39, 1
      %p340 = por %p338, %p339
      %p342 = scmp.ne.s32.totalorder %s327, %s341
      %p343 = scmp.eq.s32.totalorder %s39, 0
      %p344 = por %p342, %p343
      %s346 = sadd.s32 %s345, 1
      %p349 = scmp.eq.s32.totalorder %s33, 1
      %p350 = scmp.ne.s32.totalorder %s345, %s347
      %p351 = scmp.eq.s32.totalorder %s33, 0
      %p352 = por %p350, %p351
      %p353 = scmp.ne.s32.totalorder %s345, %s347
      %p354 = scmp.eq.s32.totalorder %s38, 1
      %p355 = por %p353, %p354
      %p356 = scmp.ne.s32.totalorder %s347, %s348
      %p357 = scmp.eq.s32.totalorder %s38, 0
      %p358 = por %p356, %p357
      %p359 = scmp.ne.s32.totalorder %s347, %s348
      %p360 = scmp.eq.s32.totalorder %s39, 1
      %p361 = por %p359, %p360
      %p363 = scmp.ne.s32.totalorder %s348, %s362
      %p364 = scmp.eq.s32.totalorder %s39, 0
      %p365 = por %p363, %p364
      %s367 = sadd.s32 %s366, 1
      %p370 = scmp.eq.s32.totalorder %s33, 1
      %p371 = scmp.ne.s32.totalorder %s366, %s368
      %p372 = scmp.eq.s32.totalorder %s33, 0
      %p373 = por %p371, %p372
      %p374 = scmp.ne.s32.totalorder %s366, %s368
      %p375 = scmp.eq.s32.totalorder %s38, 1
      %p376 = por %p374, %p375
      %p377 = scmp.ne.s32.totalorder %s368, %s369
      %p378 = scmp.eq.s32.totalorder %s38, 0
      %p379 = por %p377, %p378
      %p380 = scmp.ne.s32.totalorder %s368, %s369
      %p381 = scmp.eq.s32.totalorder %s39, 1
      %p382 = por %p380, %p381
      %p384 = scmp.ne.s32.totalorder %s369, %s383
      %p385 = scmp.eq.s32.totalorder %s39, 0
      %p386 = por %p384, %p385
      %s388 = sadd.s32 %s387, 1
      %p391 = scmp.eq.s32.totalorder %s33, 1
      %p392 = scmp.ne.s32.totalorder %s387, %s389
      %p393 = scmp.eq.s32.totalorder %s33, 0
      %p394 = por %p392, %p393
      %p395 = scmp.ne.s32.totalorder %s387, %s389
      %p396 = scmp.eq.s32.totalorder %s38, 1
      %p397 = por %p395, %p396
      %p398 = scmp.ne.s32.totalorder %s389, %s390
      %p399 = scmp.eq.s32.totalorder %s38, 0
      %p400 = por %p398, %p399
      %p401 = scmp.ne.s32.totalorder %s389, %s390
      %p402 = scmp.eq.s32.totalorder %s39, 1
      %p403 = por %p401, %p402
      %p405 = scmp.ne.s32.totalorder %s390, %s404
      %p406 = scmp.eq.s32.totalorder %s39, 0
      %p407 = por %p405, %p406
      %s409 = sadd.s32 %s408, 1
      %p412 = scmp.eq.s32.totalorder %s33, 1
      %p413 = scmp.ne.s32.totalorder %s408, %s410
      %p414 = scmp.eq.s32.totalorder %s33, 0
      %p415 = por %p413, %p414
      %p416 = scmp.ne.s32.totalorder %s408, %s410
      %p417 = scmp.eq.s32.totalorder %s38, 1
      %p418 = por %p416, %p417
      %p419 = scmp.ne.s32.totalorder %s410, %s411
      %p420 = scmp.eq.s32.totalorder %s38, 0
      %p421 = por %p419, %p420
      %p422 = scmp.ne.s32.totalorder %s410, %s411
      %p423 = scmp.eq.s32.totalorder %s39, 1
      %p424 = por %p422, %p423
      %p426 = scmp.ne.s32.totalorder %s411, %s425
      %p427 = scmp.eq.s32.totalorder %s39, 0
      %p428 = por %p426, %p427
      %s429 = ssub.s32 %s33, %s40
      %p430 = scmp.eq.s32.totalorder %s429, 0
      %s432 = sadd.s32 %s431, 1
      %s433 = scalar_select %p430, %s431, %s432
      %p436 = pneg %p430
      %p437 = scmp.eq.s32.totalorder %s33, 1
      %p438 = por %p436, %p437
      %p439 = scmp.ne.s32.totalorder %s431, %s434
      %p440 = scmp.eq.s32.totalorder %s33, 0
      %p441 = por %p439, %p440
      %p442 = scmp.ne.s32.totalorder %s431, %s434
      %p443 = scmp.eq.s32.totalorder %s38, 1
      %p444 = por %p442, %p443
      %p445 = scmp.ne.s32.totalorder %s434, %s435
      %p446 = scmp.eq.s32.totalorder %s38, 0
      %p447 = por %p445, %p446
      %p448 = scmp.ne.s32.totalorder %s434, %s435
      %p449 = scmp.eq.s32.totalorder %s39, 1
      %p450 = por %p448, %p449
      %p452 = scmp.ne.s32.totalorder %s435, %s451
      %p453 = scmp.eq.s32.totalorder %s39, 0
      %p454 = por %p452, %p453
      %s455 = ssub.s32 %s33, %s40
      %p456 = scmp.eq.s32.totalorder %s455, 0
      %s458 = sadd.s32 %s457, 1
      %s459 = scalar_select %p456, %s457, %s458
      %p462 = pneg %p456
      %p463 = scmp.eq.s32.totalorder %s33, 1
      %p464 = por %p462, %p463
      %p465 = scmp.ne.s32.totalorder %s457, %s460
      %p466 = scmp.eq.s32.totalorder %s33, 0
      %p467 = por %p465, %p466
      %p468 = scmp.ne.s32.totalorder %s457, %s460
      %p469 = scmp.eq.s32.totalorder %s38, 1
      %p470 = por %p468, %p469
      %p471 = scmp.ne.s32.totalorder %s460, %s461
      %p472 = scmp.eq.s32.totalorder %s38, 0
      %p473 = por %p471, %p472
      %p474 = scmp.ne.s32.totalorder %s460, %s461
      %p475 = scmp.eq.s32.totalorder %s39, 1
      %p476 = por %p474, %p475
      %p478 = scmp.ne.s32.totalorder %s461, %s477
      %p479 = scmp.eq.s32.totalorder %s39, 0
      %p480 = por %p478, %p479
      %s481 = ssub.s32 %s33, %s40
      %p482 = scmp.eq.s32.totalorder %s481, 0
      %s484 = sadd.s32 %s483, 1
      %s485 = scalar_select %p482, %s483, %s484
      %p488 = pneg %p482
      %p489 = scmp.eq.s32.totalorder %s33, 1
      %p490 = por %p488, %p489
      %p491 = scmp.ne.s32.totalorder %s483, %s486
      %p492 = scmp.eq.s32.totalorder %s33, 0
      %p493 = por %p491, %p492
      %p494 = scmp.ne.s32.totalorder %s483, %s486
      %p495 = scmp.eq.s32.totalorder %s38, 1
      %p496 = por %p494, %p495
      %p497 = scmp.ne.s32.totalorder %s486, %s487
      %p498 = scmp.eq.s32.totalorder %s38, 0
      %p499 = por %p497, %p498
      %p500 = scmp.ne.s32.totalorder %s486, %s487
      %p501 = scmp.eq.s32.totalorder %s39, 1
      %p502 = por %p500, %p501
      %p504 = scmp.ne.s32.totalorder %s487, %s503
      %p505 = scmp.eq.s32.totalorder %s39, 0
      %p506 = por %p504, %p505
      %p507 = scmp.le.s32.totalorder 1, %s33
      %p508 = scmp.lt.s32.totalorder %s33, 3
      %p509 = pnand %p507, %p508
      %p510 = pneg %p509
      // Predicated region
      $region9: #{bert_forward.1} parent=5 // pred_check
        _
      $region10: #{bert_forward.1} parent=5 // pred_check_branch
        %512 = sbr.rel (%p509) target = $region12
      $region11: #{bert_forward.1} parent=5 // pred_region
        %s513 = ssub.s32 %s33, 1
        // Predicated region
        $region13: #{bert_forward.1} parent=11 // pred_check
          %p514 = pneg %p106
        $region14: #{bert_forward.1} parent=11 // pred_check_branch
          %516 = sbr.rel (%p514) target = $region16
        $region15: #{bert_forward.1} parent=11 // pred_region
          _
        $region16: #{bert_forward.1} parent=11 // pred_fallthru
          _
        // Predicated region
        $region17: #{bert_forward.1} parent=11 // pred_check
          %p517 = pneg %p127
        $region18: #{bert_forward.1} parent=11 // pred_check_branch
          %519 = sbr.rel (%p517) target = $region20
        $region19: #{bert_forward.1} parent=11 // pred_region
          _
        $region20: #{bert_forward.1} parent=11 // pred_fallthru
          _
        // Predicated region
        $region21: #{bert_forward.1} parent=11 // pred_check
          %p520 = pneg %p148
        $region22: #{bert_forward.1} parent=11 // pred_check_branch
          %522 = sbr.rel (%p520) target = $region24
        $region23: #{bert_forward.1} parent=11 // pred_region
          _
        $region24: #{bert_forward.1} parent=11 // pred_fallthru
          _
        // Predicated region
        $region25: #{bert_forward.1} parent=11 // pred_check
          %p523 = pneg %p169
        $region26: #{bert_forward.1} parent=11 // pred_check_branch
          %525 = sbr.rel (%p523) target = $region28
        $region27: #{bert_forward.1} parent=11 // pred_region
          _
        $region28: #{bert_forward.1} parent=11 // pred_fallthru
          _
        // Predicated region
        $region29: #{bert_forward.1} parent=11 // pred_check
          %p526 = pneg %p190
        $region30: #{bert_forward.1} parent=11 // pred_check_branch
          %528 = sbr.rel (%p526) target = $region32
        $region31: #{bert_forward.1} parent=11 // pred_region
          _
        $region32: #{bert_forward.1} parent=11 // pred_fallthru
          _
        // Predicated region
        $region33: #{bert_forward.1} parent=11 // pred_check
          %p529 = pneg %p211
        $region34: #{bert_forward.1} parent=11 // pred_check_branch
          %531 = sbr.rel (%p529) target = $region36
        $region35: #{bert_forward.1} parent=11 // pred_region
          _
        $region36: #{bert_forward.1} parent=11 // pred_fallthru
          _
        // Predicated region
        $region37: #{bert_forward.1} parent=11 // pred_check
          %p532 = pneg %p232
        $region38: #{bert_forward.1} parent=11 // pred_check_branch
          %534 = sbr.rel (%p532) target = $region40
        $region39: #{bert_forward.1} parent=11 // pred_region
          _
        $region40: #{bert_forward.1} parent=11 // pred_fallthru
          _
        // Predicated region
        $region41: #{bert_forward.1} parent=11 // pred_check
          %p535 = pneg %p253
        $region42: #{bert_forward.1} parent=11 // pred_check_branch
          %537 = sbr.rel (%p535) target = $region44
        $region43: #{bert_forward.1} parent=11 // pred_region
          _
        $region44: #{bert_forward.1} parent=11 // pred_fallthru
          _
        // Predicated region
        $region45: #{bert_forward.1} parent=11 // pred_check
          %p538 = pneg %p274
        $region46: #{bert_forward.1} parent=11 // pred_check_branch
          %540 = sbr.rel (%p538) target = $region48
        $region47: #{bert_forward.1} parent=11 // pred_region
          _
        $region48: #{bert_forward.1} parent=11 // pred_fallthru
          _
        // Predicated region
        $region49: #{bert_forward.1} parent=11 // pred_check
          %p541 = pneg %p295
        $region50: #{bert_forward.1} parent=11 // pred_check_branch
          %543 = sbr.rel (%p541) target = $region52
        $region51: #{bert_forward.1} parent=11 // pred_region
          _
        $region52: #{bert_forward.1} parent=11 // pred_fallthru
          _
        // Predicated region
        $region53: #{bert_forward.1} parent=11 // pred_check
          %p544 = pneg %p316
        $region54: #{bert_forward.1} parent=11 // pred_check_branch
          %546 = sbr.rel (%p544) target = $region56
        $region55: #{bert_forward.1} parent=11 // pred_region
          _
        $region56: #{bert_forward.1} parent=11 // pred_fallthru
          _
        // Predicated region
        $region57: #{bert_forward.1} parent=11 // pred_check
          %p547 = pneg %p337
        $region58: #{bert_forward.1} parent=11 // pred_check_branch
          %549 = sbr.rel (%p547) target = $region60
        $region59: #{bert_forward.1} parent=11 // pred_region
          _
        $region60: #{bert_forward.1} parent=11 // pred_fallthru
          _
        // Predicated region
        $region61: #{bert_forward.1} parent=11 // pred_check
          %p550 = pneg %p358
        $region62: #{bert_forward.1} parent=11 // pred_check_branch
          %552 = sbr.rel (%p550) target = $region64
        $region63: #{bert_forward.1} parent=11 // pred_region
          _
        $region64: #{bert_forward.1} parent=11 // pred_fallthru
          _
        // Predicated region
        $region65: #{bert_forward.1} parent=11 // pred_check
          %p553 = pneg %p379
        $region66: #{bert_forward.1} parent=11 // pred_check_branch
          %555 = sbr.rel (%p553) target = $region68
        $region67: #{bert_forward.1} parent=11 // pred_region
          _
        $region68: #{bert_forward.1} parent=11 // pred_fallthru
          _
        // Predicated region
        $region69: #{bert_forward.1} parent=11 // pred_check
          %p556 = pneg %p400
        $region70: #{bert_forward.1} parent=11 // pred_check_branch
          %558 = sbr.rel (%p556) target = $region72
        $region71: #{bert_forward.1} parent=11 // pred_region
          _
        $region72: #{bert_forward.1} parent=11 // pred_fallthru
          _
        // Predicated region
        $region73: #{bert_forward.1} parent=11 // pred_check
          %p559 = pneg %p421
        $region74: #{bert_forward.1} parent=11 // pred_check_branch
          %561 = sbr.rel (%p559) target = $region76
        $region75: #{bert_forward.1} parent=11 // pred_region
          _
        $region76: #{bert_forward.1} parent=11 // pred_fallthru
          _
      $region12: #{bert_forward.1} parent=5 // pred_fallthru
        _
      %p562 = scmp.lt.s32.totalorder %s33, 2
      // Predicated region
      $region77: #{bert_forward.1} parent=5 // pred_check
        %p563 = pneg %p562
      $region78: #{bert_forward.1} parent=5 // pred_check_branch
        %565 = sbr.rel (%p563) target = $region80
      $region79: #{bert_forward.1} parent=5 // pred_region
        // Predicated region
        $region81: #{bert_forward.1} parent=79 // pred_check
          %p566 = pneg %p53
        $region82: #{bert_forward.1} parent=79 // pred_check_branch
          %568 = sbr.rel (%p566) target = $region84
        $region83: #{bert_forward.1} parent=79 // pred_region
          %p569 = scmp.lt.s32.totalorder %s33, 1
          %s570 = scalar_select %p569, %s33, 1
          %s571 = smul.addr %s570, 2
          %s572 = smul.addr %s571, 8
          %s573 = scalar_lea.vmem %s0, %s572
        $region84: #{bert_forward.1} parent=79 // pred_fallthru
          _
        // Predicated region
        $region85: #{bert_forward.1} parent=79 // pred_check
          %p574 = pneg %p79
        $region86: #{bert_forward.1} parent=79 // pred_check_branch
          %576 = sbr.rel (%p574) target = $region88
        $region87: #{bert_forward.1} parent=79 // pred_region
          %p577 = scmp.lt.s32.totalorder %s33, 1
          %s578 = scalar_select %p577, %s33, 1
          %s579 = scalar_lea.vmem %s1, %s578
        $region88: #{bert_forward.1} parent=79 // pred_fallthru
          _
      $region80: #{bert_forward.1} parent=5 // pred_fallthru
        _
      %p580 = scmp.le.s32.totalorder 1, %s33
      %p581 = scmp.lt.s32.totalorder %s33, 3
      %p582 = pnand %p580, %p581
      %p583 = pneg %p582
      // Predicated region
      $region89: #{bert_forward.1} parent=5 // pred_check
        _
      $region90: #{bert_forward.1} parent=5 // pred_check_branch
        %585 = sbr.rel (%p582) target = $region92
      $region91: #{bert_forward.1} parent=5 // pred_region
        %s586 = ssub.s32 %s33, 1
        %p587 = scmp.lt.s32.totalorder %s38, 1
        %s588 = scalar_select %p587, %s38, 1
        %s589 = smul.addr %s588, 2
        %s590 = smul.addr %s589, 8
        %s591 = scalar_lea.vmem %s0, %s590
        %p592 = pneg %p59
        %p593 = pneg %p56
        %p594 = scmp.lt.s32.totalorder %s38, 1
        %s595 = scalar_select %p594, %s38, 1
        %s596 = scalar_lea.vmem %s1, %s595
        %p597 = pneg %p85
        %p598 = pneg %p82
        %p599 = pneg %p106
        %p600 = pneg %p103
        %p601 = pneg %p127
        %p602 = pneg %p124
        %p603 = pneg %p148
        %p604 = pneg %p145
        %p605 = pneg %p169
        %p606 = pneg %p166
        %p607 = pneg %p190
        %p608 = pneg %p187
        %p609 = pneg %p211
        %p610 = pneg %p208
        %p611 = pneg %p232
        %p612 = pneg %p229
        %p613 = pneg %p253
        %p614 = pneg %p250
        %p615 = pneg %p274
        %p616 = pneg %p271
        %p617 = pneg %p295
        %p618 = pneg %p292
        %p619 = pneg %p316
        %p620 = pneg %p313
        %p621 = pneg %p337
        %p622 = pneg %p334
        %p623 = pneg %p358
        %p624 = pneg %p355
        %p625 = pneg %p379
        %p626 = pneg %p376
        %p627 = pneg %p400
        %p628 = pneg %p397
        %p629 = pneg %p421
        %p630 = pneg %p418
        %p631 = pneg %p447
        %p632 = pneg %p444
        %s633 = sand.u32 %s434, 1
        %s634 = scalar_lea.sflag [#allocation3], %s633
        %s635 = sand.u32 %s434, 1
        %s636 = smul.addr %s635, 16
        %s637 = scalar_lea.vmem [#allocation2], %s636
        %p638 = pneg %p473
        %p639 = pneg %p470
        %s640 = sand.u32 %s460, 1
        %s641 = scalar_lea.sflag [#allocation5], %s640
        %s642 = sand.u32 %s460, 1
        %s643 = scalar_lea.vmem [#allocation4], %s642
        %p644 = pneg %p499
        %p645 = pneg %p496
        %p646 = scmp.lt.s32.totalorder %s38, 1
        %s647 = scalar_select %p646, %s38, 1
        %s648 = smul.addr %s647, 16
        %s649 = smul.addr %s648, 8
        %s650 = scalar_lea.vmem %s20, %s649
        %p651 = scmp.lt.s32.totalorder %s38, 1
        %s652 = scalar_select %p651, %s38, 1
        %s653 = smul.addr %s652, 2
        %s654 = smul.addr %s653, 8
        %s655 = scalar_lea.vmem %s0, %s654
        %p656 = scmp.lt.s32.totalorder %s38, 1
        %s657 = scalar_select %p656, %s38, 1
        %s658 = scalar_lea.vmem %s1, %s657
        %p659 = scmp.lt.s32.totalorder %s38, 1
        %s660 = scalar_select %p659, %s38, 1
        %s661 = smul.addr %s660, 16
        %s662 = smul.addr %s661, 8
        %s663 = scalar_lea.vmem %s20, %s662
        %v664 = vld [vmem:[%s655] sm:$0xff]
        %v665 = vld [vmem:[%s655 + $0x8] sm:$0xff]
        %v666 = vld [vmem:[%s2] sm:$0x1]
        %v667 = vld [vmem:[%s3] sm:$0x1]
        %vm668 = vcmask 261120
        %v669 = vsel %vm668, %v664, 0.0
        %670 = vadd.xlane.f32.xlu0 %v669
        %v671 = vpop.xlane.xlu0 %670
        %v672 = vsel %vm668, %v665, 0.0
        %673 = vadd.xlane.f32.xlu0 %v672
        %v674 = vpop.xlane.xlu0 %673
        %v675 = vrcp.pop 32.0
        %v676 = vmul.f32 32.0, %v675
        %v677 = vsub.f32 1.0, %v676
        %v678 = vmul.f32 %v675, %v677
        %v679 = vadd.f32 %v675, %v678
        %vm680 = vweird.f32 %v675
        %v681 = vsel %vm680, %v675, %v679
        %v682 = vmul.f32 %v671, %v681
        %v683 = vmul.f32 %v674, %v681
        %v684 = vsub.f32 %v664, %v682
        %v685 = vsub.f32 %v665, %v683
        %v686 = vmul.f32 %v684, %v684
        %v687 = vmul.f32 %v685, %v685
        %v688 = vsel %vm668, %v686, 0.0
        %689 = vadd.xlane.f32.xlu0 %v688
        %v690 = vpop.xlane.xlu0 %689
        %v691 = vsel %vm668, %v687, 0.0
        %692 = vadd.xlane.f32.xlu0 %v691
        %v693 = vpop.xlane.xlu0 %692
        %v694 = vmul.f32 %v690, %v681
        %v695 = vmul.f32 %v693, %v681
        %v696 = vadd.f32 %v694, 1e-12
        %v697 = vadd.f32 %v695, 1e-12
        %v698 = vrsqrt.pop %v696
        %v699 = vmul.f32 %v698, %v696
        %v700 = vmul.f32 %v699, %v698
        %v701 = vmul.f32 0.5, %v700
        %v702 = vsub.f32 1.5, %v701
        %v703 = vmul.f32 %v698, %v702
        %vm704 = vweird.f32 %v696
        %vm705 = vweird.f32 %v698
        %vm706 = vmor %vm704, %vm705
        %v707 = vsel %vm706, %v698, %v703
        %v708 = vrsqrt.pop %v697
        %v709 = vmul.f32 %v708, %v697
        %v710 = vmul.f32 %v709, %v708
        %v711 = vmul.f32 0.5, %v710
        %v712 = vsub.f32 1.5, %v711
        %v713 = vmul.f32 %v708, %v712
        %vm714 = vweird.f32 %v697
        %vm715 = vweird.f32 %v708
        %vm716 = vmor %vm714, %vm715
        %v717 = vsel %vm716, %v708, %v713
        %v718 = vmul.f32 %v684, %v707
        %v719 = vmul.f32 %v685, %v717
        %v721 = vperm.slane %v666, 0
        %v723 = vmul.f32 %v718, %v721
        %v724 = vmul.f32 %v719, %v721
        %v726 = vperm.slane %v667, 0
        %v728 = vadd.f32 %v723, %v726
        %v729 = vadd.f32 %v724, %v726
        %v730 = vld [vmem:[%s658] sm:$0x1]
        %v731 = vld [vmem:[%s4] sm:$0xff]
        %v732 = vld [vmem:[%s4 + $0x8] sm:$0xff]
        %v733 = vld [vmem:[%s4 + $0x10] sm:$0xff]
        %v734 = vld [vmem:[%s4 + $0x18] sm:$0xff]
        %v735 = vld [vmem:[%s5] sm:$0x1]
        %v737 = vperm.slane %v735, 0
        %v740 = vsel %vm668, %v728, 0
        %v743 = vsel %vm668, %v729, 0
        %745 = vmatpush.msra.mxu0 0.0
        %746 = vmatpush.msra.mxu0 0.0
        %747 = vmatpush.msra.mxu0 0.0
        %748 = vmatpush.msra.mxu0 0.0
        %749 = vmatpush.msra.mxu0 0.0
        %750 = vmatpush.msra.mxu0 0.0
        %751 = vmatpush.msra.mxu0 0.0
        %752 = vmatpush.msra.mxu0 0.0
        %753 = vmatpush.msra.mxu0 0.0
        %754 = vmatpush.msra.mxu0 0.0
        %755 = vmatpush.msra.mxu0 0.0
        %756 = vmatpush.msra.mxu0 0.0
        %757 = vmatpush.msra.mxu0 %v734
        %758 = vmatpush.msra.mxu0 %v733
        %759 = vmatpush.msra.mxu0 %v732
        %760 = vmatpush.msra.mxu0 %v731
        %761 = vmatmul.f32.gmra.mxu0 %v740
        %v762 = vpop.f32.mrf.mxu0
        %v763 = vadd.f32 %v737, %v762
        %764 = vmatmul.f32.gmra.mxu0 %v743
        %v765 = vpop.f32.mrf.mxu0
        %v766 = vadd.f32 %v737, %v765
        %767 = vdwg.mxu0
        %770 = vrot.lane.b32.xlu0 %v763, 96
        %v771 = vpop.permute.xlu0 %770
        %772 = vrot.lane.b32.xlu0 %v766, 96
        %v773 = vpop.permute.xlu0 %772
        %vm774 = vcmask 64512
        %v775 = vsel %vm774, %v763, 0
        %v777 = vsel %vm774, %v766, 0
        %v779 = vsel %vm774, %v771, 0
        %v781 = vsel %vm774, %v773, 0
        %783 = vmatpush.xpose.msra.mxu0 0.0
        %784 = vmatpush.xpose.msra.mxu0 0.0
        %785 = vmatpush.xpose.msra.mxu0 0.0
        %786 = vmatpush.xpose.msra.mxu0 0.0
        %787 = vmatpush.xpose.msra.mxu0 0.0
        %788 = vmatpush.xpose.msra.mxu0 0.0
        %789 = vmatpush.xpose.msra.mxu0 0.0
        %790 = vmatpush.xpose.msra.mxu0 0.0
        %791 = vmatpush.xpose.msra.mxu0 0.0
        %792 = vmatpush.xpose.msra.mxu0 0.0
        %793 = vmatpush.xpose.msra.mxu0 0.0
        %794 = vmatpush.xpose.msra.mxu0 0.0
        %795 = vmatpush.xpose.msra.mxu0 0.0
        %796 = vmatpush.xpose.msra.mxu0 0.0
        %797 = vmatpush.xpose.msra.mxu0 %v781
        %798 = vmatpush.xpose.msra.mxu0 %v779
        %799 = vmatmul.f32.gmra.mxu0 %v775
        %v800 = vpop.f32.mrf.mxu0
        %v801 = vadd.f32 0.0, %v800
        %802 = vmatmul.f32.gmra.mxu0 %v777
        %v803 = vpop.f32.mrf.mxu0
        %v804 = vadd.f32 0.0, %v803
        %805 = vdwg.mxu0
        %v806 = vmul.f32 %v801, 0.35355338
        %v807 = vmul.f32 %v804, 0.35355338
        %v809 = vperm.slane %v730, 0
        %v811 = vadd.f32 %v806, %v809
        %v812 = vadd.f32 %v807, %v809
        %vm813 = vcmask 130048
        %v814 = vsel %vm813, %v811, -inf
        %815 = vmax.xlane.f32.xlu0 %v814
        %v816 = vpop.xlane.xlu0 %815
        %v817 = vsel %vm813, %v812, -inf
        %818 = vmax.xlane.f32.xlu0 %v817
        %v819 = vpop.xlane.xlu0 %818
        %v820 = vsub.f32 %v811, %v816
        %v821 = vsub.f32 %v812, %v819
        %v822 = vmul.f32 %v820, 1.442695
        %v823 = vpow.pop %v822
        %v824 = vmul.f32 %v821, 1.442695
        %v825 = vpow.pop %v824
        %v826 = vsel %vm813, %v823, 0.0
        %827 = vadd.xlane.f32.xlu0 %v826
        %v828 = vpop.xlane.xlu0 %827
        %v829 = vsel %vm813, %v825, 0.0
        %830 = vadd.xlane.f32.xlu0 %v829
        %v831 = vpop.xlane.xlu0 %830
        %v832 = vrcp.pop %v828
        %v833 = vrcp.pop %v831
        %v834 = vmul.f32 %v823, %v832
        %v835 = vmul.f32 %v825, %v833
        %836 = vst.msk [vmem:[%s663] sm:$0xff] %vm813, %v834
        %837 = vst.msk [vmem:[%s663 + $0x8] sm:$0xff] %vm813, %v835
        %838 = vrot.lane.b32.xlu0 %v763, 64
        %v839 = vpop.permute.xlu0 %838
        %840 = vrot.lane.b32.xlu0 %v766, 64
        %v841 = vpop.permute.xlu0 %840
        %v845 = vsel %vm813, %v834, 0
        %v848 = vsel %vm813, %v835, 0
        %850 = vmatpush.msra.mxu0 0.0
        %851 = vmatpush.msra.mxu0 0.0
        %852 = vmatpush.msra.mxu0 0.0
        %853 = vmatpush.msra.mxu0 0.0
        %854 = vmatpush.msra.mxu0 0.0
        %855 = vmatpush.msra.mxu0 0.0
        %856 = vmatpush.msra.mxu0 0.0
        %857 = vmatpush.msra.mxu0 0.0
        %858 = vmatpush.msra.mxu0 0.0
        %859 = vmatpush.msra.mxu0 0.0
        %860 = vmatpush.msra.mxu0 0.0
        %861 = vmatpush.msra.mxu0 0.0
        %862 = vmatpush.msra.mxu0 0.0
        %863 = vmatpush.msra.mxu0 0.0
        %864 = vmatpush.msra.mxu0 %v841
        %865 = vmatpush.msra.mxu0 %v839
        %866 = vmatmul.f32.gmra.mxu0 %v845
        %v867 = vpop.f32.mrf.mxu0
        %v868 = vadd.f32 0.0, %v867
        %869 = vmatmul.f32.gmra.mxu0 %v848
        %v870 = vpop.f32.mrf.mxu0
        %v871 = vadd.f32 0.0, %v870
        %872 = vdwg.mxu0
        %873 = vrot.lane.b32.xlu0 %v763, 120
        %v874 = vpop.permute.xlu0 %873
        %875 = vrot.lane.b32.xlu0 %v766, 120
        %v876 = vpop.permute.xlu0 %875
        %877 = vrot.lane.b32.xlu0 %v763, 88
        %v878 = vpop.permute.xlu0 %877
        %879 = vrot.lane.b32.xlu0 %v766, 88
        %v880 = vpop.permute.xlu0 %879
        %v881 = vsel %vm774, %v874, 0
        %v883 = vsel %vm774, %v876, 0
        %v885 = vsel %vm774, %v878, 0
        %v887 = vsel %vm774, %v880, 0
        %889 = vmatpush.xpose.msra.mxu0 0.0
        %890 = vmatpush.xpose.msra.mxu0 0.0
        %891 = vmatpush.xpose.msra.mxu0 0.0
        %892 = vmatpush.xpose.msra.mxu0 0.0
        %893 = vmatpush.xpose.msra.mxu0 0.0
        %894 = vmatpush.xpose.msra.mxu0 0.0
        %895 = vmatpush.xpose.msra.mxu0 0.0
        %896 = vmatpush.xpose.msra.mxu0 0.0
        %897 = vmatpush.xpose.msra.mxu0 0.0
        %898 = vmatpush.xpose.msra.mxu0 0.0
        %899 = vmatpush.xpose.msra.mxu0 0.0
        %900 = vmatpush.xpose.msra.mxu0 0.0
        %901 = vmatpush.xpose.msra.mxu0 0.0
        %902 = vmatpush.xpose.msra.mxu0 0.0
        %903 = vmatpush.xpose.msra.mxu0 %v887
        %904 = vmatpush.xpose.msra.mxu0 %v885
        %905 = vmatmul.f32.gmra.mxu0 %v881
        %v906 = vpop.f32.mrf.mxu0
        %v907 = vadd.f32 0.0, %v906
        %908 = vmatmul.f32.gmra.mxu0 %v883
        %v909 = vpop.f32.mrf.mxu0
        %v910 = vadd.f32 0.0, %v909
        %911 = vdwg.mxu0
        %v912 = vmul.f32 %v907, 0.35355338
        %v913 = vmul.f32 %v910, 0.35355338
        %v914 = vadd.f32 %v912, %v809
        %v915 = vadd.f32 %v913, %v809
        %v916 = vsel %vm813, %v914, -inf
        %917 = vmax.xlane.f32.xlu0 %v916
        %v918 = vpop.xlane.xlu0 %917
        %v919 = vsel %vm813, %v915, -inf
        %920 = vmax.xlane.f32.xlu0 %v919
        %v921 = vpop.xlane.xlu0 %920
        %v922 = vsub.f32 %v914, %v918
        %v923 = vsub.f32 %v915, %v921
        %v924 = vmul.f32 %v922, 1.442695
        %v925 = vpow.pop %v924
        %v926 = vmul.f32 %v923, 1.442695
        %v927 = vpow.pop %v926
        %v928 = vsel %vm813, %v925, 0.0
        %929 = vadd.xlane.f32.xlu0 %v928
        %v930 = vpop.xlane.xlu0 %929
        %v931 = vsel %vm813, %v927, 0.0
        %932 = vadd.xlane.f32.xlu0 %v931
        %v933 = vpop.xlane.xlu0 %932
        %v934 = vrcp.pop %v930
        %v935 = vrcp.pop %v933
        %v936 = vmul.f32 %v925, %v934
        %v937 = vmul.f32 %v927, %v935
        %s938 = scalar_lea.vmem %s663, 16
        %939 = vst.msk [vmem:[%s938] sm:$0xff] %vm813, %v936
        %940 = vst.msk [vmem:[%s938 + $0x8] sm:$0xff] %vm813, %v937
        %941 = vrot.lane.b32.xlu0 %v763, 56
        %v942 = vpop.permute.xlu0 %941
        %943 = vrot.lane.b32.xlu0 %v766, 56
        %v944 = vpop.permute.xlu0 %943
        %v948 = vsel %vm813, %v936, 0
        %v951 = vsel %vm813, %v937, 0
        %953 = vmatpush.msra.mxu0 0.0
        %954 = vmatpush.msra.mxu0 0.0
        %955 = vmatpush.msra.mxu0 0.0
        %956 = vmatpush.msra.mxu0 0.0
        %957 = vmatpush.msra.mxu0 0.0
        %958 = vmatpush.msra.mxu0 0.0
        %959 = vmatpush.msra.mxu0 0.0
        %960 = vmatpush.msra.mxu0 0.0
        %961 = vmatpush.msra.mxu0 0.0
        %962 = vmatpush.msra.mxu0 0.0
        %963 = vmatpush.msra.mxu0 0.0
        %964 = vmatpush.msra.mxu0 0.0
        %965 = vmatpush.msra.mxu0 0.0
        %966 = vmatpush.msra.mxu0 0.0
        %967 = vmatpush.msra.mxu0 %v944
        %968 = vmatpush.msra.mxu0 %v942
        %969 = vmatmul.f32.gmra.mxu0 %v948
        %v970 = vpop.f32.mrf.mxu0
        %v971 = vadd.f32 0.0, %v970
        %972 = vmatmul.f32.gmra.mxu0 %v951
        %v973 = vpop.f32.mrf.mxu0
        %v974 = vadd.f32 0.0, %v973
        %975 = vdwg.mxu0
        %976 = vrot.lane.b32.xlu0 %v763, 112
        %v977 = vpop.permute.xlu0 %976
        %978 = vrot.lane.b32.xlu0 %v766, 112
        %v979 = vpop.permute.xlu0 %978
        %980 = vrot.lane.b32.xlu0 %v763, 80
        %v981 = vpop.permute.xlu0 %980
        %982 = vrot.lane.b32.xlu0 %v766, 80
        %v983 = vpop.permute.xlu0 %982
        %v984 = vsel %vm774, %v977, 0
        %v986 = vsel %vm774, %v979, 0
        %v988 = vsel %vm774, %v981, 0
        %v990 = vsel %vm774, %v983, 0
        %992 = vmatpush.xpose.msra.mxu0 0.0
        %993 = vmatpush.xpose.msra.mxu0 0.0
        %994 = vmatpush.xpose.msra.mxu0 0.0
        %995 = vmatpush.xpose.msra.mxu0 0.0
        %996 = vmatpush.xpose.msra.mxu0 0.0
        %997 = vmatpush.xpose.msra.mxu0 0.0
        %998 = vmatpush.xpose.msra.mxu0 0.0
        %999 = vmatpush.xpose.msra.mxu0 0.0
        %1000 = vmatpush.xpose.msra.mxu0 0.0
        %1001 = vmatpush.xpose.msra.mxu0 0.0
        %1002 = vmatpush.xpose.msra.mxu0 0.0
        %1003 = vmatpush.xpose.msra.mxu0 0.0
        %1004 = vmatpush.xpose.msra.mxu0 0.0
        %1005 = vmatpush.xpose.msra.mxu0 0.0
        %1006 = vmatpush.xpose.msra.mxu0 %v990
        %1007 = vmatpush.xpose.msra.mxu0 %v988
        %1008 = vmatmul.f32.gmra.mxu0 %v984
        %v1009 = vpop.f32.mrf.mxu0
        %v1010 = vadd.f32 0.0, %v1009
        %1011 = vmatmul.f32.gmra.mxu0 %v986
        %v1012 = vpop.f32.mrf.mxu0
        %v1013 = vadd.f32 0.0, %v1012
        %1014 = vdwg.mxu0
        %v1015 = vmul.f32 %v1010, 0.35355338
        %v1016 = vmul.f32 %v1013, 0.35355338
        %v1017 = vadd.f32 %v1015, %v809
        %v1018 = vadd.f32 %v1016, %v809
        %v1019 = vsel %vm813, %v1017, -inf
        %1020 = vmax.xlane.f32.xlu0 %v1019
        %v1021 = vpop.xlane.xlu0 %1020
        %v1022 = vsel %vm813, %v1018, -inf
        %1023 = vmax.xlane.f32.xlu0 %v1022
        %v1024 = vpop.xlane.xlu0 %1023
        %v1025 = vsub.f32 %v1017, %v1021
        %v1026 = vsub.f32 %v1018, %v1024
        %v1027 = vmul.f32 %v1025, 1.442695
        %v1028 = vpow.pop %v1027
        %v1029 = vmul.f32 %v1026, 1.442695
        %v1030 = vpow.pop %v1029
        %v1031 = vsel %vm813, %v1028, 0.0
        %1032 = vadd.xlane.f32.xlu0 %v1031
        %v1033 = vpop.xlane.xlu0 %1032
        %v1034 = vsel %vm813, %v1030, 0.0
        %1035 = vadd.xlane.f32.xlu0 %v1034
        %v1036 = vpop.xlane.xlu0 %1035
        %v1037 = vrcp.pop %v1033
        %v1038 = vrcp.pop %v1036
        %v1039 = vmul.f32 %v1028, %v1037
        %v1040 = vmul.f32 %v1030, %v1038
        %s1041 = scalar_lea.vmem %s663, 32
        %1042 = vst.msk [vmem:[%s1041] sm:$0xff] %vm813, %v1039
        %1043 = vst.msk [vmem:[%s1041 + $0x8] sm:$0xff] %vm813, %v1040
        %1044 = vrot.lane.b32.xlu0 %v763, 48
        %v1045 = vpop.permute.xlu0 %1044
        %1046 = vrot.lane.b32.xlu0 %v766, 48
        %v1047 = vpop.permute.xlu0 %1046
        %v1051 = vsel %vm813, %v1039, 0
        %v1054 = vsel %vm813, %v1040, 0
        %1056 = vmatpush.msra.mxu0 0.0
        %1057 = vmatpush.msra.mxu0 0.0
        %1058 = vmatpush.msra.mxu0 0.0
        %1059 = vmatpush.msra.mxu0 0.0
        %1060 = vmatpush.msra.mxu0 0.0
        %1061 = vmatpush.msra.mxu0 0.0
        %1062 = vmatpush.msra.mxu0 0.0
        %1063 = vmatpush.msra.mxu0 0.0
        %1064 = vmatpush.msra.mxu0 0.0
        %1065 = vmatpush.msra.mxu0 0.0
        %1066 = vmatpush.msra.mxu0 0.0
        %1067 = vmatpush.msra.mxu0 0.0
        %1068 = vmatpush.msra.mxu0 0.0
        %1069 = vmatpush.msra.mxu0 0.0
        %1070 = vmatpush.msra.mxu0 %v1047
        %1071 = vmatpush.msra.mxu0 %v1045
        %1072 = vmatmul.f32.gmra.mxu0 %v1051
        %v1073 = vpop.f32.mrf.mxu0
        %v1074 = vadd.f32 0.0, %v1073
        %1075 = vmatmul.f32.gmra.mxu0 %v1054
        %v1076 = vpop.f32.mrf.mxu0
        %v1077 = vadd.f32 0.0, %v1076
        %1078 = vdwg.mxu0
        %1079 = vrot.lane.b32.xlu0 %v763, 104
        %v1080 = vpop.permute.xlu0 %1079
        %1081 = vrot.lane.b32.xlu0 %v766, 104
        %v1082 = vpop.permute.xlu0 %1081
        %1083 = vrot.lane.b32.xlu0 %v763, 72
        %v1084 = vpop.permute.xlu0 %1083
        %1085 = vrot.lane.b32.xlu0 %v766, 72
        %v1086 = vpop.permute.xlu0 %1085
        %v1087 = vsel %vm774, %v1080, 0
        %v1089 = vsel %vm774, %v1082, 0
        %v1091 = vsel %vm774, %v1084, 0
        %v1093 = vsel %vm774, %v1086, 0
        %1095 = vmatpush.xpose.msra.mxu0 0.0
        %1096 = vmatpush.xpose.msra.mxu0 0.0
        %1097 = vmatpush.xpose.msra.mxu0 0.0
        %1098 = vmatpush.xpose.msra.mxu0 0.0
        %1099 = vmatpush.xpose.msra.mxu0 0.0
        %1100 = vmatpush.xpose.msra.mxu0 0.0
        %1101 = vmatpush.xpose.msra.mxu0 0.0
        %1102 = vmatpush.xpose.msra.mxu0 0.0
        %1103 = vmatpush.xpose.msra.mxu0 0.0
        %1104 = vmatpush.xpose.msra.mxu0 0.0
        %1105 = vmatpush.xpose.msra.mxu0 0.0
        %1106 = vmatpush.xpose.msra.mxu0 0.0
        %1107 = vmatpush.xpose.msra.mxu0 0.0
        %1108 = vmatpush.xpose.msra.mxu0 0.0
        %1109 = vmatpush.xpose.msra.mxu0 %v1093
        %1110 = vmatpush.xpose.msra.mxu0 %v1091
        %1111 = vmatmul.f32.gmra.mxu0 %v1087
        %v1112 = vpop.f32.mrf.mxu0
        %v1113 = vadd.f32 0.0, %v1112
        %1114 = vmatmul.f32.gmra.mxu0 %v1089
        %v1115 = vpop.f32.mrf.mxu0
        %v1116 = vadd.f32 0.0, %v1115
        %1117 = vdwg.mxu0
        %v1118 = vmul.f32 %v1113, 0.35355338
        %v1119 = vmul.f32 %v1116, 0.35355338
        %v1120 = vadd.f32 %v1118, %v809
        %v1121 = vadd.f32 %v1119, %v809
        %v1122 = vsel %vm813, %v1120, -inf
        %1123 = vmax.xlane.f32.xlu0 %v1122
        %v1124 = vpop.xlane.xlu0 %1123
        %v1125 = vsel %vm813, %v1121, -inf
        %1126 = vmax.xlane.f32.xlu0 %v1125
        %v1127 = vpop.xlane.xlu0 %1126
        %v1128 = vsub.f32 %v1120, %v1124
        %v1129 = vsub.f32 %v1121, %v1127
        %v1130 = vmul.f32 %v1128, 1.442695
        %v1131 = vpow.pop %v1130
        %v1132 = vmul.f32 %v1129, 1.442695
        %v1133 = vpow.pop %v1132
        %v1134 = vsel %vm813, %v1131, 0.0
        %1135 = vadd.xlane.f32.xlu0 %v1134
        %v1136 = vpop.xlane.xlu0 %1135
        %v1137 = vsel %vm813, %v1133, 0.0
        %1138 = vadd.xlane.f32.xlu0 %v1137
        %v1139 = vpop.xlane.xlu0 %1138
        %v1140 = vrcp.pop %v1136
        %v1141 = vrcp.pop %v1139
        %v1142 = vmul.f32 %v1131, %v1140
        %v1143 = vmul.f32 %v1133, %v1141
        %s1144 = scalar_lea.vmem %s663, 48
        %1145 = vst.msk [vmem:[%s1144] sm:$0xff] %vm813, %v1142
        %1146 = vst.msk [vmem:[%s1144 + $0x8] sm:$0xff] %vm813, %v1143
        %1147 = vrot.lane.b32.xlu0 %v763, 40
        %v1148 = vpop.permute.xlu0 %1147
        %1149 = vrot.lane.b32.xlu0 %v766, 40
        %v1150 = vpop.permute.xlu0 %1149
        %v1154 = vsel %vm813, %v1142, 0
        %v1157 = vsel %vm813, %v1143, 0
        %1159 = vmatpush.msra.mxu0 0.0
        %1160 = vmatpush.msra.mxu0 0.0
        %1161 = vmatpush.msra.mxu0 0.0
        %1162 = vmatpush.msra.mxu0 0.0
        %1163 = vmatpush.msra.mxu0 0.0
        %1164 = vmatpush.msra.mxu0 0.0
        %1165 = vmatpush.msra.mxu0 0.0
        %1166 = vmatpush.msra.mxu0 0.0
        %1167 = vmatpush.msra.mxu0 0.0
        %1168 = vmatpush.msra.mxu0 0.0
        %1169 = vmatpush.msra.mxu0 0.0
        %1170 = vmatpush.msra.mxu0 0.0
        %1171 = vmatpush.msra.mxu0 0.0
        %1172 = vmatpush.msra.mxu0 0.0
        %1173 = vmatpush.msra.mxu0 %v1150
        %1174 = vmatpush.msra.mxu0 %v1148
        %1175 = vmatmul.f32.gmra.mxu0 %v1154
        %v1176 = vpop.f32.mrf.mxu0
        %v1177 = vadd.f32 0.0, %v1176
        %1178 = vmatmul.f32.gmra.mxu0 %v1157
        %v1179 = vpop.f32.mrf.mxu0
        %v1180 = vadd.f32 0.0, %v1179
        %1181 = vdwg.mxu0
        %1184 = vrot.lane.b32.xlu0 %v971, 8
        %v1185 = vpop.permute.xlu0 %1184
        %1186 = vrot.lane.b32.xlu0 %v974, 8
        %v1187 = vpop.permute.xlu0 %1186
        %1192 = vrot.lane.b32.xlu0 %v1074, 16
        %v1193 = vpop.permute.xlu0 %1192
        %1194 = vrot.lane.b32.xlu0 %v1077, 16
        %v1195 = vpop.permute.xlu0 %1194
        %1200 = vrot.lane.b32.xlu0 %v1177, 24
        %v1201 = vpop.permute.xlu0 %1200
        %1202 = vrot.lane.b32.xlu0 %v1180, 24
        %v1203 = vpop.permute.xlu0 %1202
        %v1206 = vsel %vm774, %v868, %v1185
        %v1207 = vsel %vm774, %v871, %v1187
        %v1208 = vsel %vm813, %v1206, %v1193
        %v1209 = vsel %vm813, %v1207, %v1195
        %vm1210 = vcmask 195584
        %v1211 = vsel %vm1210, %v1208, %v1201
        %v1212 = vsel %vm1210, %v1209, %v1203
        %v1213 = vld [vmem:[%s6] sm:$0xff]
        %v1214 = vld [vmem:[%s6 + $0x8] sm:$0xff]
        %v1215 = vld [vmem:[%s6 + $0x10] sm:$0xff]
        %v1216 = vld [vmem:[%s6 + $0x18] sm:$0xff]
        %v1217 = vld [vmem:[%s7] sm:$0x1]
        %v1219 = vperm.slane %v1217, 0
        %v1222 = vsel %vm668, %v1211, 0
        %v1225 = vsel %vm668, %v1212, 0
        %1227 = vmatpush.msra.mxu0 0.0
        %1228 = vmatpush.msra.mxu0 0.0
        %1229 = vmatpush.msra.mxu0 0.0
        %1230 = vmatpush.msra.mxu0 0.0
        %1231 = vmatpush.msra.mxu0 0.0
        %1232 = vmatpush.msra.mxu0 0.0
        %1233 = vmatpush.msra.mxu0 0.0
        %1234 = vmatpush.msra.mxu0 0.0
        %1235 = vmatpush.msra.mxu0 0.0
        %1236 = vmatpush.msra.mxu0 0.0
        %1237 = vmatpush.msra.mxu0 0.0
        %1238 = vmatpush.msra.mxu0 0.0
        %1239 = vmatpush.msra.mxu0 %v1216
        %1240 = vmatpush.msra.mxu0 %v1215
        %1241 = vmatpush.msra.mxu0 %v1214
        %1242 = vmatpush.msra.mxu0 %v1213
        %1243 = vmatmul.f32.gmra.mxu0 %v1222
        %v1244 = vpop.f32.mrf.mxu0
        %v1245 = vadd.f32 %v1219, %v1244
        %1246 = vmatmul.f32.gmra.mxu0 %v1225
        %v1247 = vpop.f32.mrf.mxu0
        %v1248 = vadd.f32 %v1219, %v1247
        %1249 = vdwg.mxu0
        %v1250 = vadd.f32 %v1245, %v728
        %v1251 = vadd.f32 %v1248, %v729
        %v1252 = vld [vmem:[%s8] sm:$0x1]
        %v1253 = vld [vmem:[%s9] sm:$0x1]
        %v1254 = vsel %vm668, %v1250, 0.0
        %1255 = vadd.xlane.f32.xlu0 %v1254
        %v1256 = vpop.xlane.xlu0 %1255
        %v1257 = vsel %vm668, %v1251, 0.0
        %1258 = vadd.xlane.f32.xlu0 %v1257
        %v1259 = vpop.xlane.xlu0 %1258
        %v1260 = vmul.f32 %v1256, %v681
        %v1261 = vmul.f32 %v1259, %v681
        %v1262 = vsub.f32 %v1250, %v1260
        %v1263 = vsub.f32 %v1251, %v1261
        %v1264 = vmul.f32 %v1262, %v1262
        %v1265 = vmul.f32 %v1263, %v1263
        %v1266 = vsel %vm668, %v1264, 0.0
        %1267 = vadd.xlane.f32.xlu0 %v1266
        %v1268 = vpop.xlane.xlu0 %1267
        %v1269 = vsel %vm668, %v1265, 0.0
        %1270 = vadd.xlane.f32.xlu0 %v1269
        %v1271 = vpop.xlane.xlu0 %1270
        %v1272 = vmul.f32 %v1268, %v681
        %v1273 = vmul.f32 %v1271, %v681
        %v1274 = vadd.f32 %v1272, 1e-12
        %v1275 = vadd.f32 %v1273, 1e-12
        %v1276 = vrsqrt.pop %v1274
        %v1277 = vmul.f32 %v1276, %v1274
        %v1278 = vmul.f32 %v1277, %v1276
        %v1279 = vmul.f32 0.5, %v1278
        %v1280 = vsub.f32 1.5, %v1279
        %v1281 = vmul.f32 %v1276, %v1280
        %vm1282 = vweird.f32 %v1274
        %vm1283 = vweird.f32 %v1276
        %vm1284 = vmor %vm1282, %vm1283
        %v1285 = vsel %vm1284, %v1276, %v1281
        %v1286 = vrsqrt.pop %v1275
        %v1287 = vmul.f32 %v1286, %v1275
        %v1288 = vmul.f32 %v1287, %v1286
        %v1289 = vmul.f32 0.5, %v1288
        %v1290 = vsub.f32 1.5, %v1289
        %v1291 = vmul.f32 %v1286, %v1290
        %vm1292 = vweird.f32 %v1275
        %vm1293 = vweird.f32 %v1286
        %vm1294 = vmor %vm1292, %vm1293
        %v1295 = vsel %vm1294, %v1286, %v1291
        %v1296 = vmul.f32 %v1262, %v1285
        %v1297 = vmul.f32 %v1263, %v1295
        %v1299 = vperm.slane %v1252, 0
        %v1301 = vmul.f32 %v1296, %v1299
        %v1302 = vmul.f32 %v1297, %v1299
        %v1304 = vperm.slane %v1253, 0
        %v1306 = vadd.f32 %v1301, %v1304
        %v1307 = vadd.f32 %v1302, %v1304
        %v1308 = vld [vmem:[%s10] sm:$0xff]
        %v1309 = vld [vmem:[%s10 + $0x8] sm:$0xff]
        %v1310 = vld [vmem:[%s10 + $0x10] sm:$0xff]
        %v1311 = vld [vmem:[%s10 + $0x18] sm:$0xff]
        %v1312 = vld [vmem:[%s11] sm:$0x1]
        %v1314 = vperm.slane %v1312, 0
        %v1317 = vsel %vm668, %v1306, 0
        %v1320 = vsel %vm668, %v1307, 0
        %1322 = vmatpush.msra.mxu0 0.0
        %1323 = vmatpush.msra.mxu0 0.0
        %1324 = vmatpush.msra.mxu0 0.0
        %1325 = vmatpush.msra.mxu0 0.0
        %1326 = vmatpush.msra.mxu0 0.0
        %1327 = vmatpush.msra.mxu0 0.0
        %1328 = vmatpush.msra.mxu0 0.0
        %1329 = vmatpush.msra.mxu0 0.0
        %1330 = vmatpush.msra.mxu0 0.0
        %1331 = vmatpush.msra.mxu0 0.0
        %1332 = vmatpush.msra.mxu0 0.0
        %1333 = vmatpush.msra.mxu0 0.0
        %1334 = vmatpush.msra.mxu0 %v1311
        %1335 = vmatpush.msra.mxu0 %v1310
        %1336 = vmatpush.msra.mxu0 %v1309
        %1337 = vmatpush.msra.mxu0 %v1308
        %1338 = vmatmul.f32.gmra.mxu0 %v1317
        %v1339 = vpop.f32.mrf.mxu0
        %v1340 = vadd.f32 %v1314, %v1339
        %1341 = vmatmul.f32.gmra.mxu0 %v1320
        %v1342 = vpop.f32.mrf.mxu0
        %v1343 = vadd.f32 %v1314, %v1342
        %1344 = vdwg.mxu0
        %v1345 = vmul.f32 %v1340, 0.5
        %v1346 = vmul.f32 %v1343, 0.5
        %v1347 = vmul.f32 %v1340, 0.044715
        %v1348 = vmul.f32 %v1343, 0.044715
        %v1349 = vmul.f32 %v1347, %v1340
        %v1350 = vmul.f32 %v1348, %v1343
        %v1351 = vmul.f32 %v1349, %v1340
        %v1352 = vmul.f32 %v1350, %v1343
        %v1353 = vadd.f32 %v1340, %v1351
        %v1354 = vadd.f32 %v1343, %v1352
        %v1355 = vmul.f32 %v1353, 0.7978846
        %v1356 = vmul.f32 %v1354, 0.7978846
        %v1357 = vtanh.pop %v1355
        %v1358 = vtanh.pop %v1356
        %v1359 = vadd.f32 %v1357, 1.0
        %v1360 = vadd.f32 %v1358, 1.0
        %v1361 = vmul.f32 %v1345, %v1359
        %v1362 = vmul.f32 %v1346, %v1360
        %v1363 = vld [vmem:[%s12] sm:$0xff]
        %v1364 = vld [vmem:[%s12 + $0x8] sm:$0xff]
        %v1365 = vld [vmem:[%s12 + $0x10] sm:$0xff]
        %v1366 = vld [vmem:[%s12 + $0x18] sm:$0xff]
        %v1367 = vld [vmem:[%s12 + $0x20] sm:$0xff]
        %v1368 = vld [vmem:[%s12 + $0x28] sm:$0xff]
        %v1369 = vld [vmem:[%s12 + $0x30] sm:$0xff]
        %v1370 = vld [vmem:[%s12 + $0x38] sm:$0xff]
        %v1371 = vld [vmem:[%s13] sm:$0x1]
        %v1373 = vperm.slane %v1371, 0
        %vm1375 = vcmask 523264
        %v1377 = vsel %vm1375, %v1361, 0
        %v1380 = vsel %vm1375, %v1362, 0
        %1382 = vmatpush.msra.mxu0 0.0
        %1383 = vmatpush.msra.mxu0 0.0
        %1384 = vmatpush.msra.mxu0 0.0
        %1385 = vmatpush.msra.mxu0 0.0
        %1386 = vmatpush.msra.mxu0 0.0
        %1387 = vmatpush.msra.mxu0 0.0
        %1388 = vmatpush.msra.mxu0 0.0
        %1389 = vmatpush.msra.mxu0 0.0
        %1390 = vmatpush.msra.mxu0 %v1370
        %1391 = vmatpush.msra.mxu0 %v1369
        %1392 = vmatpush.msra.mxu0 %v1368
        %1393 = vmatpush.msra.mxu0 %v1367
        %1394 = vmatpush.msra.mxu0 %v1366
        %1395 = vmatpush.msra.mxu0 %v1365
        %1396 = vmatpush.msra.mxu0 %v1364
        %1397 = vmatpush.msra.mxu0 %v1363
        %1398 = vmatmul.f32.gmra.mxu0 %v1377
        %v1399 = vpop.f32.mrf.mxu0
        %v1400 = vadd.f32 %v1373, %v1399
        %1401 = vmatmul.f32.gmra.mxu0 %v1380
        %v1402 = vpop.f32.mrf.mxu0
        %v1403 = vadd.f32 %v1373, %v1402
        %1404 = vdwg.mxu0
        %v1405 = vadd.f32 %v1400, %v1306
        %v1406 = vadd.f32 %v1403, %v1307
        %v1407 = vld [vmem:[%s14] sm:$0x1]
        %v1408 = vld [vmem:[%s15] sm:$0x1]
        %v1409 = vsel %vm668, %v1405, 0.0
        %1410 = vadd.xlane.f32.xlu0 %v1409
        %v1411 = vpop.xlane.xlu0 %1410
        %v1412 = vsel %vm668, %v1406, 0.0
        %1413 = vadd.xlane.f32.xlu0 %v1412
        %v1414 = vpop.xlane.xlu0 %1413
        %v1415 = vmul.f32 %v1411, %v681
        %v1416 = vmul.f32 %v1414, %v681
        %v1417 = vsub.f32 %v1405, %v1415
        %v1418 = vsub.f32 %v1406, %v1416
        %v1419 = vmul.f32 %v1417, %v1417
        %v1420 = vmul.f32 %v1418, %v1418
        %v1421 = vsel %vm668, %v1419, 0.0
        %1422 = vadd.xlane.f32.xlu0 %v1421
        %v1423 = vpop.xlane.xlu0 %1422
        %v1424 = vsel %vm668, %v1420, 0.0
        %1425 = vadd.xlane.f32.xlu0 %v1424
        %v1426 = vpop.xlane.xlu0 %1425
        %v1427 = vmul.f32 %v1423, %v681
        %v1428 = vmul.f32 %v1426, %v681
        %v1429 = vadd.f32 %v1427, 1e-12
        %v1430 = vadd.f32 %v1428, 1e-12
        %v1431 = vrsqrt.pop %v1429
        %v1432 = vmul.f32 %v1431, %v1429
        %v1433 = vmul.f32 %v1432, %v1431
        %v1434 = vmul.f32 0.5, %v1433
        %v1435 = vsub.f32 1.5, %v1434
        %v1436 = vmul.f32 %v1431, %v1435
        %vm1437 = vweird.f32 %v1429
        %vm1438 = vweird.f32 %v1431
        %vm1439 = vmor %vm1437, %vm1438
        %v1440 = vsel %vm1439, %v1431, %v1436
        %v1441 = vrsqrt.pop %v1430
        %v1442 = vmul.f32 %v1441, %v1430
        %v1443 = vmul.f32 %v1442, %v1441
        %v1444 = vmul.f32 0.5, %v1443
        %v1445 = vsub.f32 1.5, %v1444
        %v1446 = vmul.f32 %v1441, %v1445
        %vm1447 = vweird.f32 %v1430
        %vm1448 = vweird.f32 %v1441
        %vm1449 = vmor %vm1447, %vm1448
        %v1450 = vsel %vm1449, %v1441, %v1446
        %v1451 = vmul.f32 %v1417, %v1440
        %v1452 = vmul.f32 %v1418, %v1450
        %v1454 = vperm.slane %v1407, 0
        %v1456 = vmul.f32 %v1451, %v1454
        %v1457 = vmul.f32 %v1452, %v1454
        %v1459 = vperm.slane %v1408, 0
        %v1461 = vadd.f32 %v1456, %v1459
        %v1462 = vadd.f32 %v1457, %v1459
        %s1463 = scalar_lea.vmem %s4, 32
        %v1464 = vld [vmem:[%s1463] sm:$0xff]
        %v1465 = vld [vmem:[%s1463 + $0x8] sm:$0xff]
        %v1466 = vld [vmem:[%s1463 + $0x10] sm:$0xff]
        %v1467 = vld [vmem:[%s1463 + $0x18] sm:$0xff]
        %s1468 = scalar_lea.vmem %s5, 1
        %v1469 = vld [vmem:[%s1468] sm:$0x1]
        %v1471 = vperm.slane %v1469, 0
        %v1474 = vsel %vm668, %v1461, 0
        %v1477 = vsel %vm668, %v1462, 0
        %1479 = vmatpush.msra.mxu0 0.0
        %1480 = vmatpush.msra.mxu0 0.0
        %1481 = vmatpush.msra.mxu0 0.0
        %1482 = vmatpush.msra.mxu0 0.0
        %1483 = vmatpush.msra.mxu0 0.0
        %1484 = vmatpush.msra.mxu0 0.0
        %1485 = vmatpush.msra.mxu0 0.0
        %1486 = vmatpush.msra.mxu0 0.0
        %1487 = vmatpush.msra.mxu0 0.0
        %1488 = vmatpush.msra.mxu0 0.0
        %1489 = vmatpush.msra.mxu0 0.0
        %1490 = vmatpush.msra.mxu0 0.0
        %1491 = vmatpush.msra.mxu0 %v1467
        %1492 = vmatpush.msra.mxu0 %v1466
        %1493 = vmatpush.msra.mxu0 %v1465
        %1494 = vmatpush.msra.mxu0 %v1464
        %1495 = vmatmul.f32.gmra.mxu0 %v1474
        %v1496 = vpop.f32.mrf.mxu0
        %v1497 = vadd.f32 %v1471, %v1496
        %1498 = vmatmul.f32.gmra.mxu0 %v1477
        %v1499 = vpop.f32.mrf.mxu0
        %v1500 = vadd.f32 %v1471, %v1499
        %1501 = vdwg.mxu0
        %1504 = vrot.lane.b32.xlu0 %v1497, 96
        %v1505 = vpop.permute.xlu0 %1504
        %1506 = vrot.lane.b32.xlu0 %v1500, 96
        %v1507 = vpop.permute.xlu0 %1506
        %v1508 = vsel %vm774, %v1497, 0
        %v1510 = vsel %vm774, %v1500, 0
        %v1512 = vsel %vm774, %v1505, 0
        %v1514 = vsel %vm774, %v1507, 0
        %1516 = vmatpush.xpose.msra.mxu0 0.0
        %1517 = vmatpush.xpose.msra.mxu0 0.0
        %1518 = vmatpush.xpose.msra.mxu0 0.0
        %1519 = vmatpush.xpose.msra.mxu0 0.0
        %1520 = vmatpush.xpose.msra.mxu0 0.0
        %1521 = vmatpush.xpose.msra.mxu0 0.0
        %1522 = vmatpush.xpose.msra.mxu0 0.0
        %1523 = vmatpush.xpose.msra.mxu0 0.0
        %1524 = vmatpush.xpose.msra.mxu0 0.0
        %1525 = vmatpush.xpose.msra.mxu0 0.0
        %1526 = vmatpush.xpose.msra.mxu0 0.0
        %1527 = vmatpush.xpose.msra.mxu0 0.0
        %1528 = vmatpush.xpose.msra.mxu0 0.0
        %1529 = vmatpush.xpose.msra.mxu0 0.0
        %1530 = vmatpush.xpose.msra.mxu0 %v1514
        %1531 = vmatpush.xpose.msra.mxu0 %v1512
        %1532 = vmatmul.f32.gmra.mxu0 %v1508
        %v1533 = vpop.f32.mrf.mxu0
        %v1534 = vadd.f32 0.0, %v1533
        %1535 = vmatmul.f32.gmra.mxu0 %v1510
        %v1536 = vpop.f32.mrf.mxu0
        %v1537 = vadd.f32 0.0, %v1536
        %1538 = vdwg.mxu0
        %v1539 = vmul.f32 %v1534, 0.35355338
        %v1540 = vmul.f32 %v1537, 0.35355338
        %v1541 = vadd.f32 %v1539, %v809
        %v1542 = vadd.f32 %v1540, %v809
        %v1543 = vsel %vm813, %v1541, -inf
        %1544 = vmax.xlane.f32.xlu0 %v1543
        %v1545 = vpop.xlane.xlu0 %1544
        %v1546 = vsel %vm813, %v1542, -inf
        %1547 = vmax.xlane.f32.xlu0 %v1546
        %v1548 = vpop.xlane.xlu0 %1547
        %v1549 = vsub.f32 %v1541, %v1545
        %v1550 = vsub.f32 %v1542, %v1548
        %v1551 = vmul.f32 %v1549, 1.442695
        %v1552 = vpow.pop %v1551
        %v1553 = vmul.f32 %v1550, 1.442695
        %v1554 = vpow.pop %v1553
        %v1555 = vsel %vm813, %v1552, 0.0
        %1556 = vadd.xlane.f32.xlu0 %v1555
        %v1557 = vpop.xlane.xlu0 %1556
        %v1558 = vsel %vm813, %v1554, 0.0
        %1559 = vadd.xlane.f32.xlu0 %v1558
        %v1560 = vpop.xlane.xlu0 %1559
        %v1561 = vrcp.pop %v1557
        %v1562 = vrcp.pop %v1560
        %v1563 = vmul.f32 %v1552, %v1561
        %v1564 = vmul.f32 %v1554, %v1562
        %s1565 = scalar_lea.vmem %s663, 64
        %1566 = vst.msk [vmem:[%s1565] sm:$0xff] %vm813, %v1563
        %1567 = vst.msk [vmem:[%s1565 + $0x8] sm:$0xff] %vm813, %v1564
        %1568 = vrot.lane.b32.xlu0 %v1497, 64
        %v1569 = vpop.permute.xlu0 %1568
        %1570 = vrot.lane.b32.xlu0 %v1500, 64
        %v1571 = vpop.permute.xlu0 %1570
        %v1575 = vsel %vm813, %v1563, 0
        %v1578 = vsel %vm813, %v1564, 0
        %1580 = vmatpush.msra.mxu0 0.0
        %1581 = vmatpush.msra.mxu0 0.0
        %1582 = vmatpush.msra.mxu0 0.0
        %1583 = vmatpush.msra.mxu0 0.0
        %1584 = vmatpush.msra.mxu0 0.0
        %1585 = vmatpush.msra.mxu0 0.0
        %1586 = vmatpush.msra.mxu0 0.0
        %1587 = vmatpush.msra.mxu0 0.0
        %1588 = vmatpush.msra.mxu0 0.0
        %1589 = vmatpush.msra.mxu0 0.0
        %1590 = vmatpush.msra.mxu0 0.0
        %1591 = vmatpush.msra.mxu0 0.0
        %1592 = vmatpush.msra.mxu0 0.0
        %1593 = vmatpush.msra.mxu0 0.0
        %1594 = vmatpush.msra.mxu0 %v1571
        %1595 = vmatpush.msra.mxu0 %v1569
        %1596 = vmatmul.f32.gmra.mxu0 %v1575
        %v1597 = vpop.f32.mrf.mxu0
        %v1598 = vadd.f32 0.0, %v1597
        %1599 = vmatmul.f32.gmra.mxu0 %v1578
        %v1600 = vpop.f32.mrf.mxu0
        %v1601 = vadd.f32 0.0, %v1600
        %1602 = vdwg.mxu0
        %1603 = vrot.lane.b32.xlu0 %v1497, 120
        %v1604 = vpop.permute.xlu0 %1603
        %1605 = vrot.lane.b32.xlu0 %v1500, 120
        %v1606 = vpop.permute.xlu0 %1605
        %1607 = vrot.lane.b32.xlu0 %v1497, 88
        %v1608 = vpop.permute.xlu0 %1607
        %1609 = vrot.lane.b32.xlu0 %v1500, 88
        %v1610 = vpop.permute.xlu0 %1609
        %v1611 = vsel %vm774, %v1604, 0
        %v1613 = vsel %vm774, %v1606, 0
        %v1615 = vsel %vm774, %v1608, 0
        %v1617 = vsel %vm774, %v1610, 0
        %1619 = vmatpush.xpose.msra.mxu0 0.0
        %1620 = vmatpush.xpose.msra.mxu0 0.0
        %1621 = vmatpush.xpose.msra.mxu0 0.0
        %1622 = vmatpush.xpose.msra.mxu0 0.0
        %1623 = vmatpush.xpose.msra.mxu0 0.0
        %1624 = vmatpush.xpose.msra.mxu0 0.0
        %1625 = vmatpush.xpose.msra.mxu0 0.0
        %1626 = vmatpush.xpose.msra.mxu0 0.0
        %1627 = vmatpush.xpose.msra.mxu0 0.0
        %1628 = vmatpush.xpose.msra.mxu0 0.0
        %1629 = vmatpush.xpose.msra.mxu0 0.0
        %1630 = vmatpush.xpose.msra.mxu0 0.0
        %1631 = vmatpush.xpose.msra.mxu0 0.0
        %1632 = vmatpush.xpose.msra.mxu0 0.0
        %1633 = vmatpush.xpose.msra.mxu0 %v1617
        %1634 = vmatpush.xpose.msra.mxu0 %v1615
        %1635 = vmatmul.f32.gmra.mxu0 %v1611
        %v1636 = vpop.f32.mrf.mxu0
        %v1637 = vadd.f32 0.0, %v1636
        %1638 = vmatmul.f32.gmra.mxu0 %v1613
        %v1639 = vpop.f32.mrf.mxu0
        %v1640 = vadd.f32 0.0, %v1639
        %1641 = vdwg.mxu0
        %v1642 = vmul.f32 %v1637, 0.35355338
        %v1643 = vmul.f32 %v1640, 0.35355338
        %v1644 = vadd.f32 %v1642, %v809
        %v1645 = vadd.f32 %v1643, %v809
        %v1646 = vsel %vm813, %v1644, -inf
        %1647 = vmax.xlane.f32.xlu0 %v1646
        %v1648 = vpop.xlane.xlu0 %1647
        %v1649 = vsel %vm813, %v1645, -inf
        %1650 = vmax.xlane.f32.xlu0 %v1649
        %v1651 = vpop.xlane.xlu0 %1650
        %v1652 = vsub.f32 %v1644, %v1648
        %v1653 = vsub.f32 %v1645, %v1651
        %v1654 = vmul.f32 %v1652, 1.442695
        %v1655 = vpow.pop %v1654
        %v1656 = vmul.f32 %v1653, 1.442695
        %v1657 = vpow.pop %v1656
        %v1658 = vsel %vm813, %v1655, 0.0
        %1659 = vadd.xlane.f32.xlu0 %v1658
        %v1660 = vpop.xlane.xlu0 %1659
        %v1661 = vsel %vm813, %v1657, 0.0
        %1662 = vadd.xlane.f32.xlu0 %v1661
        %v1663 = vpop.xlane.xlu0 %1662
        %v1664 = vrcp.pop %v1660
        %v1665 = vrcp.pop %v1663
        %v1666 = vmul.f32 %v1655, %v1664
        %v1667 = vmul.f32 %v1657, %v1665
        %s1668 = scalar_lea.vmem %s663, 80
        %1669 = vst.msk [vmem:[%s1668] sm:$0xff] %vm813, %v1666
        %1670 = vst.msk [vmem:[%s1668 + $0x8] sm:$0xff] %vm813, %v1667
        %1671 = vrot.lane.b32.xlu0 %v1497, 56
        %v1672 = vpop.permute.xlu0 %1671
        %1673 = vrot.lane.b32.xlu0 %v1500, 56
        %v1674 = vpop.permute.xlu0 %1673
        %v1678 = vsel %vm813, %v1666, 0
        %v1681 = vsel %vm813, %v1667, 0
        %1683 = vmatpush.msra.mxu0 0.0
        %1684 = vmatpush.msra.mxu0 0.0
        %1685 = vmatpush.msra.mxu0 0.0
        %1686 = vmatpush.msra.mxu0 0.0
        %1687 = vmatpush.msra.mxu0 0.0
        %1688 = vmatpush.msra.mxu0 0.0
        %1689 = vmatpush.msra.mxu0 0.0
        %1690 = vmatpush.msra.mxu0 0.0
        %1691 = vmatpush.msra.mxu0 0.0
        %1692 = vmatpush.msra.mxu0 0.0
        %1693 = vmatpush.msra.mxu0 0.0
        %1694 = vmatpush.msra.mxu0 0.0
        %1695 = vmatpush.msra.mxu0 0.0
        %1696 = vmatpush.msra.mxu0 0.0
        %1697 = vmatpush.msra.mxu0 %v1674
        %1698 = vmatpush.msra.mxu0 %v1672
        %1699 = vmatmul.f32.gmra.mxu0 %v1678
        %v1700 = vpop.f32.mrf.mxu0
        %v1701 = vadd.f32 0.0, %v1700
        %1702 = vmatmul.f32.gmra.mxu0 %v1681
        %v1703 = vpop.f32.mrf.mxu0
        %v1704 = vadd.f32 0.0, %v1703
        %1705 = vdwg.mxu0
        %1706 = vrot.lane.b32.xlu0 %v1497, 112
        %v1707 = vpop.permute.xlu0 %1706
        %1708 = vrot.lane.b32.xlu0 %v1500, 112
        %v1709 = vpop.permute.xlu0 %1708
        %1710 = vrot.lane.b32.xlu0 %v1497, 80
        %v1711 = vpop.permute.xlu0 %1710
        %1712 = vrot.lane.b32.xlu0 %v1500, 80
        %v1713 = vpop.permute.xlu0 %1712
        %v1714 = vsel %vm774, %v1707, 0
        %v1716 = vsel %vm774, %v1709, 0
        %v1718 = vsel %vm774, %v1711, 0
        %v1720 = vsel %vm774, %v1713, 0
        %1722 = vmatpush.xpose.msra.mxu0 0.0
        %1723 = vmatpush.xpose.msra.mxu0 0.0
        %1724 = vmatpush.xpose.msra.mxu0 0.0
        %1725 = vmatpush.xpose.msra.mxu0 0.0
        %1726 = vmatpush.xpose.msra.mxu0 0.0
        %1727 = vmatpush.xpose.msra.mxu0 0.0
        %1728 = vmatpush.xpose.msra.mxu0 0.0
        %1729 = vmatpush.xpose.msra.mxu0 0.0
        %1730 = vmatpush.xpose.msra.mxu0 0.0
        %1731 = vmatpush.xpose.msra.mxu0 0.0
        %1732 = vmatpush.xpose.msra.mxu0 0.0
        %1733 = vmatpush.xpose.msra.mxu0 0.0
        %1734 = vmatpush.xpose.msra.mxu0 0.0
        %1735 = vmatpush.xpose.msra.mxu0 0.0
        %1736 = vmatpush.xpose.msra.mxu0 %v1720
        %1737 = vmatpush.xpose.msra.mxu0 %v1718
        %1738 = vmatmul.f32.gmra.mxu0 %v1714
        %v1739 = vpop.f32.mrf.mxu0
        %v1740 = vadd.f32 0.0, %v1739
        %1741 = vmatmul.f32.gmra.mxu0 %v1716
        %v1742 = vpop.f32.mrf.mxu0
        %v1743 = vadd.f32 0.0, %v1742
        %1744 = vdwg.mxu0
        %v1745 = vmul.f32 %v1740, 0.35355338
        %v1746 = vmul.f32 %v1743, 0.35355338
        %v1747 = vadd.f32 %v1745, %v809
        %v1748 = vadd.f32 %v1746, %v809
        %v1749 = vsel %vm813, %v1747, -inf
        %1750 = vmax.xlane.f32.xlu0 %v1749
        %v1751 = vpop.xlane.xlu0 %1750
        %v1752 = vsel %vm813, %v1748, -inf
        %1753 = vmax.xlane.f32.xlu0 %v1752
        %v1754 = vpop.xlane.xlu0 %1753
        %v1755 = vsub.f32 %v1747, %v1751
        %v1756 = vsub.f32 %v1748, %v1754
        %v1757 = vmul.f32 %v1755, 1.442695
        %v1758 = vpow.pop %v1757
        %v1759 = vmul.f32 %v1756, 1.442695
        %v1760 = vpow.pop %v1759
        %v1761 = vsel %vm813, %v1758, 0.0
        %1762 = vadd.xlane.f32.xlu0 %v1761
        %v1763 = vpop.xlane.xlu0 %1762
        %v1764 = vsel %vm813, %v1760, 0.0
        %1765 = vadd.xlane.f32.xlu0 %v1764
        %v1766 = vpop.xlane.xlu0 %1765
        %v1767 = vrcp.pop %v1763
        %v1768 = vrcp.pop %v1766
        %v1769 = vmul.f32 %v1758, %v1767
        %v1770 = vmul.f32 %v1760, %v1768
        %s1771 = scalar_lea.vmem %s663, 96
        %1772 = vst.msk [vmem:[%s1771] sm:$0xff] %vm813, %v1769
        %1773 = vst.msk [vmem:[%s1771 + $0x8] sm:$0xff] %vm813, %v1770
        %1774 = vrot.lane.b32.xlu0 %v1497, 48
        %v1775 = vpop.permute.xlu0 %1774
        %1776 = vrot.lane.b32.xlu0 %v1500, 48
        %v1777 = vpop.permute.xlu0 %1776
        %v1781 = vsel %vm813, %v1769, 0
        %v1784 = vsel %vm813, %v1770, 0
        %1786 = vmatpush.msra.mxu0 0.0
        %1787 = vmatpush.msra.mxu0 0.0
        %1788 = vmatpush.msra.mxu0 0.0
        %1789 = vmatpush.msra.mxu0 0.0
        %1790 = vmatpush.msra.mxu0 0.0
        %1791 = vmatpush.msra.mxu0 0.0
        %1792 = vmatpush.msra.mxu0 0.0
        %1793 = vmatpush.msra.mxu0 0.0
        %1794 = vmatpush.msra.mxu0 0.0
        %1795 = vmatpush.msra.mxu0 0.0
        %1796 = vmatpush.msra.mxu0 0.0
        %1797 = vmatpush.msra.mxu0 0.0
        %1798 = vmatpush.msra.mxu0 0.0
        %1799 = vmatpush.msra.mxu0 0.0
        %1800 = vmatpush.msra.mxu0 %v1777
        %1801 = vmatpush.msra.mxu0 %v1775
        %1802 = vmatmul.f32.gmra.mxu0 %v1781
        %v1803 = vpop.f32.mrf.mxu0
        %v1804 = vadd.f32 0.0, %v1803
        %1805 = vmatmul.f32.gmra.mxu0 %v1784
        %v1806 = vpop.f32.mrf.mxu0
        %v1807 = vadd.f32 0.0, %v1806
        %1808 = vdwg.mxu0
        %1809 = vrot.lane.b32.xlu0 %v1497, 104
        %v1810 = vpop.permute.xlu0 %1809
        %1811 = vrot.lane.b32.xlu0 %v1500, 104
        %v1812 = vpop.permute.xlu0 %1811
        %1813 = vrot.lane.b32.xlu0 %v1497, 72
        %v1814 = vpop.permute.xlu0 %1813
        %1815 = vrot.lane.b32.xlu0 %v1500, 72
        %v1816 = vpop.permute.xlu0 %1815
        %v1817 = vsel %vm774, %v1810, 0
        %v1819 = vsel %vm774, %v1812, 0
        %v1821 = vsel %vm774, %v1814, 0
        %v1823 = vsel %vm774, %v1816, 0
        %1825 = vmatpush.xpose.msra.mxu0 0.0
        %1826 = vmatpush.xpose.msra.mxu0 0.0
        %1827 = vmatpush.xpose.msra.mxu0 0.0
        %1828 = vmatpush.xpose.msra.mxu0 0.0
        %1829 = vmatpush.xpose.msra.mxu0 0.0
        %1830 = vmatpush.xpose.msra.mxu0 0.0
        %1831 = vmatpush.xpose.msra.mxu0 0.0
        %1832 = vmatpush.xpose.msra.mxu0 0.0
        %1833 = vmatpush.xpose.msra.mxu0 0.0
        %1834 = vmatpush.xpose.msra.mxu0 0.0
        %1835 = vmatpush.xpose.msra.mxu0 0.0
        %1836 = vmatpush.xpose.msra.mxu0 0.0
        %1837 = vmatpush.xpose.msra.mxu0 0.0
        %1838 = vmatpush.xpose.msra.mxu0 0.0
        %1839 = vmatpush.xpose.msra.mxu0 %v1823
        %1840 = vmatpush.xpose.msra.mxu0 %v1821
        %1841 = vmatmul.f32.gmra.mxu0 %v1817
        %v1842 = vpop.f32.mrf.mxu0
        %v1843 = vadd.f32 0.0, %v1842
        %1844 = vmatmul.f32.gmra.mxu0 %v1819
        %v1845 = vpop.f32.mrf.mxu0
        %v1846 = vadd.f32 0.0, %v1845
        %1847 = vdwg.mxu0
        %v1848 = vmul.f32 %v1843, 0.35355338
        %v1849 = vmul.f32 %v1846, 0.35355338
        %v1850 = vadd.f32 %v1848, %v809
        %v1851 = vadd.f32 %v1849, %v809
        %v1852 = vsel %vm813, %v1850, -inf
        %1853 = vmax.xlane.f32.xlu0 %v1852
        %v1854 = vpop.xlane.xlu0 %1853
        %v1855 = vsel %vm813, %v1851, -inf
        %1856 = vmax.xlane.f32.xlu0 %v1855
        %v1857 = vpop.xlane.xlu0 %1856
        %v1858 = vsub.f32 %v1850, %v1854
        %v1859 = vsub.f32 %v1851, %v1857
        %v1860 = vmul.f32 %v1858, 1.442695
        %v1861 = vpow.pop %v1860
        %v1862 = vmul.f32 %v1859, 1.442695
        %v1863 = vpow.pop %v1862
        %v1864 = vsel %vm813, %v1861, 0.0
        %1865 = vadd.xlane.f32.xlu0 %v1864
        %v1866 = vpop.xlane.xlu0 %1865
        %v1867 = vsel %vm813, %v1863, 0.0
        %1868 = vadd.xlane.f32.xlu0 %v1867
        %v1869 = vpop.xlane.xlu0 %1868
        %v1870 = vrcp.pop %v1866
        %v1871 = vrcp.pop %v1869
        %v1872 = vmul.f32 %v1861, %v1870
        %v1873 = vmul.f32 %v1863, %v1871
        %s1874 = scalar_lea.vmem %s663, 112
        %1875 = vst.msk [vmem:[%s1874] sm:$0xff] %vm813, %v1872
        %1876 = vst.msk [vmem:[%s1874 + $0x8] sm:$0xff] %vm813, %v1873
        %1877 = vrot.lane.b32.xlu0 %v1497, 40
        %v1878 = vpop.permute.xlu0 %1877
        %1879 = vrot.lane.b32.xlu0 %v1500, 40
        %v1880 = vpop.permute.xlu0 %1879
        %v1884 = vsel %vm813, %v1872, 0
        %v1887 = vsel %vm813, %v1873, 0
        %1889 = vmatpush.msra.mxu0 0.0
        %1890 = vmatpush.msra.mxu0 0.0
        %1891 = vmatpush.msra.mxu0 0.0
        %1892 = vmatpush.msra.mxu0 0.0
        %1893 = vmatpush.msra.mxu0 0.0
        %1894 = vmatpush.msra.mxu0 0.0
        %1895 = vmatpush.msra.mxu0 0.0
        %1896 = vmatpush.msra.mxu0 0.0
        %1897 = vmatpush.msra.mxu0 0.0
        %1898 = vmatpush.msra.mxu0 0.0
        %1899 = vmatpush.msra.mxu0 0.0
        %1900 = vmatpush.msra.mxu0 0.0
        %1901 = vmatpush.msra.mxu0 0.0
        %1902 = vmatpush.msra.mxu0 0.0
        %1903 = vmatpush.msra.mxu0 %v1880
        %1904 = vmatpush.msra.mxu0 %v1878
        %1905 = vmatmul.f32.gmra.mxu0 %v1884
        %v1906 = vpop.f32.mrf.mxu0
        %v1907 = vadd.f32 0.0, %v1906
        %1908 = vmatmul.f32.gmra.mxu0 %v1887
        %v1909 = vpop.f32.mrf.mxu0
        %v1910 = vadd.f32 0.0, %v1909
        %1911 = vdwg.mxu0
        %1914 = vrot.lane.b32.xlu0 %v1701, 8
        %v1915 = vpop.permute.xlu0 %1914
        %1916 = vrot.lane.b32.xlu0 %v1704, 8
        %v1917 = vpop.permute.xlu0 %1916
        %1922 = vrot.lane.b32.xlu0 %v1804, 16
        %v1923 = vpop.permute.xlu0 %1922
        %1924 = vrot.lane.b32.xlu0 %v1807, 16
        %v1925 = vpop.permute.xlu0 %1924
        %1930 = vrot.lane.b32.xlu0 %v1907, 24
        %v1931 = vpop.permute.xlu0 %1930
        %1932 = vrot.lane.b32.xlu0 %v1910, 24
        %v1933 = vpop.permute.xlu0 %1932
        %v1936 = vsel %vm774, %v1598, %v1915
        %v1937 = vsel %vm774, %v1601, %v1917
        %v1938 = vsel %vm813, %v1936, %v1923
        %v1939 = vsel %vm813, %v1937, %v1925
        %v1940 = vsel %vm1210, %v1938, %v1931
        %v1941 = vsel %vm1210, %v1939, %v1933
        %s1942 = scalar_lea.vmem %s6, 32
        %v1943 = vld [vmem:[%s1942] sm:$0xff]
        %v1944 = vld [vmem:[%s1942 + $0x8] sm:$0xff]
        %v1945 = vld [vmem:[%s1942 + $0x10] sm:$0xff]
        %v1946 = vld [vmem:[%s1942 + $0x18] sm:$0xff]
        %s1947 = scalar_lea.vmem %s7, 1
        %v1948 = vld [vmem:[%s1947] sm:$0x1]
        %v1950 = vperm.slane %v1948, 0
        %v1953 = vsel %vm668, %v1940, 0
        %v1956 = vsel %vm668, %v1941, 0
        %1958 = vmatpush.msra.mxu0 0.0
        %1959 = vmatpush.msra.mxu0 0.0
        %1960 = vmatpush.msra.mxu0 0.0
        %1961 = vmatpush.msra.mxu0 0.0
        %1962 = vmatpush.msra.mxu0 0.0
        %1963 = vmatpush.msra.mxu0 0.0
        %1964 = vmatpush.msra.mxu0 0.0
        %1965 = vmatpush.msra.mxu0 0.0
        %1966 = vmatpush.msra.mxu0 0.0
        %1967 = vmatpush.msra.mxu0 0.0
        %1968 = vmatpush.msra.mxu0 0.0
        %1969 = vmatpush.msra.mxu0 0.0
        %1970 = vmatpush.msra.mxu0 %v1946
        %1971 = vmatpush.msra.mxu0 %v1945
        %1972 = vmatpush.msra.mxu0 %v1944
        %1973 = vmatpush.msra.mxu0 %v1943
        %1974 = vmatmul.f32.gmra.mxu0 %v1953
        %v1975 = vpop.f32.mrf.mxu0
        %v1976 = vadd.f32 %v1950, %v1975
        %1977 = vmatmul.f32.gmra.mxu0 %v1956
        %v1978 = vpop.f32.mrf.mxu0
        %v1979 = vadd.f32 %v1950, %v1978
        %1980 = vdwg.mxu0
        %v1981 = vadd.f32 %v1976, %v1461
        %v1982 = vadd.f32 %v1979, %v1462
        %s1983 = scalar_lea.vmem %s8, 1
        %v1984 = vld [vmem:[%s1983] sm:$0x1]
        %s1985 = scalar_lea.vmem %s9, 1
        %v1986 = vld [vmem:[%s1985] sm:$0x1]
        %v1987 = vsel %vm668, %v1981, 0.0
        %1988 = vadd.xlane.f32.xlu0 %v1987
        %v1989 = vpop.xlane.xlu0 %1988
        %v1990 = vsel %vm668, %v1982, 0.0
        %1991 = vadd.xlane.f32.xlu0 %v1990
        %v1992 = vpop.xlane.xlu0 %1991
        %v1993 = vmul.f32 %v1989, %v681
        %v1994 = vmul.f32 %v1992, %v681
        %v1995 = vsub.f32 %v1981, %v1993
        %v1996 = vsub.f32 %v1982, %v1994
        %v1997 = vmul.f32 %v1995, %v1995
        %v1998 = vmul.f32 %v1996, %v1996
        %v1999 = vsel %vm668, %v1997, 0.0
        %2000 = vadd.xlane.f32.xlu0 %v1999
        %v2001 = vpop.xlane.xlu0 %2000
        %v2002 = vsel %vm668, %v1998, 0.0
        %2003 = vadd.xlane.f32.xlu0 %v2002
        %v2004 = vpop.xlane.xlu0 %2003
        %v2005 = vmul.f32 %v2001, %v681
        %v2006 = vmul.f32 %v2004, %v681
        %v2007 = vadd.f32 %v2005, 1e-12
        %v2008 = vadd.f32 %v2006, 1e-12
        %v2009 = vrsqrt.pop %v2007
        %v2010 = vmul.f32 %v2009, %v2007
        %v2011 = vmul.f32 %v2010, %v2009
        %v2012 = vmul.f32 0.5, %v2011
        %v2013 = vsub.f32 1.5, %v2012
        %v2014 = vmul.f32 %v2009, %v2013
        %vm2015 = vweird.f32 %v2007
        %vm2016 = vweird.f32 %v2009
        %vm2017 = vmor %vm2015, %vm2016
        %v2018 = vsel %vm2017, %v2009, %v2014
        %v2019 = vrsqrt.pop %v2008
        %v2020 = vmul.f32 %v2019, %v2008
        %v2021 = vmul.f32 %v2020, %v2019
        %v2022 = vmul.f32 0.5, %v2021
        %v2023 = vsub.f32 1.5, %v2022
        %v2024 = vmul.f32 %v2019, %v2023
        %vm2025 = vweird.f32 %v2008
        %vm2026 = vweird.f32 %v2019
        %vm2027 = vmor %vm2025, %vm2026
        %v2028 = vsel %vm2027, %v2019, %v2024
        %v2029 = vmul.f32 %v1995, %v2018
        %v2030 = vmul.f32 %v1996, %v2028
        %v2032 = vperm.slane %v1984, 0
        %v2034 = vmul.f32 %v2029, %v2032
        %v2035 = vmul.f32 %v2030, %v2032
        %v2037 = vperm.slane %v1986, 0
        %v2039 = vadd.f32 %v2034, %v2037
        %v2040 = vadd.f32 %v2035, %v2037
        %s2041 = scalar_lea.vmem %s10, 32
        %v2042 = vld [vmem:[%s2041] sm:$0xff]
        %v2043 = vld [vmem:[%s2041 + $0x8] sm:$0xff]
        %v2044 = vld [vmem:[%s2041 + $0x10] sm:$0xff]
        %v2045 = vld [vmem:[%s2041 + $0x18] sm:$0xff]
        %s2046 = scalar_lea.vmem %s11, 1
        %v2047 = vld [vmem:[%s2046] sm:$0x1]
        %v2049 = vperm.slane %v2047, 0
        %v2052 = vsel %vm668, %v2039, 0
        %v2055 = vsel %vm668, %v2040, 0
        %2057 = vmatpush.msra.mxu0 0.0
        %2058 = vmatpush.msra.mxu0 0.0
        %2059 = vmatpush.msra.mxu0 0.0
        %2060 = vmatpush.msra.mxu0 0.0
        %2061 = vmatpush.msra.mxu0 0.0
        %2062 = vmatpush.msra.mxu0 0.0
        %2063 = vmatpush.msra.mxu0 0.0
        %2064 = vmatpush.msra.mxu0 0.0
        %2065 = vmatpush.msra.mxu0 0.0
        %2066 = vmatpush.msra.mxu0 0.0
        %2067 = vmatpush.msra.mxu0 0.0
        %2068 = vmatpush.msra.mxu0 0.0
        %2069 = vmatpush.msra.mxu0 %v2045
        %2070 = vmatpush.msra.mxu0 %v2044
        %2071 = vmatpush.msra.mxu0 %v2043
        %2072 = vmatpush.msra.mxu0 %v2042
        %2073 = vmatmul.f32.gmra.mxu0 %v2052
        %v2074 = vpop.f32.mrf.mxu0
        %v2075 = vadd.f32 %v2049, %v2074
        %2076 = vmatmul.f32.gmra.mxu0 %v2055
        %v2077 = vpop.f32.mrf.mxu0
        %v2078 = vadd.f32 %v2049, %v2077
        %2079 = vdwg.mxu0
        %v2080 = vmul.f32 %v2075, 0.5
        %v2081 = vmul.f32 %v2078, 0.5
        %v2082 = vmul.f32 %v2075, 0.044715
        %v2083 = vmul.f32 %v2078, 0.044715
        %v2084 = vmul.f32 %v2082, %v2075
        %v2085 = vmul.f32 %v2083, %v2078
        %v2086 = vmul.f32 %v2084, %v2075
        %v2087 = vmul.f32 %v2085, %v2078
        %v2088 = vadd.f32 %v2075, %v2086
        %v2089 = vadd.f32 %v2078, %v2087
        %v2090 = vmul.f32 %v2088, 0.7978846
        %v2091 = vmul.f32 %v2089, 0.7978846
        %v2092 = vtanh.pop %v2090
        %v2093 = vtanh.pop %v2091
        %v2094 = vadd.f32 %v2092, 1.0
        %v2095 = vadd.f32 %v2093, 1.0
        %v2096 = vmul.f32 %v2080, %v2094
        %v2097 = vmul.f32 %v2081, %v2095
        %s2098 = scalar_lea.vmem %s12, 64
        %v2099 = vld [vmem:[%s2098] sm:$0xff]
        %v2100 = vld [vmem:[%s2098 + $0x8] sm:$0xff]
        %v2101 = vld [vmem:[%s2098 + $0x10] sm:$0xff]
        %v2102 = vld [vmem:[%s2098 + $0x18] sm:$0xff]
        %v2103 = vld [vmem:[%s2098 + $0x20] sm:$0xff]
        %v2104 = vld [vmem:[%s2098 + $0x28] sm:$0xff]
        %v2105 = vld [vmem:[%s2098 + $0x30] sm:$0xff]
        %v2106 = vld [vmem:[%s2098 + $0x38] sm:$0xff]
        %s2107 = scalar_lea.vmem %s13, 1
        %v2108 = vld [vmem:[%s2107] sm:$0x1]
        %v2110 = vperm.slane %v2108, 0
        %v2113 = vsel %vm1375, %v2096, 0
        %v2116 = vsel %vm1375, %v2097, 0
        %2118 = vmatpush.msra.mxu0 0.0
        %2119 = vmatpush.msra.mxu0 0.0
        %2120 = vmatpush.msra.mxu0 0.0
        %2121 = vmatpush.msra.mxu0 0.0
        %2122 = vmatpush.msra.mxu0 0.0
        %2123 = vmatpush.msra.mxu0 0.0
        %2124 = vmatpush.msra.mxu0 0.0
        %2125 = vmatpush.msra.mxu0 0.0
        %2126 = vmatpush.msra.mxu0 %v2106
        %2127 = vmatpush.msra.mxu0 %v2105
        %2128 = vmatpush.msra.mxu0 %v2104
        %2129 = vmatpush.msra.mxu0 %v2103
        %2130 = vmatpush.msra.mxu0 %v2102
        %2131 = vmatpush.msra.mxu0 %v2101
        %2132 = vmatpush.msra.mxu0 %v2100
        %2133 = vmatpush.msra.mxu0 %v2099
        %2134 = vmatmul.f32.gmra.mxu0 %v2113
        %v2135 = vpop.f32.mrf.mxu0
        %v2136 = vadd.f32 %v2110, %v2135
        %2137 = vmatmul.f32.gmra.mxu0 %v2116
        %v2138 = vpop.f32.mrf.mxu0
        %v2139 = vadd.f32 %v2110, %v2138
        %2140 = vdwg.mxu0
        %v2141 = vadd.f32 %v2136, %v2039
        %v2142 = vadd.f32 %v2139, %v2040
        %s2143 = scalar_lea.vmem %s14, 1
        %v2144 = vld [vmem:[%s2143] sm:$0x1]
        %s2145 = scalar_lea.vmem %s15, 1
        %v2146 = vld [vmem:[%s2145] sm:$0x1]
        %v2147 = vsel %vm668, %v2141, 0.0
        %2148 = vadd.xlane.f32.xlu0 %v2147
        %v2149 = vpop.xlane.xlu0 %2148
        %v2150 = vsel %vm668, %v2142, 0.0
        %2151 = vadd.xlane.f32.xlu0 %v2150
        %v2152 = vpop.xlane.xlu0 %2151
        %v2153 = vmul.f32 %v2149, %v681
        %v2154 = vmul.f32 %v2152, %v681
        %v2155 = vsub.f32 %v2141, %v2153
        %v2156 = vsub.f32 %v2142, %v2154
        %v2157 = vmul.f32 %v2155, %v2155
        %v2158 = vmul.f32 %v2156, %v2156
        %v2159 = vsel %vm668, %v2157, 0.0
        %2160 = vadd.xlane.f32.xlu0 %v2159
        %v2161 = vpop.xlane.xlu0 %2160
        %v2162 = vsel %vm668, %v2158, 0.0
        %2163 = vadd.xlane.f32.xlu0 %v2162
        %v2164 = vpop.xlane.xlu0 %2163
        %v2165 = vmul.f32 %v2161, %v681
        %v2166 = vmul.f32 %v2164, %v681
        %v2167 = vadd.f32 %v2165, 1e-12
        %v2168 = vadd.f32 %v2166, 1e-12
        %v2169 = vrsqrt.pop %v2167
        %v2170 = vmul.f32 %v2169, %v2167
        %v2171 = vmul.f32 %v2170, %v2169
        %v2172 = vmul.f32 0.5, %v2171
        %v2173 = vsub.f32 1.5, %v2172
        %v2174 = vmul.f32 %v2169, %v2173
        %vm2175 = vweird.f32 %v2167
        %vm2176 = vweird.f32 %v2169
        %vm2177 = vmor %vm2175, %vm2176
        %v2178 = vsel %vm2177, %v2169, %v2174
        %v2179 = vrsqrt.pop %v2168
        %v2180 = vmul.f32 %v2179, %v2168
        %v2181 = vmul.f32 %v2180, %v2179
        %v2182 = vmul.f32 0.5, %v2181
        %v2183 = vsub.f32 1.5, %v2182
        %v2184 = vmul.f32 %v2179, %v2183
        %vm2185 = vweird.f32 %v2168
        %vm2186 = vweird.f32 %v2179
        %vm2187 = vmor %vm2185, %vm2186
        %v2188 = vsel %vm2187, %v2179, %v2184
        %v2189 = vmul.f32 %v2155, %v2178
        %v2190 = vmul.f32 %v2156, %v2188
        %v2192 = vperm.slane %v2144, 0
        %v2194 = vmul.f32 %v2189, %v2192
        %v2195 = vmul.f32 %v2190, %v2192
        %v2197 = vperm.slane %v2146, 0
        %v2199 = vadd.f32 %v2194, %v2197
        %v2200 = vadd.f32 %v2195, %v2197
        %2201 = vst.msk [vmem:[%s637] sm:$0xff] %vm668, %v2199
        %2202 = vst.msk [vmem:[%s637 + $0x8] sm:$0xff] %vm668, %v2200
        %v2203 = vld [vmem:[%s16] sm:$0xff]
        %v2204 = vld [vmem:[%s16 + $0x8] sm:$0xff]
        %v2205 = vld [vmem:[%s16 + $0x10] sm:$0xff]
        %v2206 = vld [vmem:[%s16 + $0x18] sm:$0xff]
        %v2207 = vld [vmem:[%s17] sm:$0x1]
        %v2209 = vsel %vm668, %v2199, 0
        %2211 = vmatpush.msra.mxu0 0.0
        %2212 = vmatpush.msra.mxu0 0.0
        %2213 = vmatpush.msra.mxu0 0.0
        %2214 = vmatpush.msra.mxu0 0.0
        %2215 = vmatpush.msra.mxu0 0.0
        %2216 = vmatpush.msra.mxu0 0.0
        %2217 = vmatpush.msra.mxu0 0.0
        %2218 = vmatpush.msra.mxu0 0.0
        %2219 = vmatpush.msra.mxu0 0.0
        %2220 = vmatpush.msra.mxu0 0.0
        %2221 = vmatpush.msra.mxu0 0.0
        %2222 = vmatpush.msra.mxu0 0.0
        %2223 = vmatpush.msra.mxu0 %v2206
        %2224 = vmatpush.msra.mxu0 %v2205
        %2225 = vmatpush.msra.mxu0 %v2204
        %2226 = vmatpush.msra.mxu0 %v2203
        %2227 = vmatmul.f32.gmra.mxu0 %v2209
        %v2228 = vpop.f32.mrf.mxu0
        %v2229 = vadd.f32 %v2207, %v2228
        %2230 = vdwg.mxu0
        %v2231 = vtanh.pop %v2229
        %vm2232 = vcmask 253952
        %2233 = vst.msk [vmem:[%s643] sm:$0x1] %vm2232, %v2231
        %s2234 = sand.u32 %s434, 1
        %s2235 = scalar_lea.sflag [#allocation3], %s2234
        %s2236 = sand.u32 %s434, 1
        %s2237 = smul.addr %s2236, 16
        %s2238 = scalar_lea.vmem [#allocation2], %s2237
        %s2239 = sand.u32 %s460, 1
        %s2240 = scalar_lea.sflag [#allocation5], %s2239
        %s2241 = sand.u32 %s460, 1
        %s2242 = scalar_lea.vmem [#allocation4], %s2241
        %p2243 = scmp.lt.s32.totalorder %s38, 1
        %s2244 = scalar_select %p2243, %s38, 1
        %s2245 = smul.addr %s2244, 16
        %s2246 = smul.addr %s2245, 8
        %s2247 = scalar_lea.vmem %s20, %s2246
        // Predicated region
        $region93: #{bert_forward.1} parent=91 // pred_check
          %p2248 = pneg %p444
        $region94: #{bert_forward.1} parent=91 // pred_check_branch
          %2250 = sbr.rel (%p2248) target = $region96
        $region95: #{bert_forward.1} parent=91 // pred_region
          %2252 = vsyncadd %s2235, 0
          %s2253 = smul.addr %s38, 2
          %s2254 = smul.addr %s2253, 8
          %s2255 = scalar_lea.hbm %s18, %s2254
          %s2256 = sshll.u32 %s2238, 4
          %s2257 = int_to_ptr.vmem [resolvable:$true] %s2256
          %s2258 = sshll.u32 %s2255, 4
          %s2259 = int_to_ptr.hbm [resolvable:$true] %s2258
          %2264 = dma.vmem_to_hbm [thread:$0]  %s2257, 256, %s2259, %s2235, 128, 128, 8
        $region96: #{bert_forward.1} parent=91 // pred_fallthru
          _
        // Predicated region
        $region97: #{bert_forward.1} parent=91 // pred_check
          %p2265 = pneg %p470
        $region98: #{bert_forward.1} parent=91 // pred_check_branch
          %2267 = sbr.rel (%p2265) target = $region100
        $region99: #{bert_forward.1} parent=91 // pred_region
          %2269 = vsyncadd %s2240, 0
          %s2270 = scalar_lea.hbm %s19, %s38
          %s2272 = sshll.u32 %s2242, 4
          %s2273 = int_to_ptr.vmem [resolvable:$true] %s2272
          %s2274 = sshll.u32 %s2270, 4
          %s2275 = int_to_ptr.hbm [resolvable:$true] %s2274
          %2277 = dma.vmem_to_hbm [thread:$0]  %s2273, 16, %s2275, %s2240
        $region100: #{bert_forward.1} parent=91 // pred_fallthru
          _
        // Predicated region
        $region101: #{bert_forward.1} parent=91 // pred_check
          %p2278 = pneg %p496
        $region102: #{bert_forward.1} parent=91 // pred_check_branch
          %2280 = sbr.rel (%p2278) target = $region104
        $region103: #{bert_forward.1} parent=91 // pred_region
          _
        $region104: #{bert_forward.1} parent=91 // pred_fallthru
          _
      $region92: #{bert_forward.1} parent=5 // pred_fallthru
        _
      %p2281 = scmp.le.s32.totalorder 2, %s33
      // Predicated region
      $region105: #{bert_forward.1} parent=5 // pred_check
        %p2282 = pneg %p2281
      $region106: #{bert_forward.1} parent=5 // pred_check_branch
        %2284 = sbr.rel (%p2282) target = $region108
      $region107: #{bert_forward.1} parent=5 // pred_region
        %s2285 = ssub.s32 %s33, 2
        // Predicated region
        $region109: #{bert_forward.1} parent=107 // pred_check
          %p2286 = pneg %p450
        $region110: #{bert_forward.1} parent=107 // pred_check_branch
          %2288 = sbr.rel (%p2286) target = $region112
        $region111: #{bert_forward.1} parent=107 // pred_region
          %s2289 = sand.u32 %s435, 1
          %s2290 = scalar_lea.sflag [#allocation3], %s2289
          %s2291 = sand.u32 %s435, 1
          %s2292 = smul.addr %s2291, 16
          %s2293 = scalar_lea.vmem [#allocation2], %s2292
          %2295 = dma.done %s2290, 256
        $region112: #{bert_forward.1} parent=107 // pred_fallthru
          _
        // Predicated region
        $region113: #{bert_forward.1} parent=107 // pred_check
          %p2296 = pneg %p476
        $region114: #{bert_forward.1} parent=107 // pred_check_branch
          %2298 = sbr.rel (%p2296) target = $region116
        $region115: #{bert_forward.1} parent=107 // pred_region
          %s2299 = sand.u32 %s461, 1
          %s2300 = scalar_lea.sflag [#allocation5], %s2299
          %s2301 = sand.u32 %s461, 1
          %s2302 = scalar_lea.vmem [#allocation4], %s2301
          %2304 = dma.done %s2300, 16
        $region116: #{bert_forward.1} parent=107 // pred_fallthru
          _
        // Predicated region
        $region117: #{bert_forward.1} parent=107 // pred_check
          %p2305 = pneg %p502
        $region118: #{bert_forward.1} parent=107 // pred_check_branch
          %2307 = sbr.rel (%p2305) target = $region120
        $region119: #{bert_forward.1} parent=107 // pred_region
          %p2308 = scmp.lt.s32.totalorder %s39, 1
          %s2309 = scalar_select %p2308, %s39, 1
          %s2310 = smul.addr %s2309, 16
          %s2311 = smul.addr %s2310, 8
          %s2312 = scalar_lea.vmem %s20, %s2311
        $region120: #{bert_forward.1} parent=107 // pred_fallthru
          _
      $region108: #{bert_forward.1} parent=5 // pred_fallthru
        _
    $region6: #{bert_forward.1} parent=1 // loop_footer
      %s37 = sadd.s32 1, %s33
    $region7: #{bert_forward.1} parent=1 // loop_footer_branch
      %32 = sbr.rel target = $region3
    $region8: #{bert_forward.1} parent=1 // loop_exit
      _
    %2313 = vsyncpa [#allocation3], 1
    %s2314 = scalar_lea.sflag [#allocation3], 1
    %2315 = vsyncpa %s2314, 1
    %2316 = vsyncpa [#allocation5], 1
    %s2317 = scalar_lea.sflag [#allocation5], 1
    %2318 = vsyncpa %s2317, 1

</llo_original>
